<compile_context>
chip_gen: v7x
topology: tpu7x:2x2x1
jax: 0.10.0
libtpu: 0.0.40
codegen_flags: <defaults>
</compile_context>

<pallas_src>
import functools

import jax
import jax.numpy as jnp
import numpy as np
from jax.experimental import pallas as pl
from jax.experimental.pallas import tpu as pltpu

EPS = 1e-5
LANE = 128                     # channel (lane) dim padded to a multiple of this
ROW_CAP = 256                  # max output rows (th*Wo) per conv grid step
EPI_TM = 1024                  # row-tile cap for the element-wise BN epilogues
VMEM_LIMIT = 48 * 1024 * 1024  # < v7x 64 MiB physical, >> v5e 16 MiB scoped default


def _round_up(x, m):
    return (x + m - 1) // m * m


def _pick_th(n, ho, wo, cap_rows=ROW_CAP, min_steps=4):
    """Output-row block height for the conv kernel: divides ho, keeps th*wo
    <= cap_rows, and (when possible) yields >= min_steps grid steps so both
    v7x TensorCores get work under dimension_semantics='parallel'."""
    divs = sorted((d for d in range(1, ho + 1) if ho % d == 0), reverse=True)
    fit = [d for d in divs if d * wo <= cap_rows] or [1]
    for d in fit:
        if n * (ho // d) >= min_steps:
            return d
    return fit[0]


def _row_tile(m, cap):
    """Largest multiple of 8 dividing m, <= cap, preferring >= 4 grid steps."""
    cap = min(cap, max(8, (m // 4) // 8 * 8))
    t = min(cap, m) // 8 * 8
    while t >= 8:
        if m % t == 0:
            return t
        t -= 8
    return m


# ---------------------------------------------------------------------------
# Kernel 1: 3x3 conv from a resident padded image (halo via shifted slices)
#           + one-pass BatchNorm partial statistics
# ---------------------------------------------------------------------------
def _make_conv3x3_kernel(stride, th, wo, cin, cp):
    def kernel(x_ref, w_ref, out_ref, ssum_ref, ssq_ref, acc_ref):
        rb = pl.program_id(1)
        row0 = pl.multiple_of(rb * th, th)
        acc_ref[...] = jnp.zeros_like(acc_ref)
        # 9 accumulating MXU matmuls (K = Cin per tap).  Per-tap accumulation
        # avoids an in-kernel lane concatenation; for Cin >= 128 each matmul
        # is already K-aligned, otherwise the MXU pads K internally.
        for dy in range(3):
            for dx in range(3):
                slab = x_ref[:, dy % stride, dx % stride,
                             pl.ds(row0 + dy // stride, th),
                             pl.ds(dx // stride, wo), :]
                slab = slab.reshape(th * wo, cin)
                acc_ref[...] += jnp.dot(slab, w_ref[dy, dx],
                                        preferred_element_type=jnp.float32)
        acc = acc_ref[...]
        out_ref[...] = acc.reshape(1, th, wo, cp).astype(out_ref.dtype)
        # One-pass BatchNorm partial statistics from the f32 accumulator.
        # TODO(synk): E[x^2]-mean^2 can cancel badly when |mean| >> std at
        # real activation scales; shifted sums would be more robust.
        ssum_ref[0, 0] = jnp.sum(acc, axis=0, keepdims=True)
        ssq_ref[0, 0] = jnp.sum(acc * acc, axis=0, keepdims=True)
    return kernel


def _space_to_depth(xp, stride, ho, wo):
    """Split the spatially-padded image into stride x stride parity planes so
    every in-kernel tap read is a unit-stride slice (stride=1: free reshape)."""
    n, _, _, cin = xp.shape
    pr = ho + 2 // stride
    pc = wo + 2 // stride
    he, we = stride * pr, stride * pc
    xp = jnp.pad(xp, ((0, 0), (0, he - xp.shape[1]), (0, we - xp.shape[2]), (0, 0)))
    xp = xp.reshape(n, pr, stride, pc, stride, cin)
    return jnp.transpose(xp, (0, 2, 4, 1, 3, 5))   # (n, s, s, pr, pc, cin)


def _conv3x3_stats(x_nhwc, w_oihw, stride):
    """3x3 conv (padding=1, no bias) + per-tile BN partial sums.
    Returns conv_raw bf16 (M, Cp), ssum/ssq f32 (N, nrb, 1, Cp), (Ho, Wo)."""
    n, h, w, cin = x_nhwc.shape
    cout = w_oihw.shape[0]
    cp = _round_up(cout, LANE)
    ho = (h + 2 - 3) // stride + 1
    wo = (w + 2 - 3) // stride + 1
    th = _pick_th(n, ho, wo)
    nrb = ho // th

    # One cheap spatial zero-pad + parity split; no k*k im2col duplication.
    xp = jnp.pad(x_nhwc, ((0, 0), (1, 1), (1, 1), (0, 0))).astype(jnp.bfloat16)
    planes = _space_to_depth(xp, stride, ho, wo)
    pr, pc = planes.shape[3], planes.shape[4]

    # (Cout, Cin, 3, 3) -> (3, 3, Cin, Cp), bf16, lane-padded output channels.
    wt = jnp.transpose(w_oihw, (2, 3, 1, 0))
    wt = jnp.pad(wt, ((0, 0), (0, 0), (0, 0), (0, cp - cout))).astype(jnp.bfloat16)

    kernel = _make_conv3x3_kernel(stride, th, wo, cin, cp)
    conv, ssum, ssq = pl.pallas_call(
        kernel,
        out_shape=(
            jax.ShapeDtypeStruct((n, ho, wo, cp), jnp.bfloat16),
            jax.ShapeDtypeStruct((n, nrb, 1, cp), jnp.float32),
            jax.ShapeDtypeStruct((n, nrb, 1, cp), jnp.float32),
        ),
        grid_spec=pltpu.PrefetchScalarGridSpec(
            num_scalar_prefetch=0,
            grid=(n, nrb),
            in_specs=[
                # whole padded image: resident across the row-block axis,
                # re-fetched only when the batch index changes.
                pl.BlockSpec((1, stride, stride, pr, pc, cin),
                             lambda i, j: (i, 0, 0, 0, 0, 0)),
                # weights resident across the whole grid.
                # TODO(synk): single-buffer via pipeline_mode=pl.Buffered(1) to
                # reclaim 9*Cin*Cp*2 bytes of VMEM at deep layers.
                pl.BlockSpec((3, 3, cin, cp), lambda i, j: (0, 0, 0, 0)),
            ],
            out_specs=(
                pl.BlockSpec((1, th, wo, cp), lambda i, j: (i, j, 0, 0)),
                pl.BlockSpec((1, 1, 1, cp), lambda i, j: (i, j, 0, 0)),
                pl.BlockSpec((1, 1, 1, cp), lambda i, j: (i, j, 0, 0)),
            ),
            scratch_shapes=[pltpu.VMEM((th * wo, cp), jnp.float32)],
        ),
        compiler_params=pltpu.CompilerParams(
            dimension_semantics=("parallel", "parallel"),
            vmem_limit_bytes=VMEM_LIMIT),
    )(planes, wt)
    return conv.reshape(n * ho * wo, cp), ssum, ssq, (ho, wo)


# ---------------------------------------------------------------------------
# Kernel 2: shortcut 1x1 conv, statistics only (result recomputed in epilogue)
# ---------------------------------------------------------------------------
def _matmul_stats_kernel(p_ref, w_ref, ssum_ref, ssq_ref):
    acc = jnp.dot(p_ref[...], w_ref[...], preferred_element_type=jnp.float32)
    ssum_ref[0] = jnp.sum(acc, axis=0, keepdims=True)
    ssq_ref[0] = jnp.sum(acc * acc, axis=0, keepdims=True)


def _matmul_stats(p, w):
    m, cin = p.shape
    cp = w.shape[1]
    tm = _row_tile(m, EPI_TM)
    nt = m // tm
    stat = pl.BlockSpec((1, 1, cp), lambda i: (i, 0, 0))
    return pl.pallas_call(
        _matmul_stats_kernel,
        out_shape=(jax.ShapeDtypeStruct((nt, 1, cp), jnp.float32),
                   jax.ShapeDtypeStruct((nt, 1, cp), jnp.float32)),
        grid_spec=pltpu.PrefetchScalarGridSpec(
            num_scalar_prefetch=0, grid=(nt,),
            in_specs=[pl.BlockSpec((tm, cin), lambda i: (i, 0)),
                      pl.BlockSpec((cin, cp), lambda i: (0, 0))],
            out_specs=(stat, stat)),
        compiler_params=pltpu.CompilerParams(
            dimension_semantics=("parallel",), vmem_limit_bytes=VMEM_LIMIT),
    )(p, w)


# ---------------------------------------------------------------------------
# Kernel 3: fused BN-apply (+ residual / recomputed 1x1 shortcut) + ReLU
# ---------------------------------------------------------------------------
def _bn_act_kernel(x_ref, sc_ref, sh_ref, o_ref):
    y = x_ref[...].astype(jnp.float32) * sc_ref[...] + sh_ref[...]
    o_ref[...] = jnp.maximum(y, 0.0).astype(o_ref.dtype)


def _bn_add_act_kernel(x_ref, sc_ref, sh_ref, r_ref, o_ref):
    y = x_ref[...].astype(jnp.float32) * sc_ref[...] + sh_ref[...]
    y = y + r_ref[...].astype(jnp.float32)
    o_ref[...] = jnp.maximum(y, 0.0).astype(o_ref.dtype)


def _bn_ds_act_kernel(x_ref, sc_ref, sh_ref, p_ref, w_ref, rsc_ref, rsh_ref, o_ref):
    y = x_ref[...].astype(jnp.float32) * sc_ref[...] + sh_ref[...]
    # Recompute the tiny 1x1/stride shortcut matmul instead of round-tripping
    # an M x Cp residual through HBM; then apply its folded BatchNorm.
    r = jnp.dot(p_ref[...], w_ref[...], preferred_element_type=jnp.float32)
    y = y + r * rsc_ref[...] + rsh_ref[...]
    o_ref[...] = jnp.maximum(y, 0.0).astype(o_ref.dtype)


def _bn_epilogue(conv, sc, sh, *, out_dtype, residual=None, shortcut=None):
    m, cp = conv.shape
    tm = _row_tile(m, EPI_TM)
    nt = m // tm
    row = pl.BlockSpec((tm, cp), lambda i: (i, 0))
    vec = pl.BlockSpec((1, cp), lambda i: (0, 0))
    if shortcut is not None:
        ps, ws, rsc, rsh = shortcut
        cin = ps.shape[1]
        kernel = _bn_ds_act_kernel
        in_specs = [row, vec, vec,
                    pl.BlockSpec((tm, cin), lambda i: (i, 0)),
                    pl.BlockSpec((cin, cp), lambda i: (0, 0)),
                    vec, vec]
        args = (conv, sc, sh, ps, ws, rsc, rsh)
    elif residual is not None:
        kernel = _bn_add_act_kernel
        in_specs = [row, vec, vec, row]
        args = (conv, sc, sh, residual)
    else:
        kernel = _bn_act_kernel
        in_specs = [row, vec, vec]
        args = (conv, sc, sh)
    return pl.pallas_call(
        kernel,
        out_shape=jax.ShapeDtypeStruct((m, cp), out_dtype),
        grid_spec=pltpu.PrefetchScalarGridSpec(
            num_scalar_prefetch=0, grid=(nt,),
            in_specs=in_specs, out_specs=row),
        compiler_params=pltpu.CompilerParams(
            dimension_semantics=("parallel",), vmem_limit_bytes=VMEM_LIMIT),
    )(*args)


# ---------------------------------------------------------------------------
# Tiny XLA finalize: fold per-tile partial sums into per-channel scale/shift
# ---------------------------------------------------------------------------
def _bn_scale_shift(ssum, ssq, gamma, beta, m_true):
    cp = ssum.shape[-1]
    g = jnp.pad(gamma.astype(jnp.float32), (0, cp - gamma.shape[0]))
    b = jnp.pad(beta.astype(jnp.float32), (0, cp - beta.shape[0]))
    total = jnp.sum(ssum.reshape(-1, cp), axis=0)
    total_sq = jnp.sum(ssq.reshape(-1, cp), axis=0)
    mean = total / m_true
    var = jnp.maximum(total_sq / m_true - mean * mean, 0.0)   # biased (BN train)
    scale = g * jax.lax.rsqrt(var + EPS)
    shift = b - mean * scale
    return scale.reshape(1, cp), shift.reshape(1, cp)


# ---------------------------------------------------------------------------
# BasicBlock forward
# ---------------------------------------------------------------------------
@functools.partial(jax.jit, static_argnames=("stride",))
def basic_block_forward(x_nchw, params, stride):
    # NCHW -> NHWC at the module boundary only.  When stacking blocks into a
    # ResNet stage, keep activations NHWC between blocks and drop these
    # transposes (one full HBM pass each).
    x = jnp.transpose(x_nchw, (0, 2, 3, 1)).astype(jnp.float32)
    n, h, w, cin = x.shape
    cout = params["w1"].shape[0]
    cp = _round_up(cout, LANE)
    downsample = (stride != 1) or (cin != cout)

    # ---- conv1 (3x3/stride, pad 1) + BN1 + ReLU ---------------------------
    c1, s1, q1, (ho, wo) = _conv3x3_stats(x, params["w1"], stride)
    m = n * ho * wo
    sc1, sh1 = _bn_scale_shift(s1, q1, params["g1"], params["be1"], m)
    a1 = _bn_epilogue(c1, sc1, sh1, out_dtype=jnp.bfloat16)   # conv2 input stream

    # ---- shortcut ---------------------------------------------------------
    if downsample:
        # 1x1/stride conv == strided row sampling + matmul.  Only its BN
        # statistics are materialized here; the matmul itself is recomputed in
        # the fused epilogue (no M x Cp residual written to / read from HBM).
        ps = x[:, ::stride, ::stride, :].reshape(m, cin).astype(jnp.bfloat16)
        ws = jnp.pad(params["ws"][:, :, 0, 0].T,
                     ((0, 0), (0, cp - cout))).astype(jnp.bfloat16)
        ss, qs = _matmul_stats(ps, ws)
        rsc, rsh = _bn_scale_shift(ss, qs, params["gs"], params["bes"], m)
        shortcut, residual = (ps, ws, rsc, rsh), None
    else:
        shortcut = None
        residual = jnp.pad(x.reshape(m, cin),
                           ((0, 0), (0, cp - cin))).astype(jnp.bfloat16)

    # ---- conv2 (3x3/1, pad 1) + BN2 + shortcut + ReLU (fused epilogue) ----
    a1_nhwc = a1.reshape(n, ho, wo, cp)[..., :cout]
    c2, s2, q2, _ = _conv3x3_stats(a1_nhwc, params["w2"], 1)
    sc2, sh2 = _bn_scale_shift(s2, q2, params["g2"], params["be2"], m)
    out = _bn_epilogue(c2, sc2, sh2, out_dtype=jnp.float32,
                       residual=residual, shortcut=shortcut)

    out = out[:, :cout].reshape(n, ho, wo, cout)
    return jnp.transpose(out, (0, 3, 1, 2))   # NHWC -> NCHW


# ---------------------------------------------------------------------------
# Pure-JAX reference (mirrors the PyTorch forward, train-mode BatchNorm, f32)
# ---------------------------------------------------------------------------
def basic_block_reference(x_nchw, params, stride):
    def conv(x, w, b, s, pad):
        y = jax.lax.conv_general_dilated(
            x, w, (s, s), [(pad, pad), (pad, pad)],
            dimension_numbers=("NCHW", "OIHW", "NCHW"),
            precision=jax.lax.Precision.HIGHEST)
        return y + b[None, :, None, None]

    def bn(x, g, be):
        mean = jnp.mean(x, axis=(0, 2, 3), keepdims=True)
        var = jnp.mean(jnp.square(x - mean), axis=(0, 2, 3), keepdims=True)
        return (x - mean) * jax.lax.rsqrt(var + EPS) \
            * g[None, :, None, None] + be[None, :, None, None]

    cin, cout = x_nchw.shape[1], params["w1"].shape[0]
    a = jax.nn.relu(bn(conv(x_nchw, params["w1"], params["b1"], stride, 1),
                       params["g1"], params["be1"]))
    a = bn(conv(a, params["w2"], params["b2"], 1, 1),
           params["g2"], params["be2"])
    if stride != 1 or cin != cout:
        s = bn(conv(x_nchw, params["ws"], params["bs"], stride, 0),
               params["gs"], params["bes"])
    else:
        s = x_nchw
    return jax.nn.relu(a + s)


# ---------------------------------------------------------------------------
# Deterministic parameter init (shapes from BasicBlock.__init__)
# ---------------------------------------------------------------------------
def init_block_params(key, in_c, out_c, stride):
    ks = jax.random.split(key, 12)
    p = {
        "w1": jax.random.normal(ks[0], (out_c, in_c, 3, 3), jnp.float32) * 0.1,
        "b1": jax.random.normal(ks[1], (out_c,), jnp.float32) * 0.1,
        "g1": 1.0 + 0.1 * jax.random.normal(ks[2], (out_c,), jnp.float32),
        "be1": 0.1 * jax.random.normal(ks[3], (out_c,), jnp.float32),
        "w2": jax.random.normal(ks[4], (out_c, out_c, 3, 3), jnp.float32) * 0.1,
        "b2": jax.random.normal(ks[5], (out_c,), jnp.float32) * 0.1,
        "g2": 1.0 + 0.1 * jax.random.normal(ks[6], (out_c,), jnp.float32),
        "be2": 0.1 * jax.random.normal(ks[7], (out_c,), jnp.float32),
    }
    if stride != 1 or in_c != out_c:
        p.update({
            "ws": jax.random.normal(ks[8], (out_c, in_c, 1, 1), jnp.float32) * 0.1,
            "bs": jax.random.normal(ks[9], (out_c,), jnp.float32) * 0.1,
            "gs": 1.0 + 0.1 * jax.random.normal(ks[10], (out_c,), jnp.float32),
            "bes": 0.1 * jax.random.normal(ks[11], (out_c,), jnp.float32),
        })
    return p
    # TODO(synk): BatchNorm running_mean/running_var in-place buffer updates are
    # stateful side effects and are not modeled (they do not affect this output).


if __name__ == "__main__":
    key = jax.random.PRNGKey(0)
    k_x1, k_p1, k_x2, k_p2 = jax.random.split(key, 4)

    # bf16 MXU inputs AND bf16 HBM intermediates vs a full-f32 HIGHEST-precision
    # reference: tolerance sized for bf16 error through two convs + BatchNorm.
    RTOL = ATOL = 4e-2

    # Case 1: downsample block (stride=2, channel change -> conv1x1+BN shortcut)
    x1 = jax.random.normal(k_x1, (2, 4, 16, 16), jnp.float32)
    params1 = init_block_params(k_p1, in_c=4, out_c=8, stride=2)
    y1 = jax.block_until_ready(basic_block_forward(x1, params1, stride=2))
    ref1 = basic_block_reference(x1, params1, 2)
    assert y1.shape == (2, 8, 8, 8)
    np.testing.assert_allclose(np.asarray(y1), np.asarray(ref1),
                               rtol=RTOL, atol=ATOL)

    # Case 2: identity-shortcut block (stride=1, in_c == out_c)
    x2 = jax.random.normal(k_x2, (2, 8, 16, 16), jnp.float32)
    params2 = init_block_params(k_p2, in_c=8, out_c=8, stride=1)
    y2 = jax.block_until_ready(basic_block_forward(x2, params2, stride=1))
    ref2 = basic_block_reference(x2, params2, 1)
    assert y2.shape == (2, 8, 16, 16)
    np.testing.assert_allclose(np.asarray(y2), np.asarray(ref2),
                               rtol=RTOL, atol=ATOL)

    print("KERNEL_OK")
</pallas_src>

<mosaic_0001>
module attributes {stable_mosaic.version = 11 : i64} {
  func.func @_bn_act_kernel(%arg0: i32, %arg1: memref<32x128xbf16, #tpu.memory_space<vmem>>, %arg2: memref<1x128xf32, #tpu.memory_space<vmem>>, %arg3: memref<1x128xf32, #tpu.memory_space<vmem>>, %arg4: memref<32x128xbf16, #tpu.memory_space<vmem>>) attributes {dimension_semantics = [#tpu.dimension_semantics<parallel>], iteration_bounds = array<i64: 4>, scalar_prefetch = 0 : i64, scratch_operands = 0 : i64, tpu.core_type = #tpu.core_type<tc>, window_params = [{transform_indices = @transform_0, window_bounds = array<i64: 32, 128>}, {pipeline_mode = #tpu.pipeline_mode<synchronous>, transform_indices = @transform_1, window_bounds = array<i64: 1, 128>}, {pipeline_mode = #tpu.pipeline_mode<synchronous>, transform_indices = @transform_2, window_bounds = array<i64: 1, 128>}, {transform_indices = @transform_3, window_bounds = array<i64: 32, 128>}]} {
    %c0 = arith.constant 0 : index
    %c0_0 = arith.constant 0 : index
    %0 = vector.load %arg1[%c0, %c0_0] : memref<32x128xbf16, #tpu.memory_space<vmem>>, vector<32x128xbf16>
    %1 = arith.extf %0 : vector<32x128xbf16> to vector<32x128xf32>
    %c0_1 = arith.constant 0 : index
    %c0_2 = arith.constant 0 : index
    %2 = vector.load %arg2[%c0_1, %c0_2] : memref<1x128xf32, #tpu.memory_space<vmem>>, vector<1x128xf32>
    %3 = vector.broadcast %2 : vector<1x128xf32> to vector<32x128xf32>
    %4 = arith.mulf %1, %3 : vector<32x128xf32>
    %c0_3 = arith.constant 0 : index
    %c0_4 = arith.constant 0 : index
    %5 = vector.load %arg3[%c0_3, %c0_4] : memref<1x128xf32, #tpu.memory_space<vmem>>, vector<1x128xf32>
    %6 = vector.broadcast %5 : vector<1x128xf32> to vector<32x128xf32>
    %7 = arith.addf %4, %6 : vector<32x128xf32>
    %cst = arith.constant 0.000000e+00 : f32
    %8 = vector.broadcast %cst : f32 to vector<32x128xf32>
    %9 = arith.maximumf %7, %8 : vector<32x128xf32>
    %10 = arith.truncf %9 : vector<32x128xf32> to vector<32x128xbf16>
    %c0_5 = arith.constant 0 : index
    %c0_6 = arith.constant 0 : index
    %11 = vector.load %arg4[%c0_5, %c0_6] : memref<32x128xbf16, #tpu.memory_space<vmem>>, vector<32x128xbf16>
    tpu.vector_store %arg4[%c0_5, %c0_6], %10 {strides = array<i32>} : memref<32x128xbf16, #tpu.memory_space<vmem>>, vector<32x128xbf16>,
    return
  }
  func.func @transform_0(%arg0: i32) -> (i32, i32) {
    %c0_i32 = arith.constant 0 : i32
    %c0_i32_0 = arith.constant 0 : i32
    return %arg0, %c0_i32 : i32, i32
  }
  func.func @transform_1(%arg0: i32) -> (i32, i32) {
    %c0_i32 = arith.constant 0 : i32
    %c0_i32_0 = arith.constant 0 : i32
    %c0_i32_1 = arith.constant 0 : i32
    return %c0_i32, %c0_i32_0 : i32, i32
  }
  func.func @transform_2(%arg0: i32) -> (i32, i32) {
    %c0_i32 = arith.constant 0 : i32
    %c0_i32_0 = arith.constant 0 : i32
    %c0_i32_1 = arith.constant 0 : i32
    return %c0_i32, %c0_i32_0 : i32, i32
  }
  func.func @transform_3(%arg0: i32) -> (i32, i32) {
    %c0_i32 = arith.constant 0 : i32
    %c0_i32_0 = arith.constant 0 : i32
    return %arg0, %c0_i32 : i32, i32
  }
}

module attributes {stable_mosaic.version = 11 : i64} {
  func.func @kernel(%arg0: i32, %arg1: i32, %arg2: memref<1x2x2x9x9x4xbf16, #tpu.memory_space<vmem>>, %arg3: memref<3x3x4x128xbf16, #tpu.memory_space<vmem>>, %arg4: memref<1x4x8x128xbf16, #tpu.memory_space<vmem>>, %arg5: memref<1x1x1x128xf32, #tpu.memory_space<vmem>>, %arg6: memref<1x1x1x128xf32, #tpu.memory_space<vmem>>, %arg7: memref<32x128xf32, #tpu.memory_space<vmem>>) attributes {dimension_semantics = [#tpu.dimension_semantics<parallel>, #tpu.dimension_semantics<parallel>], iteration_bounds = array<i64: 2, 2>, scalar_prefetch = 0 : i64, scratch_operands = 1 : i64, tpu.core_type = #tpu.core_type<tc>, window_params = [{transform_indices = @transform_0, window_bounds = array<i64: 1, 2, 2, 9, 9, 4>}, {pipeline_mode = #tpu.pipeline_mode<synchronous>, transform_indices = @transform_1, window_bounds = array<i64: 3, 3, 4, 128>}, {transform_indices = @transform_2, window_bounds = array<i64: 1, 4, 8, 128>}, {transform_indices = @transform_3, window_bounds = array<i64: 1, 1, 1, 128>}, {transform_indices = @transform_4, window_bounds = array<i64: 1, 1, 1, 128>}]} {
    %c4_i32 = arith.constant 4 : i32
    %0 = arith.muli %arg1, %c4_i32 : i32
    %1 = tpu.assume_multiple %0, 4 : i32
    %cst = arith.constant 0.000000e+00 : f32
    %2 = vector.broadcast %cst : f32 to vector<32x128xf32>
    %c0 = arith.constant 0 : index
    %c0_0 = arith.constant 0 : index
    %3 = vector.load %arg7[%c0, %c0_0] : memref<32x128xf32, #tpu.memory_space<vmem>>, vector<32x128xf32>
    tpu.vector_store %arg7[%c0, %c0_0], %2 {strides = array<i32>} : memref<32x128xf32, #tpu.memory_space<vmem>>, vector<32x128xf32>,
    %c0_i32 = arith.constant 0 : i32
    %4 = arith.addi %1, %c0_i32 : i32
    %c0_1 = arith.constant 0 : index
    %c0_2 = arith.constant 0 : index
    %c0_3 = arith.constant 0 : index
    %5 = arith.index_cast %4 : i32 to index
    %c0_4 = arith.constant 0 : index
    %c0_5 = arith.constant 0 : index
    %6 = vector.load %arg2[%c0_1, %c0_2, %c0_3, %5, %c0_4, %c0_5] : memref<1x2x2x9x9x4xbf16, #tpu.memory_space<vmem>>, vector<1x1x1x4x8x4xbf16>
    %7 = vector.shape_cast %6 : vector<1x1x1x4x8x4xbf16> to vector<1x4x8x4xbf16>
    %8 = vector.shape_cast %7 : vector<1x4x8x4xbf16> to vector<32x4xbf16>
    %c0_6 = arith.constant 0 : index
    %c0_7 = arith.constant 0 : index
    %9 = vector.load %arg7[%c0_6, %c0_7] : memref<32x128xf32, #tpu.memory_space<vmem>>, vector<32x128xf32>
    %c0_8 = arith.constant 0 : index
    %c0_9 = arith.constant 0 : index
    %c0_10 = arith.constant 0 : index
    %c0_11 = arith.constant 0 : index
    %10 = vector.load %arg3[%c0_8, %c0_9, %c0_10, %c0_11] : memref<3x3x4x128xbf16, #tpu.memory_space<vmem>>, vector<1x1x4x128xbf16>
    %11 = vector.shape_cast %10 : vector<1x1x4x128xbf16> to vector<4x128xbf16>
    %cst_12 = arith.constant dense<0.000000e+00> : vector<32x128xf32>
    %12 = tpu.matmul %8, %11, %cst_12 {dimension_numbers = #tpu.dot_dimension_numbers<[1], [0], [0], [1], [0, 0, 1, 1], [], []>} : vector<32x4xbf16>, vector<4x128xbf16>, vector<32x128xf32> -> vector<32x128xf32>
    %13 = arith.addf %9, %12 : vector<32x128xf32>
    %c0_13 = arith.constant 0 : index
    %c0_14 = arith.constant 0 : index
    %14 = vector.load %arg7[%c0_13, %c0_14] : memref<32x128xf32, #tpu.memory_space<vmem>>, vector<32x128xf32>
    tpu.vector_store %arg7[%c0_13, %c0_14], %13 {strides = array<i32>} : memref<32x128xf32, #tpu.memory_space<vmem>>, vector<32x128xf32>,
    %c0_i32_15 = arith.constant 0 : i32
    %15 = arith.addi %1, %c0_i32_15 : i32
    %c0_16 = arith.constant 0 : index
    %c0_17 = arith.constant 0 : index
    %c1 = arith.constant 1 : index
    %16 = arith.index_cast %15 : i32 to index
    %c0_18 = arith.constant 0 : index
    %c0_19 = arith.constant 0 : index
    %17 = vector.load %arg2[%c0_16, %c0_17, %c1, %16, %c0_18, %c0_19] : memref<1x2x2x9x9x4xbf16, #tpu.memory_space<vmem>>, vector<1x1x1x4x8x4xbf16>
    %18 = vector.shape_cast %17 : vector<1x1x1x4x8x4xbf16> to vector<1x4x8x4xbf16>
    %19 = vector.shape_cast %18 : vector<1x4x8x4xbf16> to vector<32x4xbf16>
    %c0_20 = arith.constant 0 : index
    %c0_21 = arith.constant 0 : index
    %20 = vector.load %arg7[%c0_20, %c0_21] : memref<32x128xf32, #tpu.memory_space<vmem>>, vector<32x128xf32>
    %c0_22 = arith.constant 0 : index
    %c1_23 = arith.constant 1 : index
    %c0_24 = arith.constant 0 : index
    %c0_25 = arith.constant 0 : index
    %21 = vector.load %arg3[%c0_22, %c1_23, %c0_24, %c0_25] : memref<3x3x4x128xbf16, #tpu.memory_space<vmem>>, vector<1x1x4x128xbf16>
    %22 = vector.shape_cast %21 : vector<1x1x4x128xbf16> to vector<4x128xbf16>
    %cst_26 = arith.constant dense<0.000000e+00> : vector<32x128xf32>
    %23 = tpu.matmul %19, %22, %cst_26 {dimension_numbers = #tpu.dot_dimension_numbers<[1], [0], [0], [1], [0, 0, 1, 1], [], []>} : vector<32x4xbf16>, vector<4x128xbf16>, vector<32x128xf32> -> vector<32x128xf32>
    %24 = arith.addf %20, %23 : vector<32x128xf32>
    %c0_27 = arith.constant 0 : index
    %c0_28 = arith.constant 0 : index
    %25 = vector.load %arg7[%c0_27, %c0_28] : memref<32x128xf32, #tpu.memory_space<vmem>>, vector<32x128xf32>
    tpu.vector_store %arg7[%c0_27, %c0_28], %24 {strides = array<i32>} : memref<32x128xf32, #tpu.memory_space<vmem>>, vector<32x128xf32>,
    %c0_i32_29 = arith.constant 0 : i32
    %26 = arith.addi %1, %c0_i32_29 : i32
    %c0_30 = arith.constant 0 : index
    %c0_31 = arith.constant 0 : index
    %c0_32 = arith.constant 0 : index
    %27 = arith.index_cast %26 : i32 to index
    %c1_33 = arith.constant 1 : index
    %c0_34 = arith.constant 0 : index
    %28 = vector.load %arg2[%c0_30, %c0_31, %c0_32, %27, %c1_33, %c0_34] : memref<1x2x2x9x9x4xbf16, #tpu.memory_space<vmem>>, vector<1x1x1x4x8x4xbf16>
    %29 = vector.shape_cast %28 : vector<1x1x1x4x8x4xbf16> to vector<1x4x8x4xbf16>
    %30 = vector.shape_cast %29 : vector<1x4x8x4xbf16> to vector<32x4xbf16>
    %c0_35 = arith.constant 0 : index
    %c0_36 = arith.constant 0 : index
    %31 = vector.load %arg7[%c0_35, %c0_36] : memref<32x128xf32, #tpu.memory_space<vmem>>, vector<32x128xf32>
    %c0_37 = arith.constant 0 : index
    %c2 = arith.constant 2 : index
    %c0_38 = arith.constant 0 : index
    %c0_39 = arith.constant 0 : index
    %32 = vector.load %arg3[%c0_37, %c2, %c0_38, %c0_39] : memref<3x3x4x128xbf16, #tpu.memory_space<vmem>>, vector<1x1x4x128xbf16>
    %33 = vector.shape_cast %32 : vector<1x1x4x128xbf16> to vector<4x128xbf16>
    %cst_40 = arith.constant dense<0.000000e+00> : vector<32x128xf32>
    %34 = tpu.matmul %30, %33, %cst_40 {dimension_numbers = #tpu.dot_dimension_numbers<[1], [0], [0], [1], [0, 0, 1, 1], [], []>} : vector<32x4xbf16>, vector<4x128xbf16>, vector<32x128xf32> -> vector<32x128xf32>
    %35 = arith.addf %31, %34 : vector<32x128xf32>
    %c0_41 = arith.constant 0 : index
    %c0_42 = arith.constant 0 : index
    %36 = vector.load %arg7[%c0_41, %c0_42] : memref<32x128xf32, #tpu.memory_space<vmem>>, vector<32x128xf32>
    tpu.vector_store %arg7[%c0_41, %c0_42], %35 {strides = array<i32>} : memref<32x128xf32, #tpu.memory_space<vmem>>, vector<32x128xf32>,
    %c0_i32_43 = arith.constant 0 : i32
    %37 = arith.addi %1, %c0_i32_43 : i32
    %c0_44 = arith.constant 0 : index
    %c1_45 = arith.constant 1 : index
    %c0_46 = arith.constant 0 : index
    %38 = arith.index_cast %37 : i32 to index
    %c0_47 = arith.constant 0 : index
    %c0_48 = arith.constant 0 : index
    %39 = vector.load %arg2[%c0_44, %c1_45, %c0_46, %38, %c0_47, %c0_48] : memref<1x2x2x9x9x4xbf16, #tpu.memory_space<vmem>>, vector<1x1x1x4x8x4xbf16>
    %40 = vector.shape_cast %39 : vector<1x1x1x4x8x4xbf16> to vector<1x4x8x4xbf16>
    %41 = vector.shape_cast %40 : vector<1x4x8x4xbf16> to vector<32x4xbf16>
    %c0_49 = arith.constant 0 : index
    %c0_50 = arith.constant 0 : index
    %42 = vector.load %arg7[%c0_49, %c0_50] : memref<32x128xf32, #tpu.memory_space<vmem>>, vector<32x128xf32>
    %c1_51 = arith.constant 1 : index
    %c0_52 = arith.constant 0 : index
    %c0_53 = arith.constant 0 : index
    %c0_54 = arith.constant 0 : index
    %43 = vector.load %arg3[%c1_51, %c0_52, %c0_53, %c0_54] : memref<3x3x4x128xbf16, #tpu.memory_space<vmem>>, vector<1x1x4x128xbf16>
    %44 = vector.shape_cast %43 : vector<1x1x4x128xbf16> to vector<4x128xbf16>
    %cst_55 = arith.constant dense<0.000000e+00> : vector<32x128xf32>
    %45 = tpu.matmul %41, %44, %cst_55 {dimension_numbers = #tpu.dot_dimension_numbers<[1], [0], [0], [1], [0, 0, 1, 1], [], []>} : vector<32x4xbf16>, vector<4x128xbf16>, vector<32x128xf32> -> vector<32x128xf32>
    %46 = arith.addf %42, %45 : vector<32x128xf32>
    %c0_56 = arith.constant 0 : index
    %c0_57 = arith.constant 0 : index
    %47 = vector.load %arg7[%c0_56, %c0_57] : memref<32x128xf32, #tpu.memory_space<vmem>>, vector<32x128xf32>
    tpu.vector_store %arg7[%c0_56, %c0_57], %46 {strides = array<i32>} : memref<32x128xf32, #tpu.memory_space<vmem>>, vector<32x128xf32>,
    %c0_i32_58 = arith.constant 0 : i32
    %48 = arith.addi %1, %c0_i32_58 : i32
    %c0_59 = arith.constant 0 : index
    %c1_60 = arith.constant 1 : index
    %c1_61 = arith.constant 1 : index
    %49 = arith.index_cast %48 : i32 to index
    %c0_62 = arith.constant 0 : index
    %c0_63 = arith.constant 0 : index
    %50 = vector.load %arg2[%c0_59, %c1_60, %c1_61, %49, %c0_62, %c0_63] : memref<1x2x2x9x9x4xbf16, #tpu.memory_space<vmem>>, vector<1x1x1x4x8x4xbf16>
    %51 = vector.shape_cast %50 : vector<1x1x1x4x8x4xbf16> to vector<1x4x8x4xbf16>
    %52 = vector.shape_cast %51 : vector<1x4x8x4xbf16> to vector<32x4xbf16>
    %c0_64 = arith.constant 0 : index
    %c0_65 = arith.constant 0 : index
    %53 = vector.load %arg7[%c0_64, %c0_65] : memref<32x128xf32, #tpu.memory_space<vmem>>, vector<32x128xf32>
    %c1_66 = arith.constant 1 : index
    %c1_67 = arith.constant 1 : index
    %c0_68 = arith.constant 0 : index
    %c0_69 = arith.constant 0 : index
    %54 = vector.load %arg3[%c1_66, %c1_67, %c0_68, %c0_69] : memref<3x3x4x128xbf16, #tpu.memory_space<vmem>>, vector<1x1x4x128xbf16>
    %55 = vector.shape_cast %54 : vector<1x1x4x128xbf16> to vector<4x128xbf16>
    %cst_70 = arith.constant dense<0.000000e+00> : vector<32x128xf32>
    %56 = tpu.matmul %52, %55, %cst_70 {dimension_numbers = #tpu.dot_dimension_numbers<[1], [0], [0], [1], [0, 0, 1, 1], [], []>} : vector<32x4xbf16>, vector<4x128xbf16>, vector<32x128xf32> -> vector<32x128xf32>
    %57 = arith.addf %53, %56 : vector<32x128xf32>
    %c0_71 = arith.constant 0 : index
    %c0_72 = arith.constant 0 : index
    %58 = vector.load %arg7[%c0_71, %c0_72] : memref<32x128xf32, #tpu.memory_space<vmem>>, vector<32x128xf32>
    tpu.vector_store %arg7[%c0_71, %c0_72], %57 {strides = array<i32>} : memref<32x128xf32, #tpu.memory_space<vmem>>, vector<32x128xf32>,
    %c0_i32_73 = arith.constant 0 : i32
    %59 = arith.addi %1, %c0_i32_73 : i32
    %c0_74 = arith.constant 0 : index
    %c1_75 = arith.constant 1 : index
    %c0_76 = arith.constant 0 : index
    %60 = arith.index_cast %59 : i32 to index
    %c1_77 = arith.constant 1 : index
    %c0_78 = arith.constant 0 : index
    %61 = vector.load %arg2[%c0_74, %c1_75, %c0_76, %60, %c1_77, %c0_78] : memref<1x2x2x9x9x4xbf16, #tpu.memory_space<vmem>>, vector<1x1x1x4x8x4xbf16>
    %62 = vector.shape_cast %61 : vector<1x1x1x4x8x4xbf16> to vector<1x4x8x4xbf16>
    %63 = vector.shape_cast %62 : vector<1x4x8x4xbf16> to vector<32x4xbf16>
    %c0_79 = arith.constant 0 : index
    %c0_80 = arith.constant 0 : index
    %64 = vector.load %arg7[%c0_79, %c0_80] : memref<32x128xf32, #tpu.memory_space<vmem>>, vector<32x128xf32>
    %c1_81 = arith.constant 1 : index
    %c2_82 = arith.constant 2 : index
    %c0_83 = arith.constant 0 : index
    %c0_84 = arith.constant 0 : index
    %65 = vector.load %arg3[%c1_81, %c2_82, %c0_83, %c0_84] : memref<3x3x4x128xbf16, #tpu.memory_space<vmem>>, vector<1x1x4x128xbf16>
    %66 = vector.shape_cast %65 : vector<1x1x4x128xbf16> to vector<4x128xbf16>
    %cst_85 = arith.constant dense<0.000000e+00> : vector<32x128xf32>
    %67 = tpu.matmul %63, %66, %cst_85 {dimension_numbers = #tpu.dot_dimension_numbers<[1], [0], [0], [1], [0, 0, 1, 1], [], []>} : vector<32x4xbf16>, vector<4x128xbf16>, vector<32x128xf32> -> vector<32x128xf32>
    %68 = arith.addf %64, %67 : vector<32x128xf32>
    %c0_86 = arith.constant 0 : index
    %c0_87 = arith.constant 0 : index
    %69 = vector.load %arg7[%c0_86, %c0_87] : memref<32x128xf32, #tpu.memory_space<vmem>>, vector<32x128xf32>
    tpu.vector_store %arg7[%c0_86, %c0_87], %68 {strides = array<i32>} : memref<32x128xf32, #tpu.memory_space<vmem>>, vector<32x128xf32>,
    %c1_i32 = arith.constant 1 : i32
    %70 = arith.addi %1, %c1_i32 : i32
    %c0_88 = arith.constant 0 : index
    %c0_89 = arith.constant 0 : index
    %c0_90 = arith.constant 0 : index
    %71 = arith.index_cast %70 : i32 to index
    %c0_91 = arith.constant 0 : index
    %c0_92 = arith.constant 0 : index
    %72 = vector.load %arg2[%c0_88, %c0_89, %c0_90, %71, %c0_91, %c0_92] : memref<1x2x2x9x9x4xbf16, #tpu.memory_space<vmem>>, vector<1x1x1x4x8x4xbf16>
    %73 = vector.shape_cast %72 : vector<1x1x1x4x8x4xbf16> to vector<1x4x8x4xbf16>
    %74 = vector.shape_cast %73 : vector<1x4x8x4xbf16> to vector<32x4xbf16>
    %c0_93 = arith.constant 0 : index
    %c0_94 = arith.constant 0 : index
    %75 = vector.load %arg7[%c0_93, %c0_94] : memref<32x128xf32, #tpu.memory_space<vmem>>, vector<32x128xf32>
    %c2_95 = arith.constant 2 : index
    %c0_96 = arith.constant 0 : index
    %c0_97 = arith.constant 0 : index
    %c0_98 = arith.constant 0 : index
    %76 = vector.load %arg3[%c2_95, %c0_96, %c0_97, %c0_98] : memref<3x3x4x128xbf16, #tpu.memory_space<vmem>>, vector<1x1x4x128xbf16>
    %77 = vector.shape_cast %76 : vector<1x1x4x128xbf16> to vector<4x128xbf16>
    %cst_99 = arith.constant dense<0.000000e+00> : vector<32x128xf32>
    %78 = tpu.matmul %74, %77, %cst_99 {dimension_numbers = #tpu.dot_dimension_numbers<[1], [0], [0], [1], [0, 0, 1, 1], [], []>} : vector<32x4xbf16>, vector<4x128xbf16>, vector<32x128xf32> -> vector<32x128xf32>
    %79 = arith.addf %75, %78 : vector<32x128xf32>
    %c0_100 = arith.constant 0 : index
    %c0_101 = arith.constant 0 : index
    %80 = vector.load %arg7[%c0_100, %c0_101] : memref<32x128xf32, #tpu.memory_space<vmem>>, vector<32x128xf32>
    tpu.vector_store %arg7[%c0_100, %c0_101], %79 {strides = array<i32>} : memref<32x128xf32, #tpu.memory_space<vmem>>, vector<32x128xf32>,
    %c1_i32_102 = arith.constant 1 : i32
    %81 = arith.addi %1, %c1_i32_102 : i32
    %c0_103 = arith.constant 0 : index
    %c0_104 = arith.constant 0 : index
    %c1_105 = arith.constant 1 : index
    %82 = arith.index_cast %81 : i32 to index
    %c0_106 = arith.constant 0 : index
    %c0_107 = arith.constant 0 : index
    %83 = vector.load %arg2[%c0_103, %c0_104, %c1_105, %82, %c0_106, %c0_107] : memref<1x2x2x9x9x4xbf16, #tpu.memory_space<vmem>>, vector<1x1x1x4x8x4xbf16>
    %84 = vector.shape_cast %83 : vector<1x1x1x4x8x4xbf16> to vector<1x4x8x4xbf16>
    %85 = vector.shape_cast %84 : vector<1x4x8x4xbf16> to vector<32x4xbf16>
    %c0_108 = arith.constant 0 : index
    %c0_109 = arith.constant 0 : index
    %86 = vector.load %arg7[%c0_108, %c0_109] : memref<32x128xf32, #tpu.memory_space<vmem>>, vector<32x128xf32>
    %c2_110 = arith.constant 2 : index
    %c1_111 = arith.constant 1 : index
    %c0_112 = arith.constant 0 : index
    %c0_113 = arith.constant 0 : index
    %87 = vector.load %arg3[%c2_110, %c1_111, %c0_112, %c0_113] : memref<3x3x4x128xbf16, #tpu.memory_space<vmem>>, vector<1x1x4x128xbf16>
    %88 = vector.shape_cast %87 : vector<1x1x4x128xbf16> to vector<4x128xbf16>
    %cst_114 = arith.constant dense<0.000000e+00> : vector<32x128xf32>
    %89 = tpu.matmul %85, %88, %cst_114 {dimension_numbers = #tpu.dot_dimension_numbers<[1], [0], [0], [1], [0, 0, 1, 1], [], []>} : vector<32x4xbf16>, vector<4x128xbf16>, vector<32x128xf32> -> vector<32x128xf32>
    %90 = arith.addf %86, %89 : vector<32x128xf32>
    %c0_115 = arith.constant 0 : index
    %c0_116 = arith.constant 0 : index
    %91 = vector.load %arg7[%c0_115, %c0_116] : memref<32x128xf32, #tpu.memory_space<vmem>>, vector<32x128xf32>
    tpu.vector_store %arg7[%c0_115, %c0_116], %90 {strides = array<i32>} : memref<32x128xf32, #tpu.memory_space<vmem>>, vector<32x128xf32>,
    %c1_i32_117 = arith.constant 1 : i32
    %92 = arith.addi %1, %c1_i32_117 : i32
    %c0_118 = arith.constant 0 : index
    %c0_119 = arith.constant 0 : index
    %c0_120 = arith.constant 0 : index
    %93 = arith.index_cast %92 : i32 to index
    %c1_121 = arith.constant 1 : index
    %c0_122 = arith.constant 0 : index
    %94 = vector.load %arg2[%c0_118, %c0_119, %c0_120, %93, %c1_121, %c0_122] : memref<1x2x2x9x9x4xbf16, #tpu.memory_space<vmem>>, vector<1x1x1x4x8x4xbf16>
    %95 = vector.shape_cast %94 : vector<1x1x1x4x8x4xbf16> to vector<1x4x8x4xbf16>
    %96 = vector.shape_cast %95 : vector<1x4x8x4xbf16> to vector<32x4xbf16>
    %c0_123 = arith.constant 0 : index
    %c0_124 = arith.constant 0 : index
    %97 = vector.load %arg7[%c0_123, %c0_124] : memref<32x128xf32, #tpu.memory_space<vmem>>, vector<32x128xf32>
    %c2_125 = arith.constant 2 : index
    %c2_126 = arith.constant 2 : index
    %c0_127 = arith.constant 0 : index
    %c0_128 = arith.constant 0 : index
    %98 = vector.load %arg3[%c2_125, %c2_126, %c0_127, %c0_128] : memref<3x3x4x128xbf16, #tpu.memory_space<vmem>>, vector<1x1x4x128xbf16>
    %99 = vector.shape_cast %98 : vector<1x1x4x128xbf16> to vector<4x128xbf16>
    %cst_129 = arith.constant dense<0.000000e+00> : vector<32x128xf32>
    %100 = tpu.matmul %96, %99, %cst_129 {dimension_numbers = #tpu.dot_dimension_numbers<[1], [0], [0], [1], [0, 0, 1, 1], [], []>} : vector<32x4xbf16>, vector<4x128xbf16>, vector<32x128xf32> -> vector<32x128xf32>
    %101 = arith.addf %97, %100 : vector<32x128xf32>
    %c0_130 = arith.constant 0 : index
    %c0_131 = arith.constant 0 : index
    %102 = vector.load %arg7[%c0_130, %c0_131] : memref<32x128xf32, #tpu.memory_space<vmem>>, vector<32x128xf32>
    tpu.vector_store %arg7[%c0_130, %c0_131], %101 {strides = array<i32>} : memref<32x128xf32, #tpu.memory_space<vmem>>, vector<32x128xf32>,
    %c0_132 = arith.constant 0 : index
    %c0_133 = arith.constant 0 : index
    %103 = vector.load %arg7[%c0_132, %c0_133] : memref<32x128xf32, #tpu.memory_space<vmem>>, vector<32x128xf32>
    %104 = vector.shape_cast %103 : vector<32x128xf32> to vector<1x4x8x128xf32>
    %105 = arith.truncf %104 : vector<1x4x8x128xf32> to vector<1x4x8x128xbf16>
    %c0_134 = arith.constant 0 : index
    %c0_135 = arith.constant 0 : index
    %c0_136 = arith.constant 0 : index
    %c0_137 = arith.constant 0 : index
    %106 = vector.load %arg4[%c0_134, %c0_135, %c0_136, %c0_137] : memref<1x4x8x128xbf16, #tpu.memory_space<vmem>>, vector<1x4x8x128xbf16>
    tpu.vector_store %arg4[%c0_134, %c0_135, %c0_136, %c0_137], %105 {strides = array<i32>} : memref<1x4x8x128xbf16, #tpu.memory_space<vmem>>, vector<1x4x8x128xbf16>,
    %cst_138 = arith.constant dense<0.000000e+00> : vector<128xf32>
    %107 = vector.multi_reduction <add>, %103, %cst_138 [0] : vector<32x128xf32> to vector<128xf32>
    %108 = vector.shape_cast %107 : vector<128xf32> to vector<1x128xf32>
    %c0_139 = arith.constant 0 : index
    %c0_140 = arith.constant 0 : index
    %c0_141 = arith.constant 0 : index
    %c0_142 = arith.constant 0 : index
    %109 = vector.load %arg5[%c0_139, %c0_140, %c0_141, %c0_142] : memref<1x1x1x128xf32, #tpu.memory_space<vmem>>, vector<1x1x1x128xf32>
    %110 = vector.shape_cast %109 : vector<1x1x1x128xf32> to vector<1x128xf32>
    %111 = vector.shape_cast %108 : vector<1x128xf32> to vector<1x1x1x128xf32>
    tpu.vector_store %arg5[%c0_139, %c0_140, %c0_141, %c0_142], %111 {strides = array<i32>} : memref<1x1x1x128xf32, #tpu.memory_space<vmem>>, vector<1x1x1x128xf32>,
    %112 = arith.mulf %103, %103 : vector<32x128xf32>
    %cst_143 = arith.constant dense<0.000000e+00> : vector<128xf32>
    %113 = vector.multi_reduction <add>, %112, %cst_143 [0] : vector<32x128xf32> to vector<128xf32>
    %114 = vector.shape_cast %113 : vector<128xf32> to vector<1x128xf32>
    %c0_144 = arith.constant 0 : index
    %c0_145 = arith.constant 0 : index
    %c0_146 = arith.constant 0 : index
    %c0_147 = arith.constant 0 : index
    %115 = vector.load %arg6[%c0_144, %c0_145, %c0_146, %c0_147] : memref<1x1x1x128xf32, #tpu.memory_space<vmem>>, vector<1x1x1x128xf32>
    %116 = vector.shape_cast %115 : vector<1x1x1x128xf32> to vector<1x128xf32>
    %117 = vector.shape_cast %114 : vector<1x128xf32> to vector<1x1x1x128xf32>
    tpu.vector_store %arg6[%c0_144, %c0_145, %c0_146, %c0_147], %117 {strides = array<i32>} : memref<1x1x1x128xf32, #tpu.memory_space<vmem>>, vector<1x1x1x128xf32>,
    return
  }
  func.func @transform_0(%arg0: i32, %arg1: i32) -> (i32, i32, i32, i32, i32, i32) {
    %c0_i32 = arith.constant 0 : i32
    %c0_i32_0 = arith.constant 0 : i32
    %c0_i32_1 = arith.constant 0 : i32
    %c0_i32_2 = arith.constant 0 : i32
    %c0_i32_3 = arith.constant 0 : i32
    %c0_i32_4 = arith.constant 0 : i32
    return %arg0, %c0_i32, %c0_i32_0, %c0_i32_1, %c0_i32_2, %c0_i32_3 : i32, i32, i32, i32, i32, i32
  }
  func.func @transform_1(%arg0: i32, %arg1: i32) -> (i32, i32, i32, i32) {
    %c0_i32 = arith.constant 0 : i32
    %c0_i32_0 = arith.constant 0 : i32
    %c0_i32_1 = arith.constant 0 : i32
    %c0_i32_2 = arith.constant 0 : i32
    %c0_i32_3 = arith.constant 0 : i32
    return %c0_i32, %c0_i32_0, %c0_i32_1, %c0_i32_2 : i32, i32, i32, i32
  }
  func.func @transform_2(%arg0: i32, %arg1: i32) -> (i32, i32, i32, i32) {
    %c0_i32 = arith.constant 0 : i32
    %c0_i32_0 = arith.constant 0 : i32
    %c0_i32_1 = arith.constant 0 : i32
    return %arg0, %arg1, %c0_i32, %c0_i32_0 : i32, i32, i32, i32
  }
  func.func @transform_3(%arg0: i32, %arg1: i32) -> (i32, i32, i32, i32) {
    %c0_i32 = arith.constant 0 : i32
    %c0_i32_0 = arith.constant 0 : i32
    %c0_i32_1 = arith.constant 0 : i32
    return %arg0, %arg1, %c0_i32, %c0_i32_0 : i32, i32, i32, i32
  }
  func.func @transform_4(%arg0: i32, %arg1: i32) -> (i32, i32, i32, i32) {
    %c0_i32 = arith.constant 0 : i32
    %c0_i32_0 = arith.constant 0 : i32
    %c0_i32_1 = arith.constant 0 : i32
    return %arg0, %arg1, %c0_i32, %c0_i32_0 : i32, i32, i32, i32
  }
}

module attributes {stable_mosaic.version = 11 : i64} {
  func.func @kernel(%arg0: i32, %arg1: i32, %arg2: memref<1x1x1x10x10x8xbf16, #tpu.memory_space<vmem>>, %arg3: memref<3x3x8x128xbf16, #tpu.memory_space<vmem>>, %arg4: memref<1x4x8x128xbf16, #tpu.memory_space<vmem>>, %arg5: memref<1x1x1x128xf32, #tpu.memory_space<vmem>>, %arg6: memref<1x1x1x128xf32, #tpu.memory_space<vmem>>, %arg7: memref<32x128xf32, #tpu.memory_space<vmem>>) attributes {dimension_semantics = [#tpu.dimension_semantics<parallel>, #tpu.dimension_semantics<parallel>], iteration_bounds = array<i64: 2, 2>, scalar_prefetch = 0 : i64, scratch_operands = 1 : i64, tpu.core_type = #tpu.core_type<tc>, window_params = [{transform_indices = @transform_0, window_bounds = array<i64: 1, 1, 1, 10, 10, 8>}, {pipeline_mode = #tpu.pipeline_mode<synchronous>, transform_indices = @transform_1, window_bounds = array<i64: 3, 3, 8, 128>}, {transform_indices = @transform_2, window_bounds = array<i64: 1, 4, 8, 128>}, {transform_indices = @transform_3, window_bounds = array<i64: 1, 1, 1, 128>}, {transform_indices = @transform_4, window_bounds = array<i64: 1, 1, 1, 128>}]} {
    %c4_i32 = arith.constant 4 : i32
    %0 = arith.muli %arg1, %c4_i32 : i32
    %1 = tpu.assume_multiple %0, 4 : i32
    %cst = arith.constant 0.000000e+00 : f32
    %2 = vector.broadcast %cst : f32 to vector<32x128xf32>
    %c0 = arith.constant 0 : index
    %c0_0 = arith.constant 0 : index
    %3 = vector.load %arg7[%c0, %c0_0] : memref<32x128xf32, #tpu.memory_space<vmem>>, vector<32x128xf32>
    tpu.vector_store %arg7[%c0, %c0_0], %2 {strides = array<i32>} : memref<32x128xf32, #tpu.memory_space<vmem>>, vector<32x128xf32>,
    %c0_i32 = arith.constant 0 : i32
    %4 = arith.addi %1, %c0_i32 : i32
    %c0_1 = arith.constant 0 : index
    %c0_2 = arith.constant 0 : index
    %c0_3 = arith.constant 0 : index
    %5 = arith.index_cast %4 : i32 to index
    %c0_4 = arith.constant 0 : index
    %c0_5 = arith.constant 0 : index
    %6 = vector.load %arg2[%c0_1, %c0_2, %c0_3, %5, %c0_4, %c0_5] : memref<1x1x1x10x10x8xbf16, #tpu.memory_space<vmem>>, vector<1x1x1x4x8x8xbf16>
    %7 = vector.shape_cast %6 : vector<1x1x1x4x8x8xbf16> to vector<1x4x8x8xbf16>
    %8 = vector.shape_cast %7 : vector<1x4x8x8xbf16> to vector<32x8xbf16>
    %c0_6 = arith.constant 0 : index
    %c0_7 = arith.constant 0 : index
    %9 = vector.load %arg7[%c0_6, %c0_7] : memref<32x128xf32, #tpu.memory_space<vmem>>, vector<32x128xf32>
    %c0_8 = arith.constant 0 : index
    %c0_9 = arith.constant 0 : index
    %c0_10 = arith.constant 0 : index
    %c0_11 = arith.constant 0 : index
    %10 = vector.load %arg3[%c0_8, %c0_9, %c0_10, %c0_11] : memref<3x3x8x128xbf16, #tpu.memory_space<vmem>>, vector<1x1x8x128xbf16>
    %11 = vector.shape_cast %10 : vector<1x1x8x128xbf16> to vector<8x128xbf16>
    %cst_12 = arith.constant dense<0.000000e+00> : vector<32x128xf32>
    %12 = tpu.matmul %8, %11, %cst_12 {dimension_numbers = #tpu.dot_dimension_numbers<[1], [0], [0], [1], [0, 0, 1, 1], [], []>} : vector<32x8xbf16>, vector<8x128xbf16>, vector<32x128xf32> -> vector<32x128xf32>
    %13 = arith.addf %9, %12 : vector<32x128xf32>
    %c0_13 = arith.constant 0 : index
    %c0_14 = arith.constant 0 : index
    %14 = vector.load %arg7[%c0_13, %c0_14] : memref<32x128xf32, #tpu.memory_space<vmem>>, vector<32x128xf32>
    tpu.vector_store %arg7[%c0_13, %c0_14], %13 {strides = array<i32>} : memref<32x128xf32, #tpu.memory_space<vmem>>, vector<32x128xf32>,
    %c0_i32_15 = arith.constant 0 : i32
    %15 = arith.addi %1, %c0_i32_15 : i32
    %c0_16 = arith.constant 0 : index
    %c0_17 = arith.constant 0 : index
    %c0_18 = arith.constant 0 : index
    %16 = arith.index_cast %15 : i32 to index
    %c1 = arith.constant 1 : index
    %c0_19 = arith.constant 0 : index
    %17 = vector.load %arg2[%c0_16, %c0_17, %c0_18, %16, %c1, %c0_19] : memref<1x1x1x10x10x8xbf16, #tpu.memory_space<vmem>>, vector<1x1x1x4x8x8xbf16>
    %18 = vector.shape_cast %17 : vector<1x1x1x4x8x8xbf16> to vector<1x4x8x8xbf16>
    %19 = vector.shape_cast %18 : vector<1x4x8x8xbf16> to vector<32x8xbf16>
    %c0_20 = arith.constant 0 : index
    %c0_21 = arith.constant 0 : index
    %20 = vector.load %arg7[%c0_20, %c0_21] : memref<32x128xf32, #tpu.memory_space<vmem>>, vector<32x128xf32>
    %c0_22 = arith.constant 0 : index
    %c1_23 = arith.constant 1 : index
    %c0_24 = arith.constant 0 : index
    %c0_25 = arith.constant 0 : index
    %21 = vector.load %arg3[%c0_22, %c1_23, %c0_24, %c0_25] : memref<3x3x8x128xbf16, #tpu.memory_space<vmem>>, vector<1x1x8x128xbf16>
    %22 = vector.shape_cast %21 : vector<1x1x8x128xbf16> to vector<8x128xbf16>
    %cst_26 = arith.constant dense<0.000000e+00> : vector<32x128xf32>
    %23 = tpu.matmul %19, %22, %cst_26 {dimension_numbers = #tpu.dot_dimension_numbers<[1], [0], [0], [1], [0, 0, 1, 1], [], []>} : vector<32x8xbf16>, vector<8x128xbf16>, vector<32x128xf32> -> vector<32x128xf32>
    %24 = arith.addf %20, %23 : vector<32x128xf32>
    %c0_27 = arith.constant 0 : index
    %c0_28 = arith.constant 0 : index
    %25 = vector.load %arg7[%c0_27, %c0_28] : memref<32x128xf32, #tpu.memory_space<vmem>>, vector<32x128xf32>
    tpu.vector_store %arg7[%c0_27, %c0_28], %24 {strides = array<i32>} : memref<32x128xf32, #tpu.memory_space<vmem>>, vector<32x128xf32>,
    %c0_i32_29 = arith.constant 0 : i32
    %26 = arith.addi %1, %c0_i32_29 : i32
    %c0_30 = arith.constant 0 : index
    %c0_31 = arith.constant 0 : index
    %c0_32 = arith.constant 0 : index
    %27 = arith.index_cast %26 : i32 to index
    %c2 = arith.constant 2 : index
    %c0_33 = arith.constant 0 : index
    %28 = vector.load %arg2[%c0_30, %c0_31, %c0_32, %27, %c2, %c0_33] : memref<1x1x1x10x10x8xbf16, #tpu.memory_space<vmem>>, vector<1x1x1x4x8x8xbf16>
    %29 = vector.shape_cast %28 : vector<1x1x1x4x8x8xbf16> to vector<1x4x8x8xbf16>
    %30 = vector.shape_cast %29 : vector<1x4x8x8xbf16> to vector<32x8xbf16>
    %c0_34 = arith.constant 0 : index
    %c0_35 = arith.constant 0 : index
    %31 = vector.load %arg7[%c0_34, %c0_35] : memref<32x128xf32, #tpu.memory_space<vmem>>, vector<32x128xf32>
    %c0_36 = arith.constant 0 : index
    %c2_37 = arith.constant 2 : index
    %c0_38 = arith.constant 0 : index
    %c0_39 = arith.constant 0 : index
    %32 = vector.load %arg3[%c0_36, %c2_37, %c0_38, %c0_39] : memref<3x3x8x128xbf16, #tpu.memory_space<vmem>>, vector<1x1x8x128xbf16>
    %33 = vector.shape_cast %32 : vector<1x1x8x128xbf16> to vector<8x128xbf16>
    %cst_40 = arith.constant dense<0.000000e+00> : vector<32x128xf32>
    %34 = tpu.matmul %30, %33, %cst_40 {dimension_numbers = #tpu.dot_dimension_numbers<[1], [0], [0], [1], [0, 0, 1, 1], [], []>} : vector<32x8xbf16>, vector<8x128xbf16>, vector<32x128xf32> -> vector<32x128xf32>
    %35 = arith.addf %31, %34 : vector<32x128xf32>
    %c0_41 = arith.constant 0 : index
    %c0_42 = arith.constant 0 : index
    %36 = vector.load %arg7[%c0_41, %c0_42] : memref<32x128xf32, #tpu.memory_space<vmem>>, vector<32x128xf32>
    tpu.vector_store %arg7[%c0_41, %c0_42], %35 {strides = array<i32>} : memref<32x128xf32, #tpu.memory_space<vmem>>, vector<32x128xf32>,
    %c1_i32 = arith.constant 1 : i32
    %37 = arith.addi %1, %c1_i32 : i32
    %c0_43 = arith.constant 0 : index
    %c0_44 = arith.constant 0 : index
    %c0_45 = arith.constant 0 : index
    %38 = arith.index_cast %37 : i32 to index
    %c0_46 = arith.constant 0 : index
    %c0_47 = arith.constant 0 : index
    %39 = vector.load %arg2[%c0_43, %c0_44, %c0_45, %38, %c0_46, %c0_47] : memref<1x1x1x10x10x8xbf16, #tpu.memory_space<vmem>>, vector<1x1x1x4x8x8xbf16>
    %40 = vector.shape_cast %39 : vector<1x1x1x4x8x8xbf16> to vector<1x4x8x8xbf16>
    %41 = vector.shape_cast %40 : vector<1x4x8x8xbf16> to vector<32x8xbf16>
    %c0_48 = arith.constant 0 : index
    %c0_49 = arith.constant 0 : index
    %42 = vector.load %arg7[%c0_48, %c0_49] : memref<32x128xf32, #tpu.memory_space<vmem>>, vector<32x128xf32>
    %c1_50 = arith.constant 1 : index
    %c0_51 = arith.constant 0 : index
    %c0_52 = arith.constant 0 : index
    %c0_53 = arith.constant 0 : index
    %43 = vector.load %arg3[%c1_50, %c0_51, %c0_52, %c0_53] : memref<3x3x8x128xbf16, #tpu.memory_space<vmem>>, vector<1x1x8x128xbf16>
    %44 = vector.shape_cast %43 : vector<1x1x8x128xbf16> to vector<8x128xbf16>
    %cst_54 = arith.constant dense<0.000000e+00> : vector<32x128xf32>
    %45 = tpu.matmul %41, %44, %cst_54 {dimension_numbers = #tpu.dot_dimension_numbers<[1], [0], [0], [1], [0, 0, 1, 1], [], []>} : vector<32x8xbf16>, vector<8x128xbf16>, vector<32x128xf32> -> vector<32x128xf32>
    %46 = arith.addf %42, %45 : vector<32x128xf32>
    %c0_55 = arith.constant 0 : index
    %c0_56 = arith.constant 0 : index
    %47 = vector.load %arg7[%c0_55, %c0_56] : memref<32x128xf32, #tpu.memory_space<vmem>>, vector<32x128xf32>
    tpu.vector_store %arg7[%c0_55, %c0_56], %46 {strides = array<i32>} : memref<32x128xf32, #tpu.memory_space<vmem>>, vector<32x128xf32>,
    %c1_i32_57 = arith.constant 1 : i32
    %48 = arith.addi %1, %c1_i32_57 : i32
    %c0_58 = arith.constant 0 : index
    %c0_59 = arith.constant 0 : index
    %c0_60 = arith.constant 0 : index
    %49 = arith.index_cast %48 : i32 to index
    %c1_61 = arith.constant 1 : index
    %c0_62 = arith.constant 0 : index
    %50 = vector.load %arg2[%c0_58, %c0_59, %c0_60, %49, %c1_61, %c0_62] : memref<1x1x1x10x10x8xbf16, #tpu.memory_space<vmem>>, vector<1x1x1x4x8x8xbf16>
    %51 = vector.shape_cast %50 : vector<1x1x1x4x8x8xbf16> to vector<1x4x8x8xbf16>
    %52 = vector.shape_cast %51 : vector<1x4x8x8xbf16> to vector<32x8xbf16>
    %c0_63 = arith.constant 0 : index
    %c0_64 = arith.constant 0 : index
    %53 = vector.load %arg7[%c0_63, %c0_64] : memref<32x128xf32, #tpu.memory_space<vmem>>, vector<32x128xf32>
    %c1_65 = arith.constant 1 : index
    %c1_66 = arith.constant 1 : index
    %c0_67 = arith.constant 0 : index
    %c0_68 = arith.constant 0 : index
    %54 = vector.load %arg3[%c1_65, %c1_66, %c0_67, %c0_68] : memref<3x3x8x128xbf16, #tpu.memory_space<vmem>>, vector<1x1x8x128xbf16>
    %55 = vector.shape_cast %54 : vector<1x1x8x128xbf16> to vector<8x128xbf16>
    %cst_69 = arith.constant dense<0.000000e+00> : vector<32x128xf32>
    %56 = tpu.matmul %52, %55, %cst_69 {dimension_numbers = #tpu.dot_dimension_numbers<[1], [0], [0], [1], [0, 0, 1, 1], [], []>} : vector<32x8xbf16>, vector<8x128xbf16>, vector<32x128xf32> -> vector<32x128xf32>
    %57 = arith.addf %53, %56 : vector<32x128xf32>
    %c0_70 = arith.constant 0 : index
    %c0_71 = arith.constant 0 : index
    %58 = vector.load %arg7[%c0_70, %c0_71] : memref<32x128xf32, #tpu.memory_space<vmem>>, vector<32x128xf32>
    tpu.vector_store %arg7[%c0_70, %c0_71], %57 {strides = array<i32>} : memref<32x128xf32, #tpu.memory_space<vmem>>, vector<32x128xf32>,
    %c1_i32_72 = arith.constant 1 : i32
    %59 = arith.addi %1, %c1_i32_72 : i32
    %c0_73 = arith.constant 0 : index
    %c0_74 = arith.constant 0 : index
    %c0_75 = arith.constant 0 : index
    %60 = arith.index_cast %59 : i32 to index
    %c2_76 = arith.constant 2 : index
    %c0_77 = arith.constant 0 : index
    %61 = vector.load %arg2[%c0_73, %c0_74, %c0_75, %60, %c2_76, %c0_77] : memref<1x1x1x10x10x8xbf16, #tpu.memory_space<vmem>>, vector<1x1x1x4x8x8xbf16>
    %62 = vector.shape_cast %61 : vector<1x1x1x4x8x8xbf16> to vector<1x4x8x8xbf16>
    %63 = vector.shape_cast %62 : vector<1x4x8x8xbf16> to vector<32x8xbf16>
    %c0_78 = arith.constant 0 : index
    %c0_79 = arith.constant 0 : index
    %64 = vector.load %arg7[%c0_78, %c0_79] : memref<32x128xf32, #tpu.memory_space<vmem>>, vector<32x128xf32>
    %c1_80 = arith.constant 1 : index
    %c2_81 = arith.constant 2 : index
    %c0_82 = arith.constant 0 : index
    %c0_83 = arith.constant 0 : index
    %65 = vector.load %arg3[%c1_80, %c2_81, %c0_82, %c0_83] : memref<3x3x8x128xbf16, #tpu.memory_space<vmem>>, vector<1x1x8x128xbf16>
    %66 = vector.shape_cast %65 : vector<1x1x8x128xbf16> to vector<8x128xbf16>
    %cst_84 = arith.constant dense<0.000000e+00> : vector<32x128xf32>
    %67 = tpu.matmul %63, %66, %cst_84 {dimension_numbers = #tpu.dot_dimension_numbers<[1], [0], [0], [1], [0, 0, 1, 1], [], []>} : vector<32x8xbf16>, vector<8x128xbf16>, vector<32x128xf32> -> vector<32x128xf32>
    %68 = arith.addf %64, %67 : vector<32x128xf32>
    %c0_85 = arith.constant 0 : index
    %c0_86 = arith.constant 0 : index
    %69 = vector.load %arg7[%c0_85, %c0_86] : memref<32x128xf32, #tpu.memory_space<vmem>>, vector<32x128xf32>
    tpu.vector_store %arg7[%c0_85, %c0_86], %68 {strides = array<i32>} : memref<32x128xf32, #tpu.memory_space<vmem>>, vector<32x128xf32>,
    %c2_i32 = arith.constant 2 : i32
    %70 = arith.addi %1, %c2_i32 : i32
    %c0_87 = arith.constant 0 : index
    %c0_88 = arith.constant 0 : index
    %c0_89 = arith.constant 0 : index
    %71 = arith.index_cast %70 : i32 to index
    %c0_90 = arith.constant 0 : index
    %c0_91 = arith.constant 0 : index
    %72 = vector.load %arg2[%c0_87, %c0_88, %c0_89, %71, %c0_90, %c0_91] : memref<1x1x1x10x10x8xbf16, #tpu.memory_space<vmem>>, vector<1x1x1x4x8x8xbf16>
    %73 = vector.shape_cast %72 : vector<1x1x1x4x8x8xbf16> to vector<1x4x8x8xbf16>
    %74 = vector.shape_cast %73 : vector<1x4x8x8xbf16> to vector<32x8xbf16>
    %c0_92 = arith.constant 0 : index
    %c0_93 = arith.constant 0 : index
    %75 = vector.load %arg7[%c0_92, %c0_93] : memref<32x128xf32, #tpu.memory_space<vmem>>, vector<32x128xf32>
    %c2_94 = arith.constant 2 : index
    %c0_95 = arith.constant 0 : index
    %c0_96 = arith.constant 0 : index
    %c0_97 = arith.constant 0 : index
    %76 = vector.load %arg3[%c2_94, %c0_95, %c0_96, %c0_97] : memref<3x3x8x128xbf16, #tpu.memory_space<vmem>>, vector<1x1x8x128xbf16>
    %77 = vector.shape_cast %76 : vector<1x1x8x128xbf16> to vector<8x128xbf16>
    %cst_98 = arith.constant dense<0.000000e+00> : vector<32x128xf32>
    %78 = tpu.matmul %74, %77, %cst_98 {dimension_numbers = #tpu.dot_dimension_numbers<[1], [0], [0], [1], [0, 0, 1, 1], [], []>} : vector<32x8xbf16>, vector<8x128xbf16>, vector<32x128xf32> -> vector<32x128xf32>
    %79 = arith.addf %75, %78 : vector<32x128xf32>
    %c0_99 = arith.constant 0 : index
    %c0_100 = arith.constant 0 : index
    %80 = vector.load %arg7[%c0_99, %c0_100] : memref<32x128xf32, #tpu.memory_space<vmem>>, vector<32x128xf32>
    tpu.vector_store %arg7[%c0_99, %c0_100], %79 {strides = array<i32>} : memref<32x128xf32, #tpu.memory_space<vmem>>, vector<32x128xf32>,
    %c2_i32_101 = arith.constant 2 : i32
    %81 = arith.addi %1, %c2_i32_101 : i32
    %c0_102 = arith.constant 0 : index
    %c0_103 = arith.constant 0 : index
    %c0_104 = arith.constant 0 : index
    %82 = arith.index_cast %81 : i32 to index
    %c1_105 = arith.constant 1 : index
    %c0_106 = arith.constant 0 : index
    %83 = vector.load %arg2[%c0_102, %c0_103, %c0_104, %82, %c1_105, %c0_106] : memref<1x1x1x10x10x8xbf16, #tpu.memory_space<vmem>>, vector<1x1x1x4x8x8xbf16>
    %84 = vector.shape_cast %83 : vector<1x1x1x4x8x8xbf16> to vector<1x4x8x8xbf16>
    %85 = vector.shape_cast %84 : vector<1x4x8x8xbf16> to vector<32x8xbf16>
    %c0_107 = arith.constant 0 : index
    %c0_108 = arith.constant 0 : index
    %86 = vector.load %arg7[%c0_107, %c0_108] : memref<32x128xf32, #tpu.memory_space<vmem>>, vector<32x128xf32>
    %c2_109 = arith.constant 2 : index
    %c1_110 = arith.constant 1 : index
    %c0_111 = arith.constant 0 : index
    %c0_112 = arith.constant 0 : index
    %87 = vector.load %arg3[%c2_109, %c1_110, %c0_111, %c0_112] : memref<3x3x8x128xbf16, #tpu.memory_space<vmem>>, vector<1x1x8x128xbf16>
    %88 = vector.shape_cast %87 : vector<1x1x8x128xbf16> to vector<8x128xbf16>
    %cst_113 = arith.constant dense<0.000000e+00> : vector<32x128xf32>
    %89 = tpu.matmul %85, %88, %cst_113 {dimension_numbers = #tpu.dot_dimension_numbers<[1], [0], [0], [1], [0, 0, 1, 1], [], []>} : vector<32x8xbf16>, vector<8x128xbf16>, vector<32x128xf32> -> vector<32x128xf32>
    %90 = arith.addf %86, %89 : vector<32x128xf32>
    %c0_114 = arith.constant 0 : index
    %c0_115 = arith.constant 0 : index
    %91 = vector.load %arg7[%c0_114, %c0_115] : memref<32x128xf32, #tpu.memory_space<vmem>>, vector<32x128xf32>
    tpu.vector_store %arg7[%c0_114, %c0_115], %90 {strides = array<i32>} : memref<32x128xf32, #tpu.memory_space<vmem>>, vector<32x128xf32>,
    %c2_i32_116 = arith.constant 2 : i32
    %92 = arith.addi %1, %c2_i32_116 : i32
    %c0_117 = arith.constant 0 : index
    %c0_118 = arith.constant 0 : index
    %c0_119 = arith.constant 0 : index
    %93 = arith.index_cast %92 : i32 to index
    %c2_120 = arith.constant 2 : index
    %c0_121 = arith.constant 0 : index
    %94 = vector.load %arg2[%c0_117, %c0_118, %c0_119, %93, %c2_120, %c0_121] : memref<1x1x1x10x10x8xbf16, #tpu.memory_space<vmem>>, vector<1x1x1x4x8x8xbf16>
    %95 = vector.shape_cast %94 : vector<1x1x1x4x8x8xbf16> to vector<1x4x8x8xbf16>
    %96 = vector.shape_cast %95 : vector<1x4x8x8xbf16> to vector<32x8xbf16>
    %c0_122 = arith.constant 0 : index
    %c0_123 = arith.constant 0 : index
    %97 = vector.load %arg7[%c0_122, %c0_123] : memref<32x128xf32, #tpu.memory_space<vmem>>, vector<32x128xf32>
    %c2_124 = arith.constant 2 : index
    %c2_125 = arith.constant 2 : index
    %c0_126 = arith.constant 0 : index
    %c0_127 = arith.constant 0 : index
    %98 = vector.load %arg3[%c2_124, %c2_125, %c0_126, %c0_127] : memref<3x3x8x128xbf16, #tpu.memory_space<vmem>>, vector<1x1x8x128xbf16>
    %99 = vector.shape_cast %98 : vector<1x1x8x128xbf16> to vector<8x128xbf16>
    %cst_128 = arith.constant dense<0.000000e+00> : vector<32x128xf32>
    %100 = tpu.matmul %96, %99, %cst_128 {dimension_numbers = #tpu.dot_dimension_numbers<[1], [0], [0], [1], [0, 0, 1, 1], [], []>} : vector<32x8xbf16>, vector<8x128xbf16>, vector<32x128xf32> -> vector<32x128xf32>
    %101 = arith.addf %97, %100 : vector<32x128xf32>
    %c0_129 = arith.constant 0 : index
    %c0_130 = arith.constant 0 : index
    %102 = vector.load %arg7[%c0_129, %c0_130] : memref<32x128xf32, #tpu.memory_space<vmem>>, vector<32x128xf32>
    tpu.vector_store %arg7[%c0_129, %c0_130], %101 {strides = array<i32>} : memref<32x128xf32, #tpu.memory_space<vmem>>, vector<32x128xf32>,
    %c0_131 = arith.constant 0 : index
    %c0_132 = arith.constant 0 : index
    %103 = vector.load %arg7[%c0_131, %c0_132] : memref<32x128xf32, #tpu.memory_space<vmem>>, vector<32x128xf32>
    %104 = vector.shape_cast %103 : vector<32x128xf32> to vector<1x4x8x128xf32>
    %105 = arith.truncf %104 : vector<1x4x8x128xf32> to vector<1x4x8x128xbf16>
    %c0_133 = arith.constant 0 : index
    %c0_134 = arith.constant 0 : index
    %c0_135 = arith.constant 0 : index
    %c0_136 = arith.constant 0 : index
    %106 = vector.load %arg4[%c0_133, %c0_134, %c0_135, %c0_136] : memref<1x4x8x128xbf16, #tpu.memory_space<vmem>>, vector<1x4x8x128xbf16>
    tpu.vector_store %arg4[%c0_133, %c0_134, %c0_135, %c0_136], %105 {strides = array<i32>} : memref<1x4x8x128xbf16, #tpu.memory_space<vmem>>, vector<1x4x8x128xbf16>,
    %cst_137 = arith.constant dense<0.000000e+00> : vector<128xf32>
    %107 = vector.multi_reduction <add>, %103, %cst_137 [0] : vector<32x128xf32> to vector<128xf32>
    %108 = vector.shape_cast %107 : vector<128xf32> to vector<1x128xf32>
    %c0_138 = arith.constant 0 : index
    %c0_139 = arith.constant 0 : index
    %c0_140 = arith.constant 0 : index
    %c0_141 = arith.constant 0 : index
    %109 = vector.load %arg5[%c0_138, %c0_139, %c0_140, %c0_141] : memref<1x1x1x128xf32, #tpu.memory_space<vmem>>, vector<1x1x1x128xf32>
    %110 = vector.shape_cast %109 : vector<1x1x1x128xf32> to vector<1x128xf32>
    %111 = vector.shape_cast %108 : vector<1x128xf32> to vector<1x1x1x128xf32>
    tpu.vector_store %arg5[%c0_138, %c0_139, %c0_140, %c0_141], %111 {strides = array<i32>} : memref<1x1x1x128xf32, #tpu.memory_space<vmem>>, vector<1x1x1x128xf32>,
    %112 = arith.mulf %103, %103 : vector<32x128xf32>
    %cst_142 = arith.constant dense<0.000000e+00> : vector<128xf32>
    %113 = vector.multi_reduction <add>, %112, %cst_142 [0] : vector<32x128xf32> to vector<128xf32>
    %114 = vector.shape_cast %113 : vector<128xf32> to vector<1x128xf32>
    %c0_143 = arith.constant 0 : index
    %c0_144 = arith.constant 0 : index
    %c0_145 = arith.constant 0 : index
    %c0_146 = arith.constant 0 : index
    %115 = vector.load %arg6[%c0_143, %c0_144, %c0_145, %c0_146] : memref<1x1x1x128xf32, #tpu.memory_space<vmem>>, vector<1x1x1x128xf32>
    %116 = vector.shape_cast %115 : vector<1x1x1x128xf32> to vector<1x128xf32>
    %117 = vector.shape_cast %114 : vector<1x128xf32> to vector<1x1x1x128xf32>
    tpu.vector_store %arg6[%c0_143, %c0_144, %c0_145, %c0_146], %117 {strides = array<i32>} : memref<1x1x1x128xf32, #tpu.memory_space<vmem>>, vector<1x1x1x128xf32>,
    return
  }
  func.func @transform_0(%arg0: i32, %arg1: i32) -> (i32, i32, i32, i32, i32, i32) {
    %c0_i32 = arith.constant 0 : i32
    %c0_i32_0 = arith.constant 0 : i32
    %c0_i32_1 = arith.constant 0 : i32
    %c0_i32_2 = arith.constant 0 : i32
    %c0_i32_3 = arith.constant 0 : i32
    %c0_i32_4 = arith.constant 0 : i32
    return %arg0, %c0_i32, %c0_i32_0, %c0_i32_1, %c0_i32_2, %c0_i32_3 : i32, i32, i32, i32, i32, i32
  }
  func.func @transform_1(%arg0: i32, %arg1: i32) -> (i32, i32, i32, i32) {
    %c0_i32 = arith.constant 0 : i32
    %c0_i32_0 = arith.constant 0 : i32
    %c0_i32_1 = arith.constant 0 : i32
    %c0_i32_2 = arith.constant 0 : i32
    %c0_i32_3 = arith.constant 0 : i32
    return %c0_i32, %c0_i32_0, %c0_i32_1, %c0_i32_2 : i32, i32, i32, i32
  }
  func.func @transform_2(%arg0: i32, %arg1: i32) -> (i32, i32, i32, i32) {
    %c0_i32 = arith.constant 0 : i32
    %c0_i32_0 = arith.constant 0 : i32
    %c0_i32_1 = arith.constant 0 : i32
    return %arg0, %arg1, %c0_i32, %c0_i32_0 : i32, i32, i32, i32
  }
  func.func @transform_3(%arg0: i32, %arg1: i32) -> (i32, i32, i32, i32) {
    %c0_i32 = arith.constant 0 : i32
    %c0_i32_0 = arith.constant 0 : i32
    %c0_i32_1 = arith.constant 0 : i32
    return %arg0, %arg1, %c0_i32, %c0_i32_0 : i32, i32, i32, i32
  }
  func.func @transform_4(%arg0: i32, %arg1: i32) -> (i32, i32, i32, i32) {
    %c0_i32 = arith.constant 0 : i32
    %c0_i32_0 = arith.constant 0 : i32
    %c0_i32_1 = arith.constant 0 : i32
    return %arg0, %arg1, %c0_i32, %c0_i32_0 : i32, i32, i32, i32
  }
}

module attributes {stable_mosaic.version = 11 : i64} {
  func.func @_bn_ds_act_kernel(%arg0: i32, %arg1: memref<32x128xbf16, #tpu.memory_space<vmem>>, %arg2: memref<1x128xf32, #tpu.memory_space<vmem>>, %arg3: memref<1x128xf32, #tpu.memory_space<vmem>>, %arg4: memref<32x4xbf16, #tpu.memory_space<vmem>>, %arg5: memref<4x128xbf16, #tpu.memory_space<vmem>>, %arg6: memref<1x128xf32, #tpu.memory_space<vmem>>, %arg7: memref<1x128xf32, #tpu.memory_space<vmem>>, %arg8: memref<32x128xf32, #tpu.memory_space<vmem>>) attributes {dimension_semantics = [#tpu.dimension_semantics<parallel>], iteration_bounds = array<i64: 4>, scalar_prefetch = 0 : i64, scratch_operands = 0 : i64, tpu.core_type = #tpu.core_type<tc>, window_params = [{transform_indices = @transform_0, window_bounds = array<i64: 32, 128>}, {pipeline_mode = #tpu.pipeline_mode<synchronous>, transform_indices = @transform_1, window_bounds = array<i64: 1, 128>}, {pipeline_mode = #tpu.pipeline_mode<synchronous>, transform_indices = @transform_2, window_bounds = array<i64: 1, 128>}, {transform_indices = @transform_3, window_bounds = array<i64: 32, 4>}, {pipeline_mode = #tpu.pipeline_mode<synchronous>, transform_indices = @transform_4, window_bounds = array<i64: 4, 128>}, {pipeline_mode = #tpu.pipeline_mode<synchronous>, transform_indices = @transform_5, window_bounds = array<i64: 1, 128>}, {pipeline_mode = #tpu.pipeline_mode<synchronous>, transform_indices = @transform_6, window_bounds = array<i64: 1, 128>}, {transform_indices = @transform_7, window_bounds = array<i64: 32, 128>}]} {
    %c0 = arith.constant 0 : index
    %c0_0 = arith.constant 0 : index
    %0 = vector.load %arg1[%c0, %c0_0] : memref<32x128xbf16, #tpu.memory_space<vmem>>, vector<32x128xbf16>
    %1 = arith.extf %0 : vector<32x128xbf16> to vector<32x128xf32>
    %c0_1 = arith.constant 0 : index
    %c0_2 = arith.constant 0 : index
    %2 = vector.load %arg2[%c0_1, %c0_2] : memref<1x128xf32, #tpu.memory_space<vmem>>, vector<1x128xf32>
    %3 = vector.broadcast %2 : vector<1x128xf32> to vector<32x128xf32>
    %4 = arith.mulf %1, %3 : vector<32x128xf32>
    %c0_3 = arith.constant 0 : index
    %c0_4 = arith.constant 0 : index
    %5 = vector.load %arg3[%c0_3, %c0_4] : memref<1x128xf32, #tpu.memory_space<vmem>>, vector<1x128xf32>
    %6 = vector.broadcast %5 : vector<1x128xf32> to vector<32x128xf32>
    %7 = arith.addf %4, %6 : vector<32x128xf32>
    %c0_5 = arith.constant 0 : index
    %c0_6 = arith.constant 0 : index
    %8 = vector.load %arg4[%c0_5, %c0_6] : memref<32x4xbf16, #tpu.memory_space<vmem>>, vector<32x4xbf16>
    %c0_7 = arith.constant 0 : index
    %c0_8 = arith.constant 0 : index
    %9 = vector.load %arg5[%c0_7, %c0_8] : memref<4x128xbf16, #tpu.memory_space<vmem>>, vector<4x128xbf16>
    %cst = arith.constant dense<0.000000e+00> : vector<32x128xf32>
    %10 = tpu.matmul %8, %9, %cst {dimension_numbers = #tpu.dot_dimension_numbers<[1], [0], [0], [1], [0, 0, 1, 1], [], []>} : vector<32x4xbf16>, vector<4x128xbf16>, vector<32x128xf32> -> vector<32x128xf32>
    %c0_9 = arith.constant 0 : index
    %c0_10 = arith.constant 0 : index
    %11 = vector.load %arg6[%c0_9, %c0_10] : memref<1x128xf32, #tpu.memory_space<vmem>>, vector<1x128xf32>
    %12 = vector.broadcast %11 : vector<1x128xf32> to vector<32x128xf32>
    %13 = arith.mulf %10, %12 : vector<32x128xf32>
    %14 = arith.addf %7, %13 : vector<32x128xf32>
    %c0_11 = arith.constant 0 : index
    %c0_12 = arith.constant 0 : index
    %15 = vector.load %arg7[%c0_11, %c0_12] : memref<1x128xf32, #tpu.memory_space<vmem>>, vector<1x128xf32>
    %16 = vector.broadcast %15 : vector<1x128xf32> to vector<32x128xf32>
    %17 = arith.addf %14, %16 : vector<32x128xf32>
    %cst_13 = arith.constant 0.000000e+00 : f32
    %18 = vector.broadcast %cst_13 : f32 to vector<32x128xf32>
    %19 = arith.maximumf %17, %18 : vector<32x128xf32>
    %c0_14 = arith.constant 0 : index
    %c0_15 = arith.constant 0 : index
    %20 = vector.load %arg8[%c0_14, %c0_15] : memref<32x128xf32, #tpu.memory_space<vmem>>, vector<32x128xf32>
    tpu.vector_store %arg8[%c0_14, %c0_15], %19 {strides = array<i32>} : memref<32x128xf32, #tpu.memory_space<vmem>>, vector<32x128xf32>,
    return
  }
  func.func @transform_0(%arg0: i32) -> (i32, i32) {
    %c0_i32 = arith.constant 0 : i32
    %c0_i32_0 = arith.constant 0 : i32
    return %arg0, %c0_i32 : i32, i32
  }
  func.func @transform_1(%arg0: i32) -> (i32, i32) {
    %c0_i32 = arith.constant 0 : i32
    %c0_i32_0 = arith.constant 0 : i32
    %c0_i32_1 = arith.constant 0 : i32
    return %c0_i32, %c0_i32_0 : i32, i32
  }
  func.func @transform_2(%arg0: i32) -> (i32, i32) {
    %c0_i32 = arith.constant 0 : i32
    %c0_i32_0 = arith.constant 0 : i32
    %c0_i32_1 = arith.constant 0 : i32
    return %c0_i32, %c0_i32_0 : i32, i32
  }
  func.func @transform_3(%arg0: i32) -> (i32, i32) {
    %c0_i32 = arith.constant 0 : i32
    %c0_i32_0 = arith.constant 0 : i32
    return %arg0, %c0_i32 : i32, i32
  }
  func.func @transform_4(%arg0: i32) -> (i32, i32) {
    %c0_i32 = arith.constant 0 : i32
    %c0_i32_0 = arith.constant 0 : i32
    %c0_i32_1 = arith.constant 0 : i32
    return %c0_i32, %c0_i32_0 : i32, i32
  }
  func.func @transform_5(%arg0: i32) -> (i32, i32) {
    %c0_i32 = arith.constant 0 : i32
    %c0_i32_0 = arith.constant 0 : i32
    %c0_i32_1 = arith.constant 0 : i32
    return %c0_i32, %c0_i32_0 : i32, i32
  }
  func.func @transform_6(%arg0: i32) -> (i32, i32) {
    %c0_i32 = arith.constant 0 : i32
    %c0_i32_0 = arith.constant 0 : i32
    %c0_i32_1 = arith.constant 0 : i32
    return %c0_i32, %c0_i32_0 : i32, i32
  }
  func.func @transform_7(%arg0: i32) -> (i32, i32) {
    %c0_i32 = arith.constant 0 : i32
    %c0_i32_0 = arith.constant 0 : i32
    return %arg0, %c0_i32 : i32, i32
  }
}

module attributes {stable_mosaic.version = 11 : i64} {
  func.func @_matmul_stats_kernel(%arg0: i32, %arg1: memref<32x4xbf16, #tpu.memory_space<vmem>>, %arg2: memref<4x128xbf16, #tpu.memory_space<vmem>>, %arg3: memref<1x1x128xf32, #tpu.memory_space<vmem>>, %arg4: memref<1x1x128xf32, #tpu.memory_space<vmem>>) attributes {dimension_semantics = [#tpu.dimension_semantics<parallel>], iteration_bounds = array<i64: 4>, scalar_prefetch = 0 : i64, scratch_operands = 0 : i64, tpu.core_type = #tpu.core_type<tc>, window_params = [{transform_indices = @transform_0, window_bounds = array<i64: 32, 4>}, {pipeline_mode = #tpu.pipeline_mode<synchronous>, transform_indices = @transform_1, window_bounds = array<i64: 4, 128>}, {transform_indices = @transform_2, window_bounds = array<i64: 1, 1, 128>}, {transform_indices = @transform_3, window_bounds = array<i64: 1, 1, 128>}]} {
    %c0 = arith.constant 0 : index
    %c0_0 = arith.constant 0 : index
    %0 = vector.load %arg1[%c0, %c0_0] : memref<32x4xbf16, #tpu.memory_space<vmem>>, vector<32x4xbf16>
    %c0_1 = arith.constant 0 : index
    %c0_2 = arith.constant 0 : index
    %1 = vector.load %arg2[%c0_1, %c0_2] : memref<4x128xbf16, #tpu.memory_space<vmem>>, vector<4x128xbf16>
    %cst = arith.constant dense<0.000000e+00> : vector<32x128xf32>
    %2 = tpu.matmul %0, %1, %cst {dimension_numbers = #tpu.dot_dimension_numbers<[1], [0], [0], [1], [0, 0, 1, 1], [], []>} : vector<32x4xbf16>, vector<4x128xbf16>, vector<32x128xf32> -> vector<32x128xf32>
    %cst_3 = arith.constant dense<0.000000e+00> : vector<128xf32>
    %3 = vector.multi_reduction <add>, %2, %cst_3 [0] : vector<32x128xf32> to vector<128xf32>
    %4 = vector.shape_cast %3 : vector<128xf32> to vector<1x128xf32>
    %c0_4 = arith.constant 0 : index
    %c0_5 = arith.constant 0 : index
    %c0_6 = arith.constant 0 : index
    %5 = vector.load %arg3[%c0_4, %c0_5, %c0_6] : memref<1x1x128xf32, #tpu.memory_space<vmem>>, vector<1x1x128xf32>
    %6 = vector.shape_cast %5 : vector<1x1x128xf32> to vector<1x128xf32>
    %7 = vector.shape_cast %4 : vector<1x128xf32> to vector<1x1x128xf32>
    tpu.vector_store %arg3[%c0_4, %c0_5, %c0_6], %7 {strides = array<i32>} : memref<1x1x128xf32, #tpu.memory_space<vmem>>, vector<1x1x128xf32>,
    %8 = arith.mulf %2, %2 : vector<32x128xf32>
    %cst_7 = arith.constant dense<0.000000e+00> : vector<128xf32>
    %9 = vector.multi_reduction <add>, %8, %cst_7 [0] : vector<32x128xf32> to vector<128xf32>
    %10 = vector.shape_cast %9 : vector<128xf32> to vector<1x128xf32>
    %c0_8 = arith.constant 0 : index
    %c0_9 = arith.constant 0 : index
    %c0_10 = arith.constant 0 : index
    %11 = vector.load %arg4[%c0_8, %c0_9, %c0_10] : memref<1x1x128xf32, #tpu.memory_space<vmem>>, vector<1x1x128xf32>
    %12 = vector.shape_cast %11 : vector<1x1x128xf32> to vector<1x128xf32>
    %13 = vector.shape_cast %10 : vector<1x128xf32> to vector<1x1x128xf32>
    tpu.vector_store %arg4[%c0_8, %c0_9, %c0_10], %13 {strides = array<i32>} : memref<1x1x128xf32, #tpu.memory_space<vmem>>, vector<1x1x128xf32>,
    return
  }
  func.func @transform_0(%arg0: i32) -> (i32, i32) {
    %c0_i32 = arith.constant 0 : i32
    %c0_i32_0 = arith.constant 0 : i32
    return %arg0, %c0_i32 : i32, i32
  }
  func.func @transform_1(%arg0: i32) -> (i32, i32) {
    %c0_i32 = arith.constant 0 : i32
    %c0_i32_0 = arith.constant 0 : i32
    %c0_i32_1 = arith.constant 0 : i32
    return %c0_i32, %c0_i32_0 : i32, i32
  }
  func.func @transform_2(%arg0: i32) -> (i32, i32, i32) {
    %c0_i32 = arith.constant 0 : i32
    %c0_i32_0 = arith.constant 0 : i32
    %c0_i32_1 = arith.constant 0 : i32
    return %arg0, %c0_i32, %c0_i32_0 : i32, i32, i32
  }
  func.func @transform_3(%arg0: i32) -> (i32, i32, i32) {
    %c0_i32 = arith.constant 0 : i32
    %c0_i32_0 = arith.constant 0 : i32
    %c0_i32_1 = arith.constant 0 : i32
    return %arg0, %c0_i32, %c0_i32_0 : i32, i32, i32
  }
}

</mosaic_0001>

<llo_original>
// kernel: basic_block_forward.6
$region0: #{basic_block_forward.6}
  #allocation0 [shape = 'u32[]', space=smem, size = 0x4, offset = 0x4, fixed_abs, tag = 'smem constant byte address 0x4 - core index']
  #allocation1 [shape = 'u32[144,128]{1,0:T(1,128)}', space=vmem, size = 0x12000, scoped, tag = 'internal scratch']
  %s0 = inlined_call_operand.vmem [shape: bf16[128,128], index: 0, kind: input, shape index: {}]
  %s1 = inlined_call_operand.vmem [shape: f32[1,128], index: 1, kind: input, shape index: {}]
  %s2 = inlined_call_operand.vmem [shape: f32[1,128], index: 2, kind: input, shape index: {}]
  %s3 = inlined_call_operand.vmem [shape: bf16[128,128], index: 3, kind: output, shape index: {}]
  %s4 = sld [smem:[#allocation0]]
  $region45: #{basic_block_forward.6} parent=0
    _
  %s6 = ssub.s32 1, %s4
  %s7 = scalar_select 0, %s6, %s4
  loop: start=0, step=1, limit=6
  $region2: #{basic_block_forward.6} parent=0 // loop_pre_header
    _
  $region3: #{basic_block_forward.6} parent=0 // loop_header
    %s9 = sphi 0, %s13
    %p10 = scmp.ge.s32.totalorder %s9, 6
    %s19 = sphi 0, %s21
    %s22 = sphi 0, %s19
    %s23 = sphi 0, %s22
    %s39 = sphi 0, %s23
    %s43 = sphi 0, %s43
    %s45 = sphi 0, %s43
    %s46 = sphi 0, %s45
    %s60 = sphi 0, %s46
    %s64 = sphi 0, %s64
    %s66 = sphi 0, %s64
    %s67 = sphi 0, %s66
    %s81 = sphi 0, %s67
    %s87 = sphi 0, %s89
    %s90 = sphi 0, %s87
    %s91 = sphi 0, %s90
    %s107 = sphi 0, %s91
  $region4: #{basic_block_forward.6} parent=0 // loop_header_branch
    %12 = sbr.rel (%p10) target = $region8
  $region5: #{basic_block_forward.6} parent=0 // loop_body
    %s14 = ssub.s32 %s9, 1
    %s15 = ssub.s32 %s9, 2
    %s16 = sadd.s32 %s9, 1
    %s17 = ssub.s32 %s9, %s16
    %p18 = scmp.eq.s32.totalorder %s17, 0
    %s20 = sadd.s32 %s19, 1
    %s21 = scalar_select %p18, %s19, %s20
    %p24 = pneg %p18
    %p25 = scmp.eq.s32.totalorder %s9, 3
    %p26 = por %p24, %p25
    %p27 = scmp.ne.s32.totalorder %s19, %s22
    %p28 = scmp.eq.s32.totalorder %s9, 0
    %p29 = por %p27, %p28
    %p30 = scmp.ne.s32.totalorder %s19, %s22
    %p31 = scmp.eq.s32.totalorder %s14, 3
    %p32 = por %p30, %p31
    %p33 = scmp.ne.s32.totalorder %s22, %s23
    %p34 = scmp.eq.s32.totalorder %s14, 0
    %p35 = por %p33, %p34
    %p36 = scmp.ne.s32.totalorder %s22, %s23
    %p37 = scmp.eq.s32.totalorder %s15, 3
    %p38 = por %p36, %p37
    %p40 = scmp.ne.s32.totalorder %s23, %s39
    %p41 = scmp.eq.s32.totalorder %s15, 0
    %p42 = por %p40, %p41
    %s44 = sadd.s32 %s43, 1
    %p47 = scmp.eq.s32.totalorder %s9, 3
    %p48 = scmp.ne.s32.totalorder %s43, %s45
    %p49 = scmp.eq.s32.totalorder %s9, 0
    %p50 = por %p48, %p49
    %p51 = scmp.ne.s32.totalorder %s43, %s45
    %p52 = scmp.eq.s32.totalorder %s14, 3
    %p53 = por %p51, %p52
    %p54 = scmp.ne.s32.totalorder %s45, %s46
    %p55 = scmp.eq.s32.totalorder %s14, 0
    %p56 = por %p54, %p55
    %p57 = scmp.ne.s32.totalorder %s45, %s46
    %p58 = scmp.eq.s32.totalorder %s15, 3
    %p59 = por %p57, %p58
    %p61 = scmp.ne.s32.totalorder %s46, %s60
    %p62 = scmp.eq.s32.totalorder %s15, 0
    %p63 = por %p61, %p62
    %s65 = sadd.s32 %s64, 1
    %p68 = scmp.eq.s32.totalorder %s9, 3
    %p69 = scmp.ne.s32.totalorder %s64, %s66
    %p70 = scmp.eq.s32.totalorder %s9, 0
    %p71 = por %p69, %p70
    %p72 = scmp.ne.s32.totalorder %s64, %s66
    %p73 = scmp.eq.s32.totalorder %s14, 3
    %p74 = por %p72, %p73
    %p75 = scmp.ne.s32.totalorder %s66, %s67
    %p76 = scmp.eq.s32.totalorder %s14, 0
    %p77 = por %p75, %p76
    %p78 = scmp.ne.s32.totalorder %s66, %s67
    %p79 = scmp.eq.s32.totalorder %s15, 3
    %p80 = por %p78, %p79
    %p82 = scmp.ne.s32.totalorder %s67, %s81
    %p83 = scmp.eq.s32.totalorder %s15, 0
    %p84 = por %p82, %p83
    %s85 = ssub.s32 %s9, %s16
    %p86 = scmp.eq.s32.totalorder %s85, 0
    %s88 = sadd.s32 %s87, 1
    %s89 = scalar_select %p86, %s87, %s88
    %p92 = pneg %p86
    %p93 = scmp.eq.s32.totalorder %s9, 3
    %p94 = por %p92, %p93
    %p95 = scmp.ne.s32.totalorder %s87, %s90
    %p96 = scmp.eq.s32.totalorder %s9, 0
    %p97 = por %p95, %p96
    %p98 = scmp.ne.s32.totalorder %s87, %s90
    %p99 = scmp.eq.s32.totalorder %s14, 3
    %p100 = por %p98, %p99
    %p101 = scmp.ne.s32.totalorder %s90, %s91
    %p102 = scmp.eq.s32.totalorder %s14, 0
    %p103 = por %p101, %p102
    %p104 = scmp.ne.s32.totalorder %s90, %s91
    %p105 = scmp.eq.s32.totalorder %s15, 3
    %p106 = por %p104, %p105
    %p108 = scmp.ne.s32.totalorder %s91, %s107
    %p109 = scmp.eq.s32.totalorder %s15, 0
    %p110 = por %p108, %p109
    %p111 = scmp.le.s32.totalorder 1, %s9
    %p112 = scmp.lt.s32.totalorder %s9, 5
    %p113 = pnand %p111, %p112
    %p114 = pneg %p113
    // Predicated region
    $region9: #{basic_block_forward.6} parent=5 // pred_check
      _
    $region10: #{basic_block_forward.6} parent=5 // pred_check_branch
      %116 = sbr.rel (%p113) target = $region12
    $region11: #{basic_block_forward.6} parent=5 // pred_region
      %s117 = ssub.s32 %s9, 1
      // Predicated region
      $region13: #{basic_block_forward.6} parent=11 // pred_check
        %p118 = pneg %p56
      $region14: #{basic_block_forward.6} parent=11 // pred_check_branch
        %120 = sbr.rel (%p118) target = $region16
      $region15: #{basic_block_forward.6} parent=11 // pred_region
        _
      $region16: #{basic_block_forward.6} parent=11 // pred_fallthru
        _
      // Predicated region
      $region17: #{basic_block_forward.6} parent=11 // pred_check
        %p121 = pneg %p77
      $region18: #{basic_block_forward.6} parent=11 // pred_check_branch
        %123 = sbr.rel (%p121) target = $region20
      $region19: #{basic_block_forward.6} parent=11 // pred_region
        _
      $region20: #{basic_block_forward.6} parent=11 // pred_fallthru
        _
    $region12: #{basic_block_forward.6} parent=5 // pred_fallthru
      _
    %p124 = scmp.lt.s32.totalorder %s9, 4
    // Predicated region
    $region21: #{basic_block_forward.6} parent=5 // pred_check
      %p125 = pneg %p124
    $region22: #{basic_block_forward.6} parent=5 // pred_check_branch
      %127 = sbr.rel (%p125) target = $region24
    $region23: #{basic_block_forward.6} parent=5 // pred_region
      // Predicated region
      $region25: #{basic_block_forward.6} parent=23 // pred_check
        %p128 = pneg %p29
      $region26: #{basic_block_forward.6} parent=23 // pred_check_branch
        %130 = sbr.rel (%p128) target = $region28
      $region27: #{basic_block_forward.6} parent=23 // pred_region
        %s131 = smul.u32 4, %s9
        %p132 = scmp.lt.s32.totalorder %s131, 15
        %s133 = scalar_select %p132, %s131, 15
        %s134 = smul.addr %s133, 4
        %s135 = scalar_lea.vmem %s0, %s134
        %s136 = smul.u32 4, %s9
      $region28: #{basic_block_forward.6} parent=23 // pred_fallthru
        _
    $region24: #{basic_block_forward.6} parent=5 // pred_fallthru
      _
    %p137 = scmp.le.s32.totalorder 1, %s9
    %p138 = scmp.lt.s32.totalorder %s9, 5
    %p139 = pnand %p137, %p138
    %p140 = pneg %p139
    // Predicated region
    $region29: #{basic_block_forward.6} parent=5 // pred_check
      _
    $region30: #{basic_block_forward.6} parent=5 // pred_check_branch
      %142 = sbr.rel (%p139) target = $region32
    $region31: #{basic_block_forward.6} parent=5 // pred_region
      %s143 = ssub.s32 %s9, 1
      %s144 = smul.u32 4, %s14
      %p145 = scmp.lt.s32.totalorder %s144, 15
      %s146 = scalar_select %p145, %s144, 15
      %s147 = smul.addr %s146, 4
      %s148 = scalar_lea.vmem %s0, %s147
      %p149 = pneg %p35
      %p150 = pneg %p32
      %p151 = pneg %p56
      %p152 = pneg %p53
      %p153 = pneg %p77
      %p154 = pneg %p74
      %p155 = pneg %p103
      %p156 = pneg %p100
      %s157 = smul.u32 4, %s14
      %p158 = scmp.lt.s32.totalorder %s157, 15
      %s159 = scalar_select %p158, %s157, 15
      %s160 = smul.addr %s159, 4
      %s161 = scalar_lea.vmem %s3, %s160
      %s162 = smul.u32 4, %s14
      %p163 = scmp.lt.s32.totalorder %s162, 15
      %s164 = scalar_select %p163, %s162, 15
      %s165 = smul.addr %s164, 4
      %s166 = scalar_lea.vmem %s0, %s165
      %s167 = smul.u32 4, %s14
      %s168 = smul.u32 4, %s14
      %p169 = scmp.lt.s32.totalorder %s168, 15
      %s170 = scalar_select %p169, %s168, 15
      %s171 = smul.addr %s170, 4
      %s172 = scalar_lea.vmem %s3, %s171
      %s173 = smul.u32 4, %s14
      %v174 = vld [vmem:[%s166] sm:$0xf]
      %v175 = vld [vmem:[%s166 + $0x4] sm:$0xf]
      %v176 = vld [vmem:[%s166 + $0x8] sm:$0xf]
      %v177 = vld [vmem:[%s166 + $0xc] sm:$0xf]
      %v178 = vunpack.c.l.bf16 %v174
      %v179 = vunpack.c.l.bf16 %v175
      %v180 = vunpack.c.l.bf16 %v176
      %v181 = vunpack.c.l.bf16 %v177
      %v182 = vld [vmem:[%s1] sm:$0x1]
      %v184 = vlaneseq
      %v185 = vshrl.u32 %v184, 7
      %v186 = vsub.s32 0, %v185
      %v187 = vrot.slane %v182, %v186
      %v189 = vmul.f32 %v178, %v187
      %v190 = vmul.f32 %v179, %v187
      %v191 = vmul.f32 %v180, %v187
      %v192 = vmul.f32 %v181, %v187
      %v193 = vld [vmem:[%s2] sm:$0x1]
      %v195 = vlaneseq
      %v196 = vshrl.u32 %v195, 7
      %v197 = vsub.s32 0, %v196
      %v198 = vrot.slane %v193, %v197
      %v200 = vadd.f32 %v189, %v198
      %v201 = vadd.f32 %v190, %v198
      %v202 = vadd.f32 %v191, %v198
      %v203 = vadd.f32 %v192, %v198
      %v204 = vmax.f32 %v200, 0.0
      %v205 = vmax.f32 %v201, 0.0
      %v206 = vmax.f32 %v202, 0.0
      %v207 = vmax.f32 %v203, 0.0
      %v208 = vpack.c.bf16 %v205, %v204
      %v209 = vpack.c.bf16 %v207, %v206
      %v212 = vunpack.c.l.b16 %v208
      %v213 = vunpack.c.h.b16 %v208
      %v214 = vunpack.c.l.b16 %v209
      %v215 = vunpack.c.h.b16 %v209
      %v216 = vpack.c.b16 %v212, %v212
      %v217 = vpack.c.b16 %v213, %v213
      %v218 = vpack.c.b16 %v214, %v214
      %v219 = vpack.c.b16 %v215, %v215
      %224 = vst [vmem:[%s172] sm:$0xf] %v216
      %225 = vst [vmem:[%s172 + $0x4] sm:$0xf] %v217
      %226 = vst [vmem:[%s172 + $0x8] sm:$0xf] %v218
      %227 = vst [vmem:[%s172 + $0xc] sm:$0xf] %v219
      %s228 = smul.u32 4, %s14
      %p229 = scmp.lt.s32.totalorder %s228, 15
      %s230 = scalar_select %p229, %s228, 15
      %s231 = smul.addr %s230, 4
      %s232 = scalar_lea.vmem %s3, %s231
      // Predicated region
      $region33: #{basic_block_forward.6} parent=31 // pred_check
        %p233 = pneg %p100
      $region34: #{basic_block_forward.6} parent=31 // pred_check_branch
        %235 = sbr.rel (%p233) target = $region36
      $region35: #{basic_block_forward.6} parent=31 // pred_region
        %s236 = smul.u32 4, %s14
      $region36: #{basic_block_forward.6} parent=31 // pred_fallthru
        _
    $region32: #{basic_block_forward.6} parent=5 // pred_fallthru
      _
    %p237 = scmp.le.s32.totalorder 2, %s9
    // Predicated region
    $region37: #{basic_block_forward.6} parent=5 // pred_check
      %p238 = pneg %p237
    $region38: #{basic_block_forward.6} parent=5 // pred_check_branch
      %240 = sbr.rel (%p238) target = $region40
    $region39: #{basic_block_forward.6} parent=5 // pred_region
      %s241 = ssub.s32 %s9, 2
      // Predicated region
      $region41: #{basic_block_forward.6} parent=39 // pred_check
        %p242 = pneg %p106
      $region42: #{basic_block_forward.6} parent=39 // pred_check_branch
        %244 = sbr.rel (%p242) target = $region44
      $region43: #{basic_block_forward.6} parent=39 // pred_region
        %s245 = smul.u32 4, %s15
        %p246 = scmp.lt.s32.totalorder %s245, 15
        %s247 = scalar_select %p246, %s245, 15
        %s248 = smul.addr %s247, 4
        %s249 = scalar_lea.vmem %s3, %s248
      $region44: #{basic_block_forward.6} parent=39 // pred_fallthru
        _
    $region40: #{basic_block_forward.6} parent=5 // pred_fallthru
      _
  $region6: #{basic_block_forward.6} parent=0 // loop_footer
    %s13 = sadd.s32 1, %s9
  $region7: #{basic_block_forward.6} parent=0 // loop_footer_branch
    %8 = sbr.rel target = $region3
  $region8: #{basic_block_forward.6} parent=0 // loop_exit
    _

// kernel: basic_block_forward.5
$region0: #{basic_block_forward.5}
  #allocation0 [shape = 'u32[]', space=smem, size = 0x4, offset = 0x4, fixed_abs, tag = 'smem constant byte address 0x4 - core index']
  #allocation1 [shape = 'u32[144,128]{1,0:T(1,128)}', space=vmem, size = 0x12000, scoped, tag = 'internal scratch']
  #allocation2 [shape = 'f32[32,128]{1,0:T(8,128)}', space=vmem, size = 0x4000, scoped, tag = 'scratch operand']
  %s0 = inlined_call_operand.vmem [shape: bf16[2,2,2,9,9,4], index: 0, kind: input, shape index: {}]
  %s1 = inlined_call_operand.vmem [shape: bf16[3,3,4,128], index: 1, kind: input, shape index: {}]
  %s2 = inlined_call_operand.vmem [shape: bf16[2,8,8,128], index: 2, kind: output, shape index: {0}]
  %s3 = inlined_call_operand.vmem [shape: f32[2,2,1,128], index: 3, kind: output, shape index: {1}]
  %s4 = inlined_call_operand.vmem [shape: f32[2,2,1,128], index: 4, kind: output, shape index: {2}]
  %5 = xla_tuple %s2, %s3, %s4
  %s6 = sld [smem:[#allocation0]]
  $region57: #{basic_block_forward.5} parent=0
    _
  %s8 = ssub.s32 1, %s6
  %s9 = scalar_select 0, %s8, %s6
  loop: start=0, step=1, limit=6
  $region2: #{basic_block_forward.5} parent=0 // loop_pre_header
    _
  $region3: #{basic_block_forward.5} parent=0 // loop_header
    %s11 = sphi 0, %s15
    %p12 = scmp.ge.s32.totalorder %s11, 6
    %s18 = sphi 0, %s30
    %s19 = sphi 0, %s26
    %s20 = sphi 0, %s18
    %s21 = sphi 0, %s19
    %s22 = sphi 0, %s20
    %s23 = sphi 0, %s21
    %s33 = sphi 0, %s35
    %s36 = sphi 0, %s33
    %s37 = sphi 0, %s36
    %s53 = sphi 0, %s37
    %s57 = sphi 0, %s57
    %s59 = sphi 0, %s57
    %s60 = sphi 0, %s59
    %s74 = sphi 0, %s60
    %s82 = sphi 0, %s84
    %s85 = sphi 0, %s82
    %s86 = sphi 0, %s85
    %s102 = sphi 0, %s86
    %s110 = sphi 0, %s112
    %s113 = sphi 0, %s110
    %s114 = sphi 0, %s113
    %s130 = sphi 0, %s114
    %s138 = sphi 0, %s140
    %s141 = sphi 0, %s138
    %s142 = sphi 0, %s141
    %s158 = sphi 0, %s142
  $region4: #{basic_block_forward.5} parent=0 // loop_header_branch
    %14 = sbr.rel (%p12) target = $region8
  $region5: #{basic_block_forward.5} parent=0 // loop_body
    %s16 = ssub.s32 %s11, 1
    %s17 = ssub.s32 %s11, 2
    %s24 = sadd.s32 1, %s19
    %p25 = scmp.ge.s32.totalorder %s24, 2
    %s26 = scalar_select %p25, 0, %s24
    %s27 = sadd.s32 1, %s18
    %s28 = scalar_select %p25, %s27, %s18
    %p29 = scmp.ge.s32.totalorder %s28, 2
    %s30 = scalar_select %p29, 0, %s28
    %s31 = ssub.s32 %s18, %s30
    %p32 = scmp.eq.s32.totalorder %s31, 0
    %s34 = sadd.s32 %s33, 1
    %s35 = scalar_select %p32, %s33, %s34
    %p38 = pneg %p32
    %p39 = scmp.eq.s32.totalorder %s11, 3
    %p40 = por %p38, %p39
    %p41 = scmp.ne.s32.totalorder %s33, %s36
    %p42 = scmp.eq.s32.totalorder %s11, 0
    %p43 = por %p41, %p42
    %p44 = scmp.ne.s32.totalorder %s33, %s36
    %p45 = scmp.eq.s32.totalorder %s16, 3
    %p46 = por %p44, %p45
    %p47 = scmp.ne.s32.totalorder %s36, %s37
    %p48 = scmp.eq.s32.totalorder %s16, 0
    %p49 = por %p47, %p48
    %p50 = scmp.ne.s32.totalorder %s36, %s37
    %p51 = scmp.eq.s32.totalorder %s17, 3
    %p52 = por %p50, %p51
    %p54 = scmp.ne.s32.totalorder %s37, %s53
    %p55 = scmp.eq.s32.totalorder %s17, 0
    %p56 = por %p54, %p55
    %s58 = sadd.s32 %s57, 1
    %p61 = scmp.eq.s32.totalorder %s11, 3
    %p62 = scmp.ne.s32.totalorder %s57, %s59
    %p63 = scmp.eq.s32.totalorder %s11, 0
    %p64 = por %p62, %p63
    %p65 = scmp.ne.s32.totalorder %s57, %s59
    %p66 = scmp.eq.s32.totalorder %s16, 3
    %p67 = por %p65, %p66
    %p68 = scmp.ne.s32.totalorder %s59, %s60
    %p69 = scmp.eq.s32.totalorder %s16, 0
    %p70 = por %p68, %p69
    %p71 = scmp.ne.s32.totalorder %s59, %s60
    %p72 = scmp.eq.s32.totalorder %s17, 3
    %p73 = por %p71, %p72
    %p75 = scmp.ne.s32.totalorder %s60, %s74
    %p76 = scmp.eq.s32.totalorder %s17, 0
    %p77 = por %p75, %p76
    %s78 = ssub.s32 %s18, %s30
    %s79 = ssub.s32 %s19, %s26
    %s80 = sor.u32 %s78, %s79
    %p81 = scmp.eq.s32.totalorder %s80, 0
    %s83 = sadd.s32 %s82, 1
    %s84 = scalar_select %p81, %s82, %s83
    %p87 = pneg %p81
    %p88 = scmp.eq.s32.totalorder %s11, 3
    %p89 = por %p87, %p88
    %p90 = scmp.ne.s32.totalorder %s82, %s85
    %p91 = scmp.eq.s32.totalorder %s11, 0
    %p92 = por %p90, %p91
    %p93 = scmp.ne.s32.totalorder %s82, %s85
    %p94 = scmp.eq.s32.totalorder %s16, 3
    %p95 = por %p93, %p94
    %p96 = scmp.ne.s32.totalorder %s85, %s86
    %p97 = scmp.eq.s32.totalorder %s16, 0
    %p98 = por %p96, %p97
    %p99 = scmp.ne.s32.totalorder %s85, %s86
    %p100 = scmp.eq.s32.totalorder %s17, 3
    %p101 = por %p99, %p100
    %p103 = scmp.ne.s32.totalorder %s86, %s102
    %p104 = scmp.eq.s32.totalorder %s17, 0
    %p105 = por %p103, %p104
    %s106 = ssub.s32 %s18, %s30
    %s107 = ssub.s32 %s19, %s26
    %s108 = sor.u32 %s106, %s107
    %p109 = scmp.eq.s32.totalorder %s108, 0
    %s111 = sadd.s32 %s110, 1
    %s112 = scalar_select %p109, %s110, %s111
    %p115 = pneg %p109
    %p116 = scmp.eq.s32.totalorder %s11, 3
    %p117 = por %p115, %p116
    %p118 = scmp.ne.s32.totalorder %s110, %s113
    %p119 = scmp.eq.s32.totalorder %s11, 0
    %p120 = por %p118, %p119
    %p121 = scmp.ne.s32.totalorder %s110, %s113
    %p122 = scmp.eq.s32.totalorder %s16, 3
    %p123 = por %p121, %p122
    %p124 = scmp.ne.s32.totalorder %s113, %s114
    %p125 = scmp.eq.s32.totalorder %s16, 0
    %p126 = por %p124, %p125
    %p127 = scmp.ne.s32.totalorder %s113, %s114
    %p128 = scmp.eq.s32.totalorder %s17, 3
    %p129 = por %p127, %p128
    %p131 = scmp.ne.s32.totalorder %s114, %s130
    %p132 = scmp.eq.s32.totalorder %s17, 0
    %p133 = por %p131, %p132
    %s134 = ssub.s32 %s18, %s30
    %s135 = ssub.s32 %s19, %s26
    %s136 = sor.u32 %s134, %s135
    %p137 = scmp.eq.s32.totalorder %s136, 0
    %s139 = sadd.s32 %s138, 1
    %s140 = scalar_select %p137, %s138, %s139
    %p143 = pneg %p137
    %p144 = scmp.eq.s32.totalorder %s11, 3
    %p145 = por %p143, %p144
    %p146 = scmp.ne.s32.totalorder %s138, %s141
    %p147 = scmp.eq.s32.totalorder %s11, 0
    %p148 = por %p146, %p147
    %p149 = scmp.ne.s32.totalorder %s138, %s141
    %p150 = scmp.eq.s32.totalorder %s16, 3
    %p151 = por %p149, %p150
    %p152 = scmp.ne.s32.totalorder %s141, %s142
    %p153 = scmp.eq.s32.totalorder %s16, 0
    %p154 = por %p152, %p153
    %p155 = scmp.ne.s32.totalorder %s141, %s142
    %p156 = scmp.eq.s32.totalorder %s17, 3
    %p157 = por %p155, %p156
    %p159 = scmp.ne.s32.totalorder %s142, %s158
    %p160 = scmp.eq.s32.totalorder %s17, 0
    %p161 = por %p159, %p160
    %p162 = scmp.le.s32.totalorder 1, %s11
    %p163 = scmp.lt.s32.totalorder %s11, 5
    %p164 = pnand %p162, %p163
    %p165 = pneg %p164
    // Predicated region
    $region9: #{basic_block_forward.5} parent=5 // pred_check
      _
    $region10: #{basic_block_forward.5} parent=5 // pred_check_branch
      %167 = sbr.rel (%p164) target = $region12
    $region11: #{basic_block_forward.5} parent=5 // pred_region
      %s168 = ssub.s32 %s11, 1
      // Predicated region
      $region13: #{basic_block_forward.5} parent=11 // pred_check
        %p169 = pneg %p70
      $region14: #{basic_block_forward.5} parent=11 // pred_check_branch
        %171 = sbr.rel (%p169) target = $region16
      $region15: #{basic_block_forward.5} parent=11 // pred_region
        _
      $region16: #{basic_block_forward.5} parent=11 // pred_fallthru
        _
    $region12: #{basic_block_forward.5} parent=5 // pred_fallthru
      _
    %p172 = scmp.lt.s32.totalorder %s11, 4
    // Predicated region
    $region17: #{basic_block_forward.5} parent=5 // pred_check
      %p173 = pneg %p172
    $region18: #{basic_block_forward.5} parent=5 // pred_check_branch
      %175 = sbr.rel (%p173) target = $region20
    $region19: #{basic_block_forward.5} parent=5 // pred_region
      // Predicated region
      $region21: #{basic_block_forward.5} parent=19 // pred_check
        %p176 = pneg %p43
      $region22: #{basic_block_forward.5} parent=19 // pred_check_branch
        %178 = sbr.rel (%p176) target = $region24
      $region23: #{basic_block_forward.5} parent=19 // pred_region
        %p179 = scmp.lt.s32.totalorder %s18, 1
        %s180 = scalar_select %p179, %s18, 1
        %s181 = smul.addr %s180, 72
        %s182 = smul.addr %s181, 4
        %s183 = scalar_lea.vmem %s0, %s182
      $region24: #{basic_block_forward.5} parent=19 // pred_fallthru
        _
    $region20: #{basic_block_forward.5} parent=5 // pred_fallthru
      _
    %p184 = scmp.le.s32.totalorder 1, %s11
    %p185 = scmp.lt.s32.totalorder %s11, 5
    %p186 = pnand %p184, %p185
    %p187 = pneg %p186
    // Predicated region
    $region25: #{basic_block_forward.5} parent=5 // pred_check
      _
    $region26: #{basic_block_forward.5} parent=5 // pred_check_branch
      %189 = sbr.rel (%p186) target = $region28
    $region27: #{basic_block_forward.5} parent=5 // pred_region
      %s190 = ssub.s32 %s11, 1
      %p191 = scmp.lt.s32.totalorder %s20, 1
      %s192 = scalar_select %p191, %s20, 1
      %s193 = smul.addr %s192, 72
      %s194 = smul.addr %s193, 4
      %s195 = scalar_lea.vmem %s0, %s194
      %p196 = pneg %p49
      %p197 = pneg %p46
      %p198 = pneg %p70
      %p199 = pneg %p67
      %p200 = pneg %p98
      %p201 = pneg %p95
      %s202 = smul.u32 4, %s21
      %p203 = scmp.lt.s32.totalorder %s20, 1
      %s204 = scalar_select %p203, %s20, 1
      %p205 = scmp.lt.s32.totalorder %s202, 7
      %s206 = scalar_select %p205, %s202, 7
      %s207 = smul.addr %s204, 8
      %s208 = sadd.s32 %s206, %s207
      %s209 = smul.addr %s208, 4
      %s210 = scalar_lea.vmem %s2, %s209
      %p211 = pneg %p126
      %p212 = pneg %p123
      %p213 = scmp.lt.s32.totalorder %s20, 1
      %s214 = scalar_select %p213, %s20, 1
      %p215 = scmp.lt.s32.totalorder %s21, 1
      %s216 = scalar_select %p215, %s21, 1
      %s217 = smul.addr %s214, 2
      %s218 = sadd.s32 %s216, %s217
      %s219 = scalar_lea.vmem %s3, %s218
      %p220 = pneg %p154
      %p221 = pneg %p151
      %p222 = scmp.lt.s32.totalorder %s20, 1
      %s223 = scalar_select %p222, %s20, 1
      %p224 = scmp.lt.s32.totalorder %s21, 1
      %s225 = scalar_select %p224, %s21, 1
      %s226 = smul.addr %s223, 2
      %s227 = sadd.s32 %s225, %s226
      %s228 = scalar_lea.vmem %s4, %s227
      %p229 = scmp.lt.s32.totalorder %s20, 1
      %s230 = scalar_select %p229, %s20, 1
      %s231 = smul.addr %s230, 72
      %s232 = smul.addr %s231, 4
      %s233 = scalar_lea.vmem %s0, %s232
      %s234 = smul.u32 4, %s21
      %p235 = scmp.lt.s32.totalorder %s20, 1
      %s236 = scalar_select %p235, %s20, 1
      %p237 = scmp.lt.s32.totalorder %s234, 7
      %s238 = scalar_select %p237, %s234, 7
      %s239 = smul.addr %s236, 8
      %s240 = sadd.s32 %s238, %s239
      %s241 = smul.addr %s240, 4
      %s242 = scalar_lea.vmem %s2, %s241
      %s243 = smul.u32 4, %s21
      %p244 = scmp.lt.s32.totalorder %s20, 1
      %s245 = scalar_select %p244, %s20, 1
      %p246 = scmp.lt.s32.totalorder %s21, 1
      %s247 = scalar_select %p246, %s21, 1
      %s248 = smul.addr %s245, 2
      %s249 = sadd.s32 %s247, %s248
      %s250 = scalar_lea.vmem %s3, %s249
      %p251 = scmp.lt.s32.totalorder %s20, 1
      %s252 = scalar_select %p251, %s20, 1
      %p253 = scmp.lt.s32.totalorder %s21, 1
      %s254 = scalar_select %p253, %s21, 1
      %s255 = smul.addr %s252, 2
      %s256 = sadd.s32 %s254, %s255
      %s257 = scalar_lea.vmem %s4, %s256
      %s259 = smul.u32 %s21, 4
      %260 = vst [vmem:[#allocation2] sm:$0xff] 0.0
      %261 = vst [vmem:[#allocation2 + $0x8] sm:$0xff] 0.0
      %262 = vst [vmem:[#allocation2 + $0x10] sm:$0xff] 0.0
      %263 = vst [vmem:[#allocation2 + $0x18] sm:$0xff] 0.0
      %s264 = smul.u32 %s259, 2
      %s265 = smul.addr %s264, 4
      %s266 = scalar_lea.vmem %s233, %s265
      %v267 = vld [vmem:[%s266] sm:$0xf]
      %v268 = vld [vmem:[%s266 + $0x8] sm:$0xf]
      %v269 = vld [vmem:[%s266 + $0x10] sm:$0xf]
      %v270 = vld [vmem:[%s266 + $0x18] sm:$0xf]
      %v271 = vld [vmem:[#allocation2] sm:$0xff]
      %v272 = vld [vmem:[#allocation2 + $0x8] sm:$0xff]
      %v273 = vld [vmem:[#allocation2 + $0x10] sm:$0xff]
      %v274 = vld [vmem:[#allocation2 + $0x18] sm:$0xff]
      %v275 = vld [vmem:[%s1] sm:$0x3]
      %v280 = vunpack.c.l.b16 %v267
      %v281 = vunpack.c.l.b16 %v268
      %v282 = vunpack.c.l.b16 %v269
      %v283 = vunpack.c.l.b16 %v270
      %v284 = vpack.c.b16 %v281, %v280
      %v285 = vpack.c.b16 %v283, %v282
      %vm286 = vcmask 31744
      %v288 = vsel %vm286, %v284, 0
      %v291 = vsel %vm286, %v285, 0
      %vm293 = vcmask 1041408
      %v295 = vsel %vm293, %v275, 0
      %297 = vmatprep.subr.bf16.mxu0 0
      %298 = vmatpush1.bf16.msra.mxu0 %v295
      %299 = vmatprep.subr.bf16.mxu0 0
      %300 = vmatpush1.bf16.msra.mxu0 0
      %301 = vmatprep.subr.bf16.mxu0 0
      %302 = vmatpush1.bf16.msra.mxu0 0
      %303 = vmatprep.subr.bf16.mxu0 0
      %304 = vmatpush1.bf16.msra.mxu0 0
      %305 = vmatprep.subr.bf16.mxu0 0
      %306 = vmatpush1.bf16.msra.mxu0 0
      %307 = vmatprep.subr.bf16.mxu0 0
      %308 = vmatpush1.bf16.msra.mxu0 0
      %309 = vmatprep.subr.bf16.mxu0 0
      %310 = vmatpush1.bf16.msra.mxu0 0
      %311 = vmatprep.subr.bf16.mxu0 0
      %312 = vmatpush1.bf16.msra.mxu0 0
      %313 = vmatprep.subr.bf16.mxu0 0
      %314 = vmatpush1.bf16.msra.mxu0 0
      %315 = vmatprep.subr.bf16.mxu0 0
      %316 = vmatpush1.bf16.msra.mxu0 0
      %317 = vmatprep.subr.bf16.mxu0 0
      %318 = vmatpush1.bf16.msra.mxu0 0
      %319 = vmatprep.subr.bf16.mxu0 0
      %320 = vmatpush1.bf16.msra.mxu0 0
      %321 = vmatprep.subr.bf16.mxu0 0
      %322 = vmatpush1.bf16.msra.mxu0 0
      %323 = vmatprep.subr.bf16.mxu0 0
      %324 = vmatpush1.bf16.msra.mxu0 0
      %325 = vmatprep.subr.bf16.mxu0 0
      %326 = vmatpush1.bf16.msra.mxu0 0
      %327 = vmatprep.subr.bf16.mxu0 0
      %328 = vmatpush1.bf16.msra.mxu0 0
      %329 = vmatprep.mubr.bf16.mxu0 0
      %330 = vmatmul.mubr.bf16.gmra.mrb[0].mxu0 %v288
      %v331 = vpop.f32.mrb[0].mxu0
      %v332 = vadd.f32 0.0, %v331
      %v333 = vpop.f32.mrb[0].mxu0
      %v334 = vpop.f32.mrb[0].mxu0
      %v335 = vadd.f32 0.0, %v334
      %v336 = vpop.f32.mrb[0].mxu0
      %337 = vmatprep.mubr.bf16.mxu0 0
      %338 = vmatmul.mubr.bf16.gmra.mrb[0].mxu0 %v291
      %v339 = vpop.f32.mrb[0].mxu0
      %v340 = vadd.f32 0.0, %v339
      %v341 = vpop.f32.mrb[0].mxu0
      %v342 = vpop.f32.mrb[0].mxu0
      %v343 = vadd.f32 0.0, %v342
      %v344 = vpop.f32.mrb[0].mxu0
      %345 = vdwg.mxu0
      %v346 = vadd.f32 %v271, %v332
      %v347 = vadd.f32 %v272, %v335
      %v348 = vadd.f32 %v273, %v340
      %v349 = vadd.f32 %v274, %v343
      %350 = vst [vmem:[#allocation2] sm:$0xff] %v346
      %351 = vst [vmem:[#allocation2 + $0x8] sm:$0xff] %v347
      %352 = vst [vmem:[#allocation2 + $0x10] sm:$0xff] %v348
      %353 = vst [vmem:[#allocation2 + $0x18] sm:$0xff] %v349
      %s354 = sadd.s32 %s264, 18
      %s355 = smul.addr %s354, 4
      %s356 = scalar_lea.vmem %s233, %s355
      %v357 = vld [vmem:[%s356] sm:$0xf]
      %v358 = vld [vmem:[%s356 + $0x8] sm:$0xf]
      %v359 = vld [vmem:[%s356 + $0x10] sm:$0xf]
      %v360 = vld [vmem:[%s356 + $0x18] sm:$0xf]
      %v361 = vld [vmem:[#allocation2] sm:$0xff]
      %v362 = vld [vmem:[#allocation2 + $0x8] sm:$0xff]
      %v363 = vld [vmem:[#allocation2 + $0x10] sm:$0xff]
      %v364 = vld [vmem:[#allocation2 + $0x18] sm:$0xff]
      %s365 = scalar_lea.vmem %s1, 2
      %v366 = vld [vmem:[%s365] sm:$0x3]
      %v371 = vunpack.c.l.b16 %v357
      %v372 = vunpack.c.l.b16 %v358
      %v373 = vunpack.c.l.b16 %v359
      %v374 = vunpack.c.l.b16 %v360
      %v375 = vpack.c.b16 %v372, %v371
      %v376 = vpack.c.b16 %v374, %v373
      %v378 = vsel %vm286, %v375, 0
      %v381 = vsel %vm286, %v376, 0
      %v384 = vsel %vm293, %v366, 0
      %386 = vmatprep.subr.bf16.mxu0 0
      %387 = vmatpush1.bf16.msra.mxu0 %v384
      %388 = vmatprep.subr.bf16.mxu0 0
      %389 = vmatpush1.bf16.msra.mxu0 0
      %390 = vmatprep.subr.bf16.mxu0 0
      %391 = vmatpush1.bf16.msra.mxu0 0
      %392 = vmatprep.subr.bf16.mxu0 0
      %393 = vmatpush1.bf16.msra.mxu0 0
      %394 = vmatprep.subr.bf16.mxu0 0
      %395 = vmatpush1.bf16.msra.mxu0 0
      %396 = vmatprep.subr.bf16.mxu0 0
      %397 = vmatpush1.bf16.msra.mxu0 0
      %398 = vmatprep.subr.bf16.mxu0 0
      %399 = vmatpush1.bf16.msra.mxu0 0
      %400 = vmatprep.subr.bf16.mxu0 0
      %401 = vmatpush1.bf16.msra.mxu0 0
      %402 = vmatprep.subr.bf16.mxu0 0
      %403 = vmatpush1.bf16.msra.mxu0 0
      %404 = vmatprep.subr.bf16.mxu0 0
      %405 = vmatpush1.bf16.msra.mxu0 0
      %406 = vmatprep.subr.bf16.mxu0 0
      %407 = vmatpush1.bf16.msra.mxu0 0
      %408 = vmatprep.subr.bf16.mxu0 0
      %409 = vmatpush1.bf16.msra.mxu0 0
      %410 = vmatprep.subr.bf16.mxu0 0
      %411 = vmatpush1.bf16.msra.mxu0 0
      %412 = vmatprep.subr.bf16.mxu0 0
      %413 = vmatpush1.bf16.msra.mxu0 0
      %414 = vmatprep.subr.bf16.mxu0 0
      %415 = vmatpush1.bf16.msra.mxu0 0
      %416 = vmatprep.subr.bf16.mxu0 0
      %417 = vmatpush1.bf16.msra.mxu0 0
      %418 = vmatprep.mubr.bf16.mxu0 0
      %419 = vmatmul.mubr.bf16.gmra.mrb[0].mxu0 %v378
      %v420 = vpop.f32.mrb[0].mxu0
      %v421 = vadd.f32 0.0, %v420
      %v422 = vpop.f32.mrb[0].mxu0
      %v423 = vpop.f32.mrb[0].mxu0
      %v424 = vadd.f32 0.0, %v423
      %v425 = vpop.f32.mrb[0].mxu0
      %426 = vmatprep.mubr.bf16.mxu0 0
      %427 = vmatmul.mubr.bf16.gmra.mrb[0].mxu0 %v381
      %v428 = vpop.f32.mrb[0].mxu0
      %v429 = vadd.f32 0.0, %v428
      %v430 = vpop.f32.mrb[0].mxu0
      %v431 = vpop.f32.mrb[0].mxu0
      %v432 = vadd.f32 0.0, %v431
      %v433 = vpop.f32.mrb[0].mxu0
      %434 = vdwg.mxu0
      %v435 = vadd.f32 %v361, %v421
      %v436 = vadd.f32 %v362, %v424
      %v437 = vadd.f32 %v363, %v429
      %v438 = vadd.f32 %v364, %v432
      %439 = vst [vmem:[#allocation2] sm:$0xff] %v435
      %440 = vst [vmem:[#allocation2 + $0x8] sm:$0xff] %v436
      %441 = vst [vmem:[#allocation2 + $0x10] sm:$0xff] %v437
      %442 = vst [vmem:[#allocation2 + $0x18] sm:$0xff] %v438
      %v443 = vld [vmem:[%s266] sm:$0xf]
      %v444 = vld [vmem:[%s266 + $0x4] sm:$0x1]
      %v445 = vld [vmem:[%s266 + $0x8] sm:$0xf]
      %v446 = vld [vmem:[%s266 + $0xc] sm:$0x1]
      %v447 = vld [vmem:[%s266 + $0x10] sm:$0xf]
      %v448 = vld [vmem:[%s266 + $0x14] sm:$0x1]
      %v449 = vld [vmem:[%s266 + $0x18] sm:$0xf]
      %v450 = vld [vmem:[%s266 + $0x1c] sm:$0x1]
      %vm451 = vsmask.f32 3328
      %vm452 = vsmask.f32 7440
      %vm453 = vmor %vm451, %vm452
      %v455 = vshrl.u32 %v443, 16
      %v457 = vrot.slane %v455, 4
      %v458 = vshll.u32 %v443, 16
      %v460 = vrot.slane %v458, 5
      %v461 = vor.u32 %v457, %v460
      %v462 = vrot.slane %v461, 4
      %v464 = vshll.u32 %v444, 16
      %v466 = vrot.slane %v464, 5
      %v467 = vsel %vm453, %v462, %v466
      %v469 = vshrl.u32 %v445, 16
      %v471 = vrot.slane %v469, 4
      %v472 = vshll.u32 %v445, 16
      %v474 = vrot.slane %v472, 5
      %v475 = vor.u32 %v471, %v474
      %v476 = vrot.slane %v475, 4
      %v478 = vshll.u32 %v446, 16
      %v480 = vrot.slane %v478, 5
      %v481 = vsel %vm453, %v476, %v480
      %v483 = vshrl.u32 %v447, 16
      %v485 = vrot.slane %v483, 4
      %v486 = vshll.u32 %v447, 16
      %v488 = vrot.slane %v486, 5
      %v489 = vor.u32 %v485, %v488
      %v490 = vrot.slane %v489, 4
      %v492 = vshll.u32 %v448, 16
      %v494 = vrot.slane %v492, 5
      %v495 = vsel %vm453, %v490, %v494
      %v497 = vshrl.u32 %v449, 16
      %v499 = vrot.slane %v497, 4
      %v500 = vshll.u32 %v449, 16
      %v502 = vrot.slane %v500, 5
      %v503 = vor.u32 %v499, %v502
      %v504 = vrot.slane %v503, 4
      %v506 = vshll.u32 %v450, 16
      %v508 = vrot.slane %v506, 5
      %v509 = vsel %vm453, %v504, %v508
      %v510 = vld [vmem:[#allocation2] sm:$0xff]
      %v511 = vld [vmem:[#allocation2 + $0x8] sm:$0xff]
      %v512 = vld [vmem:[#allocation2 + $0x10] sm:$0xff]
      %v513 = vld [vmem:[#allocation2 + $0x18] sm:$0xff]
      %s514 = scalar_lea.vmem %s1, 4
      %v515 = vld [vmem:[%s514] sm:$0x3]
      %v516 = vunpack.c.l.b16 %v467
      %v517 = vunpack.c.l.b16 %v481
      %v518 = vunpack.c.l.b16 %v495
      %v519 = vunpack.c.l.b16 %v509
      %v520 = vpack.c.b16 %v517, %v516
      %v521 = vpack.c.b16 %v519, %v518
      %v523 = vsel %vm286, %v520, 0
      %v526 = vsel %vm286, %v521, 0
      %v529 = vsel %vm293, %v515, 0
      %531 = vmatprep.subr.bf16.mxu0 0
      %532 = vmatpush1.bf16.msra.mxu0 %v529
      %533 = vmatprep.subr.bf16.mxu0 0
      %534 = vmatpush1.bf16.msra.mxu0 0
      %535 = vmatprep.subr.bf16.mxu0 0
      %536 = vmatpush1.bf16.msra.mxu0 0
      %537 = vmatprep.subr.bf16.mxu0 0
      %538 = vmatpush1.bf16.msra.mxu0 0
      %539 = vmatprep.subr.bf16.mxu0 0
      %540 = vmatpush1.bf16.msra.mxu0 0
      %541 = vmatprep.subr.bf16.mxu0 0
      %542 = vmatpush1.bf16.msra.mxu0 0
      %543 = vmatprep.subr.bf16.mxu0 0
      %544 = vmatpush1.bf16.msra.mxu0 0
      %545 = vmatprep.subr.bf16.mxu0 0
      %546 = vmatpush1.bf16.msra.mxu0 0
      %547 = vmatprep.subr.bf16.mxu0 0
      %548 = vmatpush1.bf16.msra.mxu0 0
      %549 = vmatprep.subr.bf16.mxu0 0
      %550 = vmatpush1.bf16.msra.mxu0 0
      %551 = vmatprep.subr.bf16.mxu0 0
      %552 = vmatpush1.bf16.msra.mxu0 0
      %553 = vmatprep.subr.bf16.mxu0 0
      %554 = vmatpush1.bf16.msra.mxu0 0
      %555 = vmatprep.subr.bf16.mxu0 0
      %556 = vmatpush1.bf16.msra.mxu0 0
      %557 = vmatprep.subr.bf16.mxu0 0
      %558 = vmatpush1.bf16.msra.mxu0 0
      %559 = vmatprep.subr.bf16.mxu0 0
      %560 = vmatpush1.bf16.msra.mxu0 0
      %561 = vmatprep.subr.bf16.mxu0 0
      %562 = vmatpush1.bf16.msra.mxu0 0
      %563 = vmatprep.mubr.bf16.mxu0 0
      %564 = vmatmul.mubr.bf16.gmra.mrb[0].mxu0 %v523
      %v565 = vpop.f32.mrb[0].mxu0
      %v566 = vadd.f32 0.0, %v565
      %v567 = vpop.f32.mrb[0].mxu0
      %v568 = vpop.f32.mrb[0].mxu0
      %v569 = vadd.f32 0.0, %v568
      %v570 = vpop.f32.mrb[0].mxu0
      %571 = vmatprep.mubr.bf16.mxu0 0
      %572 = vmatmul.mubr.bf16.gmra.mrb[0].mxu0 %v526
      %v573 = vpop.f32.mrb[0].mxu0
      %v574 = vadd.f32 0.0, %v573
      %v575 = vpop.f32.mrb[0].mxu0
      %v576 = vpop.f32.mrb[0].mxu0
      %v577 = vadd.f32 0.0, %v576
      %v578 = vpop.f32.mrb[0].mxu0
      %579 = vdwg.mxu0
      %v580 = vadd.f32 %v510, %v566
      %v581 = vadd.f32 %v511, %v569
      %v582 = vadd.f32 %v512, %v574
      %v583 = vadd.f32 %v513, %v577
      %584 = vst [vmem:[#allocation2] sm:$0xff] %v580
      %585 = vst [vmem:[#allocation2 + $0x8] sm:$0xff] %v581
      %586 = vst [vmem:[#allocation2 + $0x10] sm:$0xff] %v582
      %587 = vst [vmem:[#allocation2 + $0x18] sm:$0xff] %v583
      %s588 = sadd.s32 %s264, 36
      %s589 = smul.addr %s588, 4
      %s590 = scalar_lea.vmem %s233, %s589
      %v591 = vld [vmem:[%s590] sm:$0xf]
      %v592 = vld [vmem:[%s590 + $0x8] sm:$0xf]
      %v593 = vld [vmem:[%s590 + $0x10] sm:$0xf]
      %v594 = vld [vmem:[%s590 + $0x18] sm:$0xf]
      %v595 = vld [vmem:[#allocation2] sm:$0xff]
      %v596 = vld [vmem:[#allocation2 + $0x8] sm:$0xff]
      %v597 = vld [vmem:[#allocation2 + $0x10] sm:$0xff]
      %v598 = vld [vmem:[#allocation2 + $0x18] sm:$0xff]
      %s599 = scalar_lea.vmem %s1, 6
      %v600 = vld [vmem:[%s599] sm:$0x3]
      %v605 = vunpack.c.l.b16 %v591
      %v606 = vunpack.c.l.b16 %v592
      %v607 = vunpack.c.l.b16 %v593
      %v608 = vunpack.c.l.b16 %v594
      %v609 = vpack.c.b16 %v606, %v605
      %v610 = vpack.c.b16 %v608, %v607
      %v612 = vsel %vm286, %v609, 0
      %v615 = vsel %vm286, %v610, 0
      %v618 = vsel %vm293, %v600, 0
      %620 = vmatprep.subr.bf16.mxu0 0
      %621 = vmatpush1.bf16.msra.mxu0 %v618
      %622 = vmatprep.subr.bf16.mxu0 0
      %623 = vmatpush1.bf16.msra.mxu0 0
      %624 = vmatprep.subr.bf16.mxu0 0
      %625 = vmatpush1.bf16.msra.mxu0 0
      %626 = vmatprep.subr.bf16.mxu0 0
      %627 = vmatpush1.bf16.msra.mxu0 0
      %628 = vmatprep.subr.bf16.mxu0 0
      %629 = vmatpush1.bf16.msra.mxu0 0
      %630 = vmatprep.subr.bf16.mxu0 0
      %631 = vmatpush1.bf16.msra.mxu0 0
      %632 = vmatprep.subr.bf16.mxu0 0
      %633 = vmatpush1.bf16.msra.mxu0 0
      %634 = vmatprep.subr.bf16.mxu0 0
      %635 = vmatpush1.bf16.msra.mxu0 0
      %636 = vmatprep.subr.bf16.mxu0 0
      %637 = vmatpush1.bf16.msra.mxu0 0
      %638 = vmatprep.subr.bf16.mxu0 0
      %639 = vmatpush1.bf16.msra.mxu0 0
      %640 = vmatprep.subr.bf16.mxu0 0
      %641 = vmatpush1.bf16.msra.mxu0 0
      %642 = vmatprep.subr.bf16.mxu0 0
      %643 = vmatpush1.bf16.msra.mxu0 0
      %644 = vmatprep.subr.bf16.mxu0 0
      %645 = vmatpush1.bf16.msra.mxu0 0
      %646 = vmatprep.subr.bf16.mxu0 0
      %647 = vmatpush1.bf16.msra.mxu0 0
      %648 = vmatprep.subr.bf16.mxu0 0
      %649 = vmatpush1.bf16.msra.mxu0 0
      %650 = vmatprep.subr.bf16.mxu0 0
      %651 = vmatpush1.bf16.msra.mxu0 0
      %652 = vmatprep.mubr.bf16.mxu0 0
      %653 = vmatmul.mubr.bf16.gmra.mrb[0].mxu0 %v612
      %v654 = vpop.f32.mrb[0].mxu0
      %v655 = vadd.f32 0.0, %v654
      %v656 = vpop.f32.mrb[0].mxu0
      %v657 = vpop.f32.mrb[0].mxu0
      %v658 = vadd.f32 0.0, %v657
      %v659 = vpop.f32.mrb[0].mxu0
      %660 = vmatprep.mubr.bf16.mxu0 0
      %661 = vmatmul.mubr.bf16.gmra.mrb[0].mxu0 %v615
      %v662 = vpop.f32.mrb[0].mxu0
      %v663 = vadd.f32 0.0, %v662
      %v664 = vpop.f32.mrb[0].mxu0
      %v665 = vpop.f32.mrb[0].mxu0
      %v666 = vadd.f32 0.0, %v665
      %v667 = vpop.f32.mrb[0].mxu0
      %668 = vdwg.mxu0
      %v669 = vadd.f32 %v595, %v655
      %v670 = vadd.f32 %v596, %v658
      %v671 = vadd.f32 %v597, %v663
      %v672 = vadd.f32 %v598, %v666
      %673 = vst [vmem:[#allocation2] sm:$0xff] %v669
      %674 = vst [vmem:[#allocation2 + $0x8] sm:$0xff] %v670
      %675 = vst [vmem:[#allocation2 + $0x10] sm:$0xff] %v671
      %676 = vst [vmem:[#allocation2 + $0x18] sm:$0xff] %v672
      %s677 = sadd.s32 %s354, 36
      %s678 = smul.addr %s677, 4
      %s679 = scalar_lea.vmem %s233, %s678
      %v680 = vld [vmem:[%s679] sm:$0xf]
      %v681 = vld [vmem:[%s679 + $0x8] sm:$0xf]
      %v682 = vld [vmem:[%s679 + $0x10] sm:$0xf]
      %v683 = vld [vmem:[%s679 + $0x18] sm:$0xf]
      %v684 = vld [vmem:[#allocation2] sm:$0xff]
      %v685 = vld [vmem:[#allocation2 + $0x8] sm:$0xff]
      %v686 = vld [vmem:[#allocation2 + $0x10] sm:$0xff]
      %v687 = vld [vmem:[#allocation2 + $0x18] sm:$0xff]
      %s688 = scalar_lea.vmem %s1, 8
      %v689 = vld [vmem:[%s688] sm:$0x3]
      %v694 = vunpack.c.l.b16 %v680
      %v695 = vunpack.c.l.b16 %v681
      %v696 = vunpack.c.l.b16 %v682
      %v697 = vunpack.c.l.b16 %v683
      %v698 = vpack.c.b16 %v695, %v694
      %v699 = vpack.c.b16 %v697, %v696
      %v701 = vsel %vm286, %v698, 0
      %v704 = vsel %vm286, %v699, 0
      %v707 = vsel %vm293, %v689, 0
      %709 = vmatprep.subr.bf16.mxu0 0
      %710 = vmatpush1.bf16.msra.mxu0 %v707
      %711 = vmatprep.subr.bf16.mxu0 0
      %712 = vmatpush1.bf16.msra.mxu0 0
      %713 = vmatprep.subr.bf16.mxu0 0
      %714 = vmatpush1.bf16.msra.mxu0 0
      %715 = vmatprep.subr.bf16.mxu0 0
      %716 = vmatpush1.bf16.msra.mxu0 0
      %717 = vmatprep.subr.bf16.mxu0 0
      %718 = vmatpush1.bf16.msra.mxu0 0
      %719 = vmatprep.subr.bf16.mxu0 0
      %720 = vmatpush1.bf16.msra.mxu0 0
      %721 = vmatprep.subr.bf16.mxu0 0
      %722 = vmatpush1.bf16.msra.mxu0 0
      %723 = vmatprep.subr.bf16.mxu0 0
      %724 = vmatpush1.bf16.msra.mxu0 0
      %725 = vmatprep.subr.bf16.mxu0 0
      %726 = vmatpush1.bf16.msra.mxu0 0
      %727 = vmatprep.subr.bf16.mxu0 0
      %728 = vmatpush1.bf16.msra.mxu0 0
      %729 = vmatprep.subr.bf16.mxu0 0
      %730 = vmatpush1.bf16.msra.mxu0 0
      %731 = vmatprep.subr.bf16.mxu0 0
      %732 = vmatpush1.bf16.msra.mxu0 0
      %733 = vmatprep.subr.bf16.mxu0 0
      %734 = vmatpush1.bf16.msra.mxu0 0
      %735 = vmatprep.subr.bf16.mxu0 0
      %736 = vmatpush1.bf16.msra.mxu0 0
      %737 = vmatprep.subr.bf16.mxu0 0
      %738 = vmatpush1.bf16.msra.mxu0 0
      %739 = vmatprep.subr.bf16.mxu0 0
      %740 = vmatpush1.bf16.msra.mxu0 0
      %741 = vmatprep.mubr.bf16.mxu0 0
      %742 = vmatmul.mubr.bf16.gmra.mrb[0].mxu0 %v701
      %v743 = vpop.f32.mrb[0].mxu0
      %v744 = vadd.f32 0.0, %v743
      %v745 = vpop.f32.mrb[0].mxu0
      %v746 = vpop.f32.mrb[0].mxu0
      %v747 = vadd.f32 0.0, %v746
      %v748 = vpop.f32.mrb[0].mxu0
      %749 = vmatprep.mubr.bf16.mxu0 0
      %750 = vmatmul.mubr.bf16.gmra.mrb[0].mxu0 %v704
      %v751 = vpop.f32.mrb[0].mxu0
      %v752 = vadd.f32 0.0, %v751
      %v753 = vpop.f32.mrb[0].mxu0
      %v754 = vpop.f32.mrb[0].mxu0
      %v755 = vadd.f32 0.0, %v754
      %v756 = vpop.f32.mrb[0].mxu0
      %757 = vdwg.mxu0
      %v758 = vadd.f32 %v684, %v744
      %v759 = vadd.f32 %v685, %v747
      %v760 = vadd.f32 %v686, %v752
      %v761 = vadd.f32 %v687, %v755
      %762 = vst [vmem:[#allocation2] sm:$0xff] %v758
      %763 = vst [vmem:[#allocation2 + $0x8] sm:$0xff] %v759
      %764 = vst [vmem:[#allocation2 + $0x10] sm:$0xff] %v760
      %765 = vst [vmem:[#allocation2 + $0x18] sm:$0xff] %v761
      %v766 = vld [vmem:[%s590] sm:$0xf]
      %v767 = vld [vmem:[%s590 + $0x4] sm:$0x1]
      %v768 = vld [vmem:[%s590 + $0x8] sm:$0xf]
      %v769 = vld [vmem:[%s590 + $0xc] sm:$0x1]
      %v770 = vld [vmem:[%s590 + $0x10] sm:$0xf]
      %v771 = vld [vmem:[%s590 + $0x14] sm:$0x1]
      %v772 = vld [vmem:[%s590 + $0x18] sm:$0xf]
      %v773 = vld [vmem:[%s590 + $0x1c] sm:$0x1]
      %v775 = vshrl.u32 %v766, 16
      %v777 = vrot.slane %v775, 4
      %v778 = vshll.u32 %v766, 16
      %v780 = vrot.slane %v778, 5
      %v781 = vor.u32 %v777, %v780
      %v782 = vrot.slane %v781, 4
      %v784 = vshll.u32 %v767, 16
      %v786 = vrot.slane %v784, 5
      %v787 = vsel %vm453, %v782, %v786
      %v789 = vshrl.u32 %v768, 16
      %v791 = vrot.slane %v789, 4
      %v792 = vshll.u32 %v768, 16
      %v794 = vrot.slane %v792, 5
      %v795 = vor.u32 %v791, %v794
      %v796 = vrot.slane %v795, 4
      %v798 = vshll.u32 %v769, 16
      %v800 = vrot.slane %v798, 5
      %v801 = vsel %vm453, %v796, %v800
      %v803 = vshrl.u32 %v770, 16
      %v805 = vrot.slane %v803, 4
      %v806 = vshll.u32 %v770, 16
      %v808 = vrot.slane %v806, 5
      %v809 = vor.u32 %v805, %v808
      %v810 = vrot.slane %v809, 4
      %v812 = vshll.u32 %v771, 16
      %v814 = vrot.slane %v812, 5
      %v815 = vsel %vm453, %v810, %v814
      %v817 = vshrl.u32 %v772, 16
      %v819 = vrot.slane %v817, 4
      %v820 = vshll.u32 %v772, 16
      %v822 = vrot.slane %v820, 5
      %v823 = vor.u32 %v819, %v822
      %v824 = vrot.slane %v823, 4
      %v826 = vshll.u32 %v773, 16
      %v828 = vrot.slane %v826, 5
      %v829 = vsel %vm453, %v824, %v828
      %v830 = vld [vmem:[#allocation2] sm:$0xff]
      %v831 = vld [vmem:[#allocation2 + $0x8] sm:$0xff]
      %v832 = vld [vmem:[#allocation2 + $0x10] sm:$0xff]
      %v833 = vld [vmem:[#allocation2 + $0x18] sm:$0xff]
      %s834 = scalar_lea.vmem %s1, 10
      %v835 = vld [vmem:[%s834] sm:$0x3]
      %v836 = vunpack.c.l.b16 %v787
      %v837 = vunpack.c.l.b16 %v801
      %v838 = vunpack.c.l.b16 %v815
      %v839 = vunpack.c.l.b16 %v829
      %v840 = vpack.c.b16 %v837, %v836
      %v841 = vpack.c.b16 %v839, %v838
      %v843 = vsel %vm286, %v840, 0
      %v846 = vsel %vm286, %v841, 0
      %v849 = vsel %vm293, %v835, 0
      %851 = vmatprep.subr.bf16.mxu0 0
      %852 = vmatpush1.bf16.msra.mxu0 %v849
      %853 = vmatprep.subr.bf16.mxu0 0
      %854 = vmatpush1.bf16.msra.mxu0 0
      %855 = vmatprep.subr.bf16.mxu0 0
      %856 = vmatpush1.bf16.msra.mxu0 0
      %857 = vmatprep.subr.bf16.mxu0 0
      %858 = vmatpush1.bf16.msra.mxu0 0
      %859 = vmatprep.subr.bf16.mxu0 0
      %860 = vmatpush1.bf16.msra.mxu0 0
      %861 = vmatprep.subr.bf16.mxu0 0
      %862 = vmatpush1.bf16.msra.mxu0 0
      %863 = vmatprep.subr.bf16.mxu0 0
      %864 = vmatpush1.bf16.msra.mxu0 0
      %865 = vmatprep.subr.bf16.mxu0 0
      %866 = vmatpush1.bf16.msra.mxu0 0
      %867 = vmatprep.subr.bf16.mxu0 0
      %868 = vmatpush1.bf16.msra.mxu0 0
      %869 = vmatprep.subr.bf16.mxu0 0
      %870 = vmatpush1.bf16.msra.mxu0 0
      %871 = vmatprep.subr.bf16.mxu0 0
      %872 = vmatpush1.bf16.msra.mxu0 0
      %873 = vmatprep.subr.bf16.mxu0 0
      %874 = vmatpush1.bf16.msra.mxu0 0
      %875 = vmatprep.subr.bf16.mxu0 0
      %876 = vmatpush1.bf16.msra.mxu0 0
      %877 = vmatprep.subr.bf16.mxu0 0
      %878 = vmatpush1.bf16.msra.mxu0 0
      %879 = vmatprep.subr.bf16.mxu0 0
      %880 = vmatpush1.bf16.msra.mxu0 0
      %881 = vmatprep.subr.bf16.mxu0 0
      %882 = vmatpush1.bf16.msra.mxu0 0
      %883 = vmatprep.mubr.bf16.mxu0 0
      %884 = vmatmul.mubr.bf16.gmra.mrb[0].mxu0 %v843
      %v885 = vpop.f32.mrb[0].mxu0
      %v886 = vadd.f32 0.0, %v885
      %v887 = vpop.f32.mrb[0].mxu0
      %v888 = vpop.f32.mrb[0].mxu0
      %v889 = vadd.f32 0.0, %v888
      %v890 = vpop.f32.mrb[0].mxu0
      %891 = vmatprep.mubr.bf16.mxu0 0
      %892 = vmatmul.mubr.bf16.gmra.mrb[0].mxu0 %v846
      %v893 = vpop.f32.mrb[0].mxu0
      %v894 = vadd.f32 0.0, %v893
      %v895 = vpop.f32.mrb[0].mxu0
      %v896 = vpop.f32.mrb[0].mxu0
      %v897 = vadd.f32 0.0, %v896
      %v898 = vpop.f32.mrb[0].mxu0
      %899 = vdwg.mxu0
      %v900 = vadd.f32 %v830, %v886
      %v901 = vadd.f32 %v831, %v889
      %v902 = vadd.f32 %v832, %v894
      %v903 = vadd.f32 %v833, %v897
      %904 = vst [vmem:[#allocation2] sm:$0xff] %v900
      %905 = vst [vmem:[#allocation2 + $0x8] sm:$0xff] %v901
      %906 = vst [vmem:[#allocation2 + $0x10] sm:$0xff] %v902
      %907 = vst [vmem:[#allocation2 + $0x18] sm:$0xff] %v903
      %s908 = sadd.s32 %s259, 1
      %s909 = smul.u32 %s908, 2
      %s910 = smul.addr %s909, 4
      %s911 = scalar_lea.vmem %s233, %s910
      %v912 = vld [vmem:[%s911] sm:$0xf]
      %v913 = vld [vmem:[%s911 + $0x8] sm:$0xf]
      %v914 = vld [vmem:[%s911 + $0x10] sm:$0xf]
      %v915 = vld [vmem:[%s911 + $0x18] sm:$0xf]
      %v916 = vld [vmem:[#allocation2] sm:$0xff]
      %v917 = vld [vmem:[#allocation2 + $0x8] sm:$0xff]
      %v918 = vld [vmem:[#allocation2 + $0x10] sm:$0xff]
      %v919 = vld [vmem:[#allocation2 + $0x18] sm:$0xff]
      %s920 = scalar_lea.vmem %s1, 12
      %v921 = vld [vmem:[%s920] sm:$0x3]
      %v926 = vunpack.c.l.b16 %v912
      %v927 = vunpack.c.l.b16 %v913
      %v928 = vunpack.c.l.b16 %v914
      %v929 = vunpack.c.l.b16 %v915
      %v930 = vpack.c.b16 %v927, %v926
      %v931 = vpack.c.b16 %v929, %v928
      %v933 = vsel %vm286, %v930, 0
      %v936 = vsel %vm286, %v931, 0
      %v939 = vsel %vm293, %v921, 0
      %941 = vmatprep.subr.bf16.mxu0 0
      %942 = vmatpush1.bf16.msra.mxu0 %v939
      %943 = vmatprep.subr.bf16.mxu0 0
      %944 = vmatpush1.bf16.msra.mxu0 0
      %945 = vmatprep.subr.bf16.mxu0 0
      %946 = vmatpush1.bf16.msra.mxu0 0
      %947 = vmatprep.subr.bf16.mxu0 0
      %948 = vmatpush1.bf16.msra.mxu0 0
      %949 = vmatprep.subr.bf16.mxu0 0
      %950 = vmatpush1.bf16.msra.mxu0 0
      %951 = vmatprep.subr.bf16.mxu0 0
      %952 = vmatpush1.bf16.msra.mxu0 0
      %953 = vmatprep.subr.bf16.mxu0 0
      %954 = vmatpush1.bf16.msra.mxu0 0
      %955 = vmatprep.subr.bf16.mxu0 0
      %956 = vmatpush1.bf16.msra.mxu0 0
      %957 = vmatprep.subr.bf16.mxu0 0
      %958 = vmatpush1.bf16.msra.mxu0 0
      %959 = vmatprep.subr.bf16.mxu0 0
      %960 = vmatpush1.bf16.msra.mxu0 0
      %961 = vmatprep.subr.bf16.mxu0 0
      %962 = vmatpush1.bf16.msra.mxu0 0
      %963 = vmatprep.subr.bf16.mxu0 0
      %964 = vmatpush1.bf16.msra.mxu0 0
      %965 = vmatprep.subr.bf16.mxu0 0
      %966 = vmatpush1.bf16.msra.mxu0 0
      %967 = vmatprep.subr.bf16.mxu0 0
      %968 = vmatpush1.bf16.msra.mxu0 0
      %969 = vmatprep.subr.bf16.mxu0 0
      %970 = vmatpush1.bf16.msra.mxu0 0
      %971 = vmatprep.subr.bf16.mxu0 0
      %972 = vmatpush1.bf16.msra.mxu0 0
      %973 = vmatprep.mubr.bf16.mxu0 0
      %974 = vmatmul.mubr.bf16.gmra.mrb[0].mxu0 %v933
      %v975 = vpop.f32.mrb[0].mxu0
      %v976 = vadd.f32 0.0, %v975
      %v977 = vpop.f32.mrb[0].mxu0
      %v978 = vpop.f32.mrb[0].mxu0
      %v979 = vadd.f32 0.0, %v978
      %v980 = vpop.f32.mrb[0].mxu0
      %981 = vmatprep.mubr.bf16.mxu0 0
      %982 = vmatmul.mubr.bf16.gmra.mrb[0].mxu0 %v936
      %v983 = vpop.f32.mrb[0].mxu0
      %v984 = vadd.f32 0.0, %v983
      %v985 = vpop.f32.mrb[0].mxu0
      %v986 = vpop.f32.mrb[0].mxu0
      %v987 = vadd.f32 0.0, %v986
      %v988 = vpop.f32.mrb[0].mxu0
      %989 = vdwg.mxu0
      %v990 = vadd.f32 %v916, %v976
      %v991 = vadd.f32 %v917, %v979
      %v992 = vadd.f32 %v918, %v984
      %v993 = vadd.f32 %v919, %v987
      %994 = vst [vmem:[#allocation2] sm:$0xff] %v990
      %995 = vst [vmem:[#allocation2 + $0x8] sm:$0xff] %v991
      %996 = vst [vmem:[#allocation2 + $0x10] sm:$0xff] %v992
      %997 = vst [vmem:[#allocation2 + $0x18] sm:$0xff] %v993
      %s998 = sadd.s32 %s909, 18
      %s999 = smul.addr %s998, 4
      %s1000 = scalar_lea.vmem %s233, %s999
      %v1001 = vld [vmem:[%s1000] sm:$0xf]
      %v1002 = vld [vmem:[%s1000 + $0x8] sm:$0xf]
      %v1003 = vld [vmem:[%s1000 + $0x10] sm:$0xf]
      %v1004 = vld [vmem:[%s1000 + $0x18] sm:$0xf]
      %v1005 = vld [vmem:[#allocation2] sm:$0xff]
      %v1006 = vld [vmem:[#allocation2 + $0x8] sm:$0xff]
      %v1007 = vld [vmem:[#allocation2 + $0x10] sm:$0xff]
      %v1008 = vld [vmem:[#allocation2 + $0x18] sm:$0xff]
      %s1009 = scalar_lea.vmem %s1, 14
      %v1010 = vld [vmem:[%s1009] sm:$0x3]
      %v1015 = vunpack.c.l.b16 %v1001
      %v1016 = vunpack.c.l.b16 %v1002
      %v1017 = vunpack.c.l.b16 %v1003
      %v1018 = vunpack.c.l.b16 %v1004
      %v1019 = vpack.c.b16 %v1016, %v1015
      %v1020 = vpack.c.b16 %v1018, %v1017
      %v1022 = vsel %vm286, %v1019, 0
      %v1025 = vsel %vm286, %v1020, 0
      %v1028 = vsel %vm293, %v1010, 0
      %1030 = vmatprep.subr.bf16.mxu0 0
      %1031 = vmatpush1.bf16.msra.mxu0 %v1028
      %1032 = vmatprep.subr.bf16.mxu0 0
      %1033 = vmatpush1.bf16.msra.mxu0 0
      %1034 = vmatprep.subr.bf16.mxu0 0
      %1035 = vmatpush1.bf16.msra.mxu0 0
      %1036 = vmatprep.subr.bf16.mxu0 0
      %1037 = vmatpush1.bf16.msra.mxu0 0
      %1038 = vmatprep.subr.bf16.mxu0 0
      %1039 = vmatpush1.bf16.msra.mxu0 0
      %1040 = vmatprep.subr.bf16.mxu0 0
      %1041 = vmatpush1.bf16.msra.mxu0 0
      %1042 = vmatprep.subr.bf16.mxu0 0
      %1043 = vmatpush1.bf16.msra.mxu0 0
      %1044 = vmatprep.subr.bf16.mxu0 0
      %1045 = vmatpush1.bf16.msra.mxu0 0
      %1046 = vmatprep.subr.bf16.mxu0 0
      %1047 = vmatpush1.bf16.msra.mxu0 0
      %1048 = vmatprep.subr.bf16.mxu0 0
      %1049 = vmatpush1.bf16.msra.mxu0 0
      %1050 = vmatprep.subr.bf16.mxu0 0
      %1051 = vmatpush1.bf16.msra.mxu0 0
      %1052 = vmatprep.subr.bf16.mxu0 0
      %1053 = vmatpush1.bf16.msra.mxu0 0
      %1054 = vmatprep.subr.bf16.mxu0 0
      %1055 = vmatpush1.bf16.msra.mxu0 0
      %1056 = vmatprep.subr.bf16.mxu0 0
      %1057 = vmatpush1.bf16.msra.mxu0 0
      %1058 = vmatprep.subr.bf16.mxu0 0
      %1059 = vmatpush1.bf16.msra.mxu0 0
      %1060 = vmatprep.subr.bf16.mxu0 0
      %1061 = vmatpush1.bf16.msra.mxu0 0
      %1062 = vmatprep.mubr.bf16.mxu0 0
      %1063 = vmatmul.mubr.bf16.gmra.mrb[0].mxu0 %v1022
      %v1064 = vpop.f32.mrb[0].mxu0
      %v1065 = vadd.f32 0.0, %v1064
      %v1066 = vpop.f32.mrb[0].mxu0
      %v1067 = vpop.f32.mrb[0].mxu0
      %v1068 = vadd.f32 0.0, %v1067
      %v1069 = vpop.f32.mrb[0].mxu0
      %1070 = vmatprep.mubr.bf16.mxu0 0
      %1071 = vmatmul.mubr.bf16.gmra.mrb[0].mxu0 %v1025
      %v1072 = vpop.f32.mrb[0].mxu0
      %v1073 = vadd.f32 0.0, %v1072
      %v1074 = vpop.f32.mrb[0].mxu0
      %v1075 = vpop.f32.mrb[0].mxu0
      %v1076 = vadd.f32 0.0, %v1075
      %v1077 = vpop.f32.mrb[0].mxu0
      %1078 = vdwg.mxu0
      %v1079 = vadd.f32 %v1005, %v1065
      %v1080 = vadd.f32 %v1006, %v1068
      %v1081 = vadd.f32 %v1007, %v1073
      %v1082 = vadd.f32 %v1008, %v1076
      %1083 = vst [vmem:[#allocation2] sm:$0xff] %v1079
      %1084 = vst [vmem:[#allocation2 + $0x8] sm:$0xff] %v1080
      %1085 = vst [vmem:[#allocation2 + $0x10] sm:$0xff] %v1081
      %1086 = vst [vmem:[#allocation2 + $0x18] sm:$0xff] %v1082
      %v1087 = vld [vmem:[%s911] sm:$0xf]
      %v1088 = vld [vmem:[%s911 + $0x4] sm:$0x1]
      %v1089 = vld [vmem:[%s911 + $0x8] sm:$0xf]
      %v1090 = vld [vmem:[%s911 + $0xc] sm:$0x1]
      %v1091 = vld [vmem:[%s911 + $0x10] sm:$0xf]
      %v1092 = vld [vmem:[%s911 + $0x14] sm:$0x1]
      %v1093 = vld [vmem:[%s911 + $0x18] sm:$0xf]
      %v1094 = vld [vmem:[%s911 + $0x1c] sm:$0x1]
      %v1096 = vshrl.u32 %v1087, 16
      %v1098 = vrot.slane %v1096, 4
      %v1099 = vshll.u32 %v1087, 16
      %v1101 = vrot.slane %v1099, 5
      %v1102 = vor.u32 %v1098, %v1101
      %v1103 = vrot.slane %v1102, 4
      %v1105 = vshll.u32 %v1088, 16
      %v1107 = vrot.slane %v1105, 5
      %v1108 = vsel %vm453, %v1103, %v1107
      %v1110 = vshrl.u32 %v1089, 16
      %v1112 = vrot.slane %v1110, 4
      %v1113 = vshll.u32 %v1089, 16
      %v1115 = vrot.slane %v1113, 5
      %v1116 = vor.u32 %v1112, %v1115
      %v1117 = vrot.slane %v1116, 4
      %v1119 = vshll.u32 %v1090, 16
      %v1121 = vrot.slane %v1119, 5
      %v1122 = vsel %vm453, %v1117, %v1121
      %v1124 = vshrl.u32 %v1091, 16
      %v1126 = vrot.slane %v1124, 4
      %v1127 = vshll.u32 %v1091, 16
      %v1129 = vrot.slane %v1127, 5
      %v1130 = vor.u32 %v1126, %v1129
      %v1131 = vrot.slane %v1130, 4
      %v1133 = vshll.u32 %v1092, 16
      %v1135 = vrot.slane %v1133, 5
      %v1136 = vsel %vm453, %v1131, %v1135
      %v1138 = vshrl.u32 %v1093, 16
      %v1140 = vrot.slane %v1138, 4
      %v1141 = vshll.u32 %v1093, 16
      %v1143 = vrot.slane %v1141, 5
      %v1144 = vor.u32 %v1140, %v1143
      %v1145 = vrot.slane %v1144, 4
      %v1147 = vshll.u32 %v1094, 16
      %v1149 = vrot.slane %v1147, 5
      %v1150 = vsel %vm453, %v1145, %v1149
      %v1151 = vld [vmem:[#allocation2] sm:$0xff]
      %v1152 = vld [vmem:[#allocation2 + $0x8] sm:$0xff]
      %v1153 = vld [vmem:[#allocation2 + $0x10] sm:$0xff]
      %v1154 = vld [vmem:[#allocation2 + $0x18] sm:$0xff]
      %s1155 = scalar_lea.vmem %s1, 16
      %v1156 = vld [vmem:[%s1155] sm:$0x3]
      %v1157 = vunpack.c.l.b16 %v1108
      %v1158 = vunpack.c.l.b16 %v1122
      %v1159 = vunpack.c.l.b16 %v1136
      %v1160 = vunpack.c.l.b16 %v1150
      %v1161 = vpack.c.b16 %v1158, %v1157
      %v1162 = vpack.c.b16 %v1160, %v1159
      %v1164 = vsel %vm286, %v1161, 0
      %v1167 = vsel %vm286, %v1162, 0
      %v1170 = vsel %vm293, %v1156, 0
      %1172 = vmatprep.subr.bf16.mxu0 0
      %1173 = vmatpush1.bf16.msra.mxu0 %v1170
      %1174 = vmatprep.subr.bf16.mxu0 0
      %1175 = vmatpush1.bf16.msra.mxu0 0
      %1176 = vmatprep.subr.bf16.mxu0 0
      %1177 = vmatpush1.bf16.msra.mxu0 0
      %1178 = vmatprep.subr.bf16.mxu0 0
      %1179 = vmatpush1.bf16.msra.mxu0 0
      %1180 = vmatprep.subr.bf16.mxu0 0
      %1181 = vmatpush1.bf16.msra.mxu0 0
      %1182 = vmatprep.subr.bf16.mxu0 0
      %1183 = vmatpush1.bf16.msra.mxu0 0
      %1184 = vmatprep.subr.bf16.mxu0 0
      %1185 = vmatpush1.bf16.msra.mxu0 0
      %1186 = vmatprep.subr.bf16.mxu0 0
      %1187 = vmatpush1.bf16.msra.mxu0 0
      %1188 = vmatprep.subr.bf16.mxu0 0
      %1189 = vmatpush1.bf16.msra.mxu0 0
      %1190 = vmatprep.subr.bf16.mxu0 0
      %1191 = vmatpush1.bf16.msra.mxu0 0
      %1192 = vmatprep.subr.bf16.mxu0 0
      %1193 = vmatpush1.bf16.msra.mxu0 0
      %1194 = vmatprep.subr.bf16.mxu0 0
      %1195 = vmatpush1.bf16.msra.mxu0 0
      %1196 = vmatprep.subr.bf16.mxu0 0
      %1197 = vmatpush1.bf16.msra.mxu0 0
      %1198 = vmatprep.subr.bf16.mxu0 0
      %1199 = vmatpush1.bf16.msra.mxu0 0
      %1200 = vmatprep.subr.bf16.mxu0 0
      %1201 = vmatpush1.bf16.msra.mxu0 0
      %1202 = vmatprep.subr.bf16.mxu0 0
      %1203 = vmatpush1.bf16.msra.mxu0 0
      %1204 = vmatprep.mubr.bf16.mxu0 0
      %1205 = vmatmul.mubr.bf16.gmra.mrb[0].mxu0 %v1164
      %v1206 = vpop.f32.mrb[0].mxu0
      %v1207 = vadd.f32 0.0, %v1206
      %v1208 = vpop.f32.mrb[0].mxu0
      %v1209 = vpop.f32.mrb[0].mxu0
      %v1210 = vadd.f32 0.0, %v1209
      %v1211 = vpop.f32.mrb[0].mxu0
      %1212 = vmatprep.mubr.bf16.mxu0 0
      %1213 = vmatmul.mubr.bf16.gmra.mrb[0].mxu0 %v1167
      %v1214 = vpop.f32.mrb[0].mxu0
      %v1215 = vadd.f32 0.0, %v1214
      %v1216 = vpop.f32.mrb[0].mxu0
      %v1217 = vpop.f32.mrb[0].mxu0
      %v1218 = vadd.f32 0.0, %v1217
      %v1219 = vpop.f32.mrb[0].mxu0
      %1220 = vdwg.mxu0
      %v1221 = vadd.f32 %v1151, %v1207
      %v1222 = vadd.f32 %v1152, %v1210
      %v1223 = vadd.f32 %v1153, %v1215
      %v1224 = vadd.f32 %v1154, %v1218
      %1225 = vst [vmem:[#allocation2] sm:$0xff] %v1221
      %1226 = vst [vmem:[#allocation2 + $0x8] sm:$0xff] %v1222
      %1227 = vst [vmem:[#allocation2 + $0x10] sm:$0xff] %v1223
      %1228 = vst [vmem:[#allocation2 + $0x18] sm:$0xff] %v1224
      %v1229 = vld [vmem:[#allocation2] sm:$0xff]
      %v1230 = vld [vmem:[#allocation2 + $0x8] sm:$0xff]
      %v1231 = vld [vmem:[#allocation2 + $0x10] sm:$0xff]
      %v1232 = vld [vmem:[#allocation2 + $0x18] sm:$0xff]
      %v1233 = vpack.c.bf16 %v1229, %v1229
      %v1234 = vpack.c.bf16 %v1230, %v1230
      %v1235 = vpack.c.bf16 %v1231, %v1231
      %v1236 = vpack.c.bf16 %v1232, %v1232
      %1237 = vst [vmem:[%s242] sm:$0xf] %v1233
      %1238 = vst [vmem:[%s242 + $0x4] sm:$0xf] %v1234
      %1239 = vst [vmem:[%s242 + $0x8] sm:$0xf] %v1235
      %1240 = vst [vmem:[%s242 + $0xc] sm:$0xf] %v1236
      %v1241 = vadd.f32 %v1229, %v1230
      %v1242 = vadd.f32 %v1241, %v1231
      %v1243 = vadd.f32 %v1242, %v1232
      %v1244 = vrot.slane %v1243, 4
      %v1245 = vadd.f32 %v1243, %v1244
      %v1246 = vrot.slane %v1245, 2
      %v1247 = vadd.f32 %v1245, %v1246
      %v1248 = vrot.slane %v1247, 1
      %v1249 = vadd.f32 %v1247, %v1248
      %1250 = vst [vmem:[%s250] sm:$0x1] %v1249
      %v1251 = vmul.f32 %v1229, %v1229
      %v1252 = vmul.f32 %v1230, %v1230
      %v1253 = vmul.f32 %v1231, %v1231
      %v1254 = vmul.f32 %v1232, %v1232
      %v1255 = vadd.f32 %v1251, %v1252
      %v1256 = vadd.f32 %v1255, %v1253
      %v1257 = vadd.f32 %v1256, %v1254
      %v1258 = vrot.slane %v1257, 4
      %v1259 = vadd.f32 %v1257, %v1258
      %v1260 = vrot.slane %v1259, 2
      %v1261 = vadd.f32 %v1259, %v1260
      %v1262 = vrot.slane %v1261, 1
      %v1263 = vadd.f32 %v1261, %v1262
      %1264 = vst [vmem:[%s257] sm:$0x1] %v1263
      %s1265 = smul.u32 4, %s21
      %p1266 = scmp.lt.s32.totalorder %s20, 1
      %s1267 = scalar_select %p1266, %s20, 1
      %p1268 = scmp.lt.s32.totalorder %s1265, 7
      %s1269 = scalar_select %p1268, %s1265, 7
      %s1270 = smul.addr %s1267, 8
      %s1271 = sadd.s32 %s1269, %s1270
      %s1272 = smul.addr %s1271, 4
      %s1273 = scalar_lea.vmem %s2, %s1272
      %p1274 = scmp.lt.s32.totalorder %s20, 1
      %s1275 = scalar_select %p1274, %s20, 1
      %p1276 = scmp.lt.s32.totalorder %s21, 1
      %s1277 = scalar_select %p1276, %s21, 1
      %s1278 = smul.addr %s1275, 2
      %s1279 = sadd.s32 %s1277, %s1278
      %s1280 = scalar_lea.vmem %s3, %s1279
      %p1281 = scmp.lt.s32.totalorder %s20, 1
      %s1282 = scalar_select %p1281, %s20, 1
      %p1283 = scmp.lt.s32.totalorder %s21, 1
      %s1284 = scalar_select %p1283, %s21, 1
      %s1285 = smul.addr %s1282, 2
      %s1286 = sadd.s32 %s1284, %s1285
      %s1287 = scalar_lea.vmem %s4, %s1286
      // Predicated region
      $region29: #{basic_block_forward.5} parent=27 // pred_check
        %p1288 = pneg %p95
      $region30: #{basic_block_forward.5} parent=27 // pred_check_branch
        %1290 = sbr.rel (%p1288) target = $region32
      $region31: #{basic_block_forward.5} parent=27 // pred_region
        %s1291 = smul.u32 4, %s21
      $region32: #{basic_block_forward.5} parent=27 // pred_fallthru
        _
      // Predicated region
      $region33: #{basic_block_forward.5} parent=27 // pred_check
        %p1292 = pneg %p123
      $region34: #{basic_block_forward.5} parent=27 // pred_check_branch
        %1294 = sbr.rel (%p1292) target = $region36
      $region35: #{basic_block_forward.5} parent=27 // pred_region
        _
      $region36: #{basic_block_forward.5} parent=27 // pred_fallthru
        _
      // Predicated region
      $region37: #{basic_block_forward.5} parent=27 // pred_check
        %p1295 = pneg %p151
      $region38: #{basic_block_forward.5} parent=27 // pred_check_branch
        %1297 = sbr.rel (%p1295) target = $region40
      $region39: #{basic_block_forward.5} parent=27 // pred_region
        _
      $region40: #{basic_block_forward.5} parent=27 // pred_fallthru
        _
    $region28: #{basic_block_forward.5} parent=5 // pred_fallthru
      _
    %p1298 = scmp.le.s32.totalorder 2, %s11
    // Predicated region
    $region41: #{basic_block_forward.5} parent=5 // pred_check
      %p1299 = pneg %p1298
    $region42: #{basic_block_forward.5} parent=5 // pred_check_branch
      %1301 = sbr.rel (%p1299) target = $region44
    $region43: #{basic_block_forward.5} parent=5 // pred_region
      %s1302 = ssub.s32 %s11, 2
      // Predicated region
      $region45: #{basic_block_forward.5} parent=43 // pred_check
        %p1303 = pneg %p101
      $region46: #{basic_block_forward.5} parent=43 // pred_check_branch
        %1305 = sbr.rel (%p1303) target = $region48
      $region47: #{basic_block_forward.5} parent=43 // pred_region
        %s1306 = smul.u32 4, %s23
        %p1307 = scmp.lt.s32.totalorder %s22, 1
        %s1308 = scalar_select %p1307, %s22, 1
        %p1309 = scmp.lt.s32.totalorder %s1306, 7
        %s1310 = scalar_select %p1309, %s1306, 7
        %s1311 = smul.addr %s1308, 8
        %s1312 = sadd.s32 %s1310, %s1311
        %s1313 = smul.addr %s1312, 4
        %s1314 = scalar_lea.vmem %s2, %s1313
      $region48: #{basic_block_forward.5} parent=43 // pred_fallthru
        _
      // Predicated region
      $region49: #{basic_block_forward.5} parent=43 // pred_check
        %p1315 = pneg %p129
      $region50: #{basic_block_forward.5} parent=43 // pred_check_branch
        %1317 = sbr.rel (%p1315) target = $region52
      $region51: #{basic_block_forward.5} parent=43 // pred_region
        %p1318 = scmp.lt.s32.totalorder %s22, 1
        %s1319 = scalar_select %p1318, %s22, 1
        %p1320 = scmp.lt.s32.totalorder %s23, 1
        %s1321 = scalar_select %p1320, %s23, 1
        %s1322 = smul.addr %s1319, 2
        %s1323 = sadd.s32 %s1321, %s1322
        %s1324 = scalar_lea.vmem %s3, %s1323
      $region52: #{basic_block_forward.5} parent=43 // pred_fallthru
        _
      // Predicated region
      $region53: #{basic_block_forward.5} parent=43 // pred_check
        %p1325 = pneg %p157
      $region54: #{basic_block_forward.5} parent=43 // pred_check_branch
        %1327 = sbr.rel (%p1325) target = $region56
      $region55: #{basic_block_forward.5} parent=43 // pred_region
        %p1328 = scmp.lt.s32.totalorder %s22, 1
        %s1329 = scalar_select %p1328, %s22, 1
        %p1330 = scmp.lt.s32.totalorder %s23, 1
        %s1331 = scalar_select %p1330, %s23, 1
        %s1332 = smul.addr %s1329, 2
        %s1333 = sadd.s32 %s1331, %s1332
        %s1334 = scalar_lea.vmem %s4, %s1333
      $region56: #{basic_block_forward.5} parent=43 // pred_fallthru
        _
    $region44: #{basic_block_forward.5} parent=5 // pred_fallthru
      _
  $region6: #{basic_block_forward.5} parent=0 // loop_footer
    %s15 = sadd.s32 1, %s11
  $region7: #{basic_block_forward.5} parent=0 // loop_footer_branch
    %10 = sbr.rel target = $region3
  $region8: #{basic_block_forward.5} parent=0 // loop_exit
    _

// kernel: basic_block_forward.8
$region0: #{basic_block_forward.8}
  #allocation0 [shape = 'u32[]', space=smem, size = 0x4, offset = 0x4, fixed_abs, tag = 'smem constant byte address 0x4 - core index']
  #allocation1 [shape = 'u32[144,128]{1,0:T(1,128)}', space=vmem, size = 0x12000, scoped, tag = 'internal scratch']
  #allocation2 [shape = 'f32[32,128]{1,0:T(8,128)}', space=vmem, size = 0x4000, scoped, tag = 'scratch operand']
  %s0 = inlined_call_operand.vmem [shape: bf16[2,1,1,10,10,8], index: 0, kind: input, shape index: {}]
  %s1 = inlined_call_operand.vmem [shape: bf16[3,3,8,128], index: 1, kind: input, shape index: {}]
  %s2 = inlined_call_operand.vmem [shape: bf16[2,8,8,128], index: 2, kind: output, shape index: {0}]
  %s3 = inlined_call_operand.vmem [shape: f32[2,2,1,128], index: 3, kind: output, shape index: {1}]
  %s4 = inlined_call_operand.vmem [shape: f32[2,2,1,128], index: 4, kind: output, shape index: {2}]
  %5 = xla_tuple %s2, %s3, %s4
  %s6 = sld [smem:[#allocation0]]
  $region57: #{basic_block_forward.8} parent=0
    _
  %s8 = ssub.s32 1, %s6
  %s9 = scalar_select 0, %s8, %s6
  loop: start=0, step=1, limit=6
  $region2: #{basic_block_forward.8} parent=0 // loop_pre_header
    _
  $region3: #{basic_block_forward.8} parent=0 // loop_header
    %s11 = sphi 0, %s15
    %p12 = scmp.ge.s32.totalorder %s11, 6
    %s18 = sphi 0, %s30
    %s19 = sphi 0, %s26
    %s20 = sphi 0, %s18
    %s21 = sphi 0, %s19
    %s22 = sphi 0, %s20
    %s23 = sphi 0, %s21
    %s33 = sphi 0, %s35
    %s36 = sphi 0, %s33
    %s37 = sphi 0, %s36
    %s53 = sphi 0, %s37
    %s57 = sphi 0, %s57
    %s59 = sphi 0, %s57
    %s60 = sphi 0, %s59
    %s74 = sphi 0, %s60
    %s82 = sphi 0, %s84
    %s85 = sphi 0, %s82
    %s86 = sphi 0, %s85
    %s102 = sphi 0, %s86
    %s110 = sphi 0, %s112
    %s113 = sphi 0, %s110
    %s114 = sphi 0, %s113
    %s130 = sphi 0, %s114
    %s138 = sphi 0, %s140
    %s141 = sphi 0, %s138
    %s142 = sphi 0, %s141
    %s158 = sphi 0, %s142
  $region4: #{basic_block_forward.8} parent=0 // loop_header_branch
    %14 = sbr.rel (%p12) target = $region8
  $region5: #{basic_block_forward.8} parent=0 // loop_body
    %s16 = ssub.s32 %s11, 1
    %s17 = ssub.s32 %s11, 2
    %s24 = sadd.s32 1, %s19
    %p25 = scmp.ge.s32.totalorder %s24, 2
    %s26 = scalar_select %p25, 0, %s24
    %s27 = sadd.s32 1, %s18
    %s28 = scalar_select %p25, %s27, %s18
    %p29 = scmp.ge.s32.totalorder %s28, 2
    %s30 = scalar_select %p29, 0, %s28
    %s31 = ssub.s32 %s18, %s30
    %p32 = scmp.eq.s32.totalorder %s31, 0
    %s34 = sadd.s32 %s33, 1
    %s35 = scalar_select %p32, %s33, %s34
    %p38 = pneg %p32
    %p39 = scmp.eq.s32.totalorder %s11, 3
    %p40 = por %p38, %p39
    %p41 = scmp.ne.s32.totalorder %s33, %s36
    %p42 = scmp.eq.s32.totalorder %s11, 0
    %p43 = por %p41, %p42
    %p44 = scmp.ne.s32.totalorder %s33, %s36
    %p45 = scmp.eq.s32.totalorder %s16, 3
    %p46 = por %p44, %p45
    %p47 = scmp.ne.s32.totalorder %s36, %s37
    %p48 = scmp.eq.s32.totalorder %s16, 0
    %p49 = por %p47, %p48
    %p50 = scmp.ne.s32.totalorder %s36, %s37
    %p51 = scmp.eq.s32.totalorder %s17, 3
    %p52 = por %p50, %p51
    %p54 = scmp.ne.s32.totalorder %s37, %s53
    %p55 = scmp.eq.s32.totalorder %s17, 0
    %p56 = por %p54, %p55
    %s58 = sadd.s32 %s57, 1
    %p61 = scmp.eq.s32.totalorder %s11, 3
    %p62 = scmp.ne.s32.totalorder %s57, %s59
    %p63 = scmp.eq.s32.totalorder %s11, 0
    %p64 = por %p62, %p63
    %p65 = scmp.ne.s32.totalorder %s57, %s59
    %p66 = scmp.eq.s32.totalorder %s16, 3
    %p67 = por %p65, %p66
    %p68 = scmp.ne.s32.totalorder %s59, %s60
    %p69 = scmp.eq.s32.totalorder %s16, 0
    %p70 = por %p68, %p69
    %p71 = scmp.ne.s32.totalorder %s59, %s60
    %p72 = scmp.eq.s32.totalorder %s17, 3
    %p73 = por %p71, %p72
    %p75 = scmp.ne.s32.totalorder %s60, %s74
    %p76 = scmp.eq.s32.totalorder %s17, 0
    %p77 = por %p75, %p76
    %s78 = ssub.s32 %s18, %s30
    %s79 = ssub.s32 %s19, %s26
    %s80 = sor.u32 %s78, %s79
    %p81 = scmp.eq.s32.totalorder %s80, 0
    %s83 = sadd.s32 %s82, 1
    %s84 = scalar_select %p81, %s82, %s83
    %p87 = pneg %p81
    %p88 = scmp.eq.s32.totalorder %s11, 3
    %p89 = por %p87, %p88
    %p90 = scmp.ne.s32.totalorder %s82, %s85
    %p91 = scmp.eq.s32.totalorder %s11, 0
    %p92 = por %p90, %p91
    %p93 = scmp.ne.s32.totalorder %s82, %s85
    %p94 = scmp.eq.s32.totalorder %s16, 3
    %p95 = por %p93, %p94
    %p96 = scmp.ne.s32.totalorder %s85, %s86
    %p97 = scmp.eq.s32.totalorder %s16, 0
    %p98 = por %p96, %p97
    %p99 = scmp.ne.s32.totalorder %s85, %s86
    %p100 = scmp.eq.s32.totalorder %s17, 3
    %p101 = por %p99, %p100
    %p103 = scmp.ne.s32.totalorder %s86, %s102
    %p104 = scmp.eq.s32.totalorder %s17, 0
    %p105 = por %p103, %p104
    %s106 = ssub.s32 %s18, %s30
    %s107 = ssub.s32 %s19, %s26
    %s108 = sor.u32 %s106, %s107
    %p109 = scmp.eq.s32.totalorder %s108, 0
    %s111 = sadd.s32 %s110, 1
    %s112 = scalar_select %p109, %s110, %s111
    %p115 = pneg %p109
    %p116 = scmp.eq.s32.totalorder %s11, 3
    %p117 = por %p115, %p116
    %p118 = scmp.ne.s32.totalorder %s110, %s113
    %p119 = scmp.eq.s32.totalorder %s11, 0
    %p120 = por %p118, %p119
    %p121 = scmp.ne.s32.totalorder %s110, %s113
    %p122 = scmp.eq.s32.totalorder %s16, 3
    %p123 = por %p121, %p122
    %p124 = scmp.ne.s32.totalorder %s113, %s114
    %p125 = scmp.eq.s32.totalorder %s16, 0
    %p126 = por %p124, %p125
    %p127 = scmp.ne.s32.totalorder %s113, %s114
    %p128 = scmp.eq.s32.totalorder %s17, 3
    %p129 = por %p127, %p128
    %p131 = scmp.ne.s32.totalorder %s114, %s130
    %p132 = scmp.eq.s32.totalorder %s17, 0
    %p133 = por %p131, %p132
    %s134 = ssub.s32 %s18, %s30
    %s135 = ssub.s32 %s19, %s26
    %s136 = sor.u32 %s134, %s135
    %p137 = scmp.eq.s32.totalorder %s136, 0
    %s139 = sadd.s32 %s138, 1
    %s140 = scalar_select %p137, %s138, %s139
    %p143 = pneg %p137
    %p144 = scmp.eq.s32.totalorder %s11, 3
    %p145 = por %p143, %p144
    %p146 = scmp.ne.s32.totalorder %s138, %s141
    %p147 = scmp.eq.s32.totalorder %s11, 0
    %p148 = por %p146, %p147
    %p149 = scmp.ne.s32.totalorder %s138, %s141
    %p150 = scmp.eq.s32.totalorder %s16, 3
    %p151 = por %p149, %p150
    %p152 = scmp.ne.s32.totalorder %s141, %s142
    %p153 = scmp.eq.s32.totalorder %s16, 0
    %p154 = por %p152, %p153
    %p155 = scmp.ne.s32.totalorder %s141, %s142
    %p156 = scmp.eq.s32.totalorder %s17, 3
    %p157 = por %p155, %p156
    %p159 = scmp.ne.s32.totalorder %s142, %s158
    %p160 = scmp.eq.s32.totalorder %s17, 0
    %p161 = por %p159, %p160
    %p162 = scmp.le.s32.totalorder 1, %s11
    %p163 = scmp.lt.s32.totalorder %s11, 5
    %p164 = pnand %p162, %p163
    %p165 = pneg %p164
    // Predicated region
    $region9: #{basic_block_forward.8} parent=5 // pred_check
      _
    $region10: #{basic_block_forward.8} parent=5 // pred_check_branch
      %167 = sbr.rel (%p164) target = $region12
    $region11: #{basic_block_forward.8} parent=5 // pred_region
      %s168 = ssub.s32 %s11, 1
      // Predicated region
      $region13: #{basic_block_forward.8} parent=11 // pred_check
        %p169 = pneg %p70
      $region14: #{basic_block_forward.8} parent=11 // pred_check_branch
        %171 = sbr.rel (%p169) target = $region16
      $region15: #{basic_block_forward.8} parent=11 // pred_region
        _
      $region16: #{basic_block_forward.8} parent=11 // pred_fallthru
        _
    $region12: #{basic_block_forward.8} parent=5 // pred_fallthru
      _
    %p172 = scmp.lt.s32.totalorder %s11, 4
    // Predicated region
    $region17: #{basic_block_forward.8} parent=5 // pred_check
      %p173 = pneg %p172
    $region18: #{basic_block_forward.8} parent=5 // pred_check_branch
      %175 = sbr.rel (%p173) target = $region20
    $region19: #{basic_block_forward.8} parent=5 // pred_region
      // Predicated region
      $region21: #{basic_block_forward.8} parent=19 // pred_check
        %p176 = pneg %p43
      $region22: #{basic_block_forward.8} parent=19 // pred_check_branch
        %178 = sbr.rel (%p176) target = $region24
      $region23: #{basic_block_forward.8} parent=19 // pred_region
        %p179 = scmp.lt.s32.totalorder %s18, 1
        %s180 = scalar_select %p179, %s18, 1
        %s181 = smul.addr %s180, 20
        %s182 = smul.addr %s181, 4
        %s183 = scalar_lea.vmem %s0, %s182
      $region24: #{basic_block_forward.8} parent=19 // pred_fallthru
        _
    $region20: #{basic_block_forward.8} parent=5 // pred_fallthru
      _
    %p184 = scmp.le.s32.totalorder 1, %s11
    %p185 = scmp.lt.s32.totalorder %s11, 5
    %p186 = pnand %p184, %p185
    %p187 = pneg %p186
    // Predicated region
    $region25: #{basic_block_forward.8} parent=5 // pred_check
      _
    $region26: #{basic_block_forward.8} parent=5 // pred_check_branch
      %189 = sbr.rel (%p186) target = $region28
    $region27: #{basic_block_forward.8} parent=5 // pred_region
      %s190 = ssub.s32 %s11, 1
      %p191 = scmp.lt.s32.totalorder %s20, 1
      %s192 = scalar_select %p191, %s20, 1
      %s193 = smul.addr %s192, 20
      %s194 = smul.addr %s193, 4
      %s195 = scalar_lea.vmem %s0, %s194
      %p196 = pneg %p49
      %p197 = pneg %p46
      %p198 = pneg %p70
      %p199 = pneg %p67
      %p200 = pneg %p98
      %p201 = pneg %p95
      %s202 = smul.u32 4, %s21
      %p203 = scmp.lt.s32.totalorder %s20, 1
      %s204 = scalar_select %p203, %s20, 1
      %p205 = scmp.lt.s32.totalorder %s202, 7
      %s206 = scalar_select %p205, %s202, 7
      %s207 = smul.addr %s204, 8
      %s208 = sadd.s32 %s206, %s207
      %s209 = smul.addr %s208, 4
      %s210 = scalar_lea.vmem %s2, %s209
      %p211 = pneg %p126
      %p212 = pneg %p123
      %p213 = scmp.lt.s32.totalorder %s20, 1
      %s214 = scalar_select %p213, %s20, 1
      %p215 = scmp.lt.s32.totalorder %s21, 1
      %s216 = scalar_select %p215, %s21, 1
      %s217 = smul.addr %s214, 2
      %s218 = sadd.s32 %s216, %s217
      %s219 = scalar_lea.vmem %s3, %s218
      %p220 = pneg %p154
      %p221 = pneg %p151
      %p222 = scmp.lt.s32.totalorder %s20, 1
      %s223 = scalar_select %p222, %s20, 1
      %p224 = scmp.lt.s32.totalorder %s21, 1
      %s225 = scalar_select %p224, %s21, 1
      %s226 = smul.addr %s223, 2
      %s227 = sadd.s32 %s225, %s226
      %s228 = scalar_lea.vmem %s4, %s227
      %p229 = scmp.lt.s32.totalorder %s20, 1
      %s230 = scalar_select %p229, %s20, 1
      %s231 = smul.addr %s230, 20
      %s232 = smul.addr %s231, 4
      %s233 = scalar_lea.vmem %s0, %s232
      %s234 = smul.u32 4, %s21
      %p235 = scmp.lt.s32.totalorder %s20, 1
      %s236 = scalar_select %p235, %s20, 1
      %p237 = scmp.lt.s32.totalorder %s234, 7
      %s238 = scalar_select %p237, %s234, 7
      %s239 = smul.addr %s236, 8
      %s240 = sadd.s32 %s238, %s239
      %s241 = smul.addr %s240, 4
      %s242 = scalar_lea.vmem %s2, %s241
      %s243 = smul.u32 4, %s21
      %p244 = scmp.lt.s32.totalorder %s20, 1
      %s245 = scalar_select %p244, %s20, 1
      %p246 = scmp.lt.s32.totalorder %s21, 1
      %s247 = scalar_select %p246, %s21, 1
      %s248 = smul.addr %s245, 2
      %s249 = sadd.s32 %s247, %s248
      %s250 = scalar_lea.vmem %s3, %s249
      %p251 = scmp.lt.s32.totalorder %s20, 1
      %s252 = scalar_select %p251, %s20, 1
      %p253 = scmp.lt.s32.totalorder %s21, 1
      %s254 = scalar_select %p253, %s21, 1
      %s255 = smul.addr %s252, 2
      %s256 = sadd.s32 %s254, %s255
      %s257 = scalar_lea.vmem %s4, %s256
      %s259 = smul.u32 %s21, 4
      %260 = vst [vmem:[#allocation2] sm:$0xff] 0.0
      %261 = vst [vmem:[#allocation2 + $0x8] sm:$0xff] 0.0
      %262 = vst [vmem:[#allocation2 + $0x10] sm:$0xff] 0.0
      %263 = vst [vmem:[#allocation2 + $0x18] sm:$0xff] 0.0
      %s264 = smul.u32 %s259, 2
      %s265 = smul.addr %s264, 4
      %s266 = scalar_lea.vmem %s233, %s265
      %v267 = vld [vmem:[%s266] sm:$0xf]
      %v268 = vld [vmem:[%s266 + $0x8] sm:$0xf]
      %v269 = vld [vmem:[%s266 + $0x10] sm:$0xf]
      %v270 = vld [vmem:[%s266 + $0x18] sm:$0xf]
      %v271 = vld [vmem:[#allocation2] sm:$0xff]
      %v272 = vld [vmem:[#allocation2 + $0x8] sm:$0xff]
      %v273 = vld [vmem:[#allocation2 + $0x10] sm:$0xff]
      %v274 = vld [vmem:[#allocation2 + $0x18] sm:$0xff]
      %v275 = vld [vmem:[%s1] sm:$0xf]
      %v280 = vunpack.c.l.b16 %v267
      %v281 = vunpack.c.l.b16 %v268
      %v282 = vunpack.c.l.b16 %v269
      %v283 = vunpack.c.l.b16 %v270
      %v284 = vpack.c.b16 %v281, %v280
      %v285 = vpack.c.b16 %v283, %v282
      %vm286 = vcmask 64512
      %v288 = vsel %vm286, %v284, 0
      %v291 = vsel %vm286, %v285, 0
      %vm293 = vcmask 1043456
      %v295 = vsel %vm293, %v275, 0
      %297 = vmatprep.subr.bf16.mxu0 0
      %298 = vmatpush1.bf16.msra.mxu0 %v295
      %299 = vmatprep.subr.bf16.mxu0 0
      %300 = vmatpush1.bf16.msra.mxu0 0
      %301 = vmatprep.subr.bf16.mxu0 0
      %302 = vmatpush1.bf16.msra.mxu0 0
      %303 = vmatprep.subr.bf16.mxu0 0
      %304 = vmatpush1.bf16.msra.mxu0 0
      %305 = vmatprep.subr.bf16.mxu0 0
      %306 = vmatpush1.bf16.msra.mxu0 0
      %307 = vmatprep.subr.bf16.mxu0 0
      %308 = vmatpush1.bf16.msra.mxu0 0
      %309 = vmatprep.subr.bf16.mxu0 0
      %310 = vmatpush1.bf16.msra.mxu0 0
      %311 = vmatprep.subr.bf16.mxu0 0
      %312 = vmatpush1.bf16.msra.mxu0 0
      %313 = vmatprep.subr.bf16.mxu0 0
      %314 = vmatpush1.bf16.msra.mxu0 0
      %315 = vmatprep.subr.bf16.mxu0 0
      %316 = vmatpush1.bf16.msra.mxu0 0
      %317 = vmatprep.subr.bf16.mxu0 0
      %318 = vmatpush1.bf16.msra.mxu0 0
      %319 = vmatprep.subr.bf16.mxu0 0
      %320 = vmatpush1.bf16.msra.mxu0 0
      %321 = vmatprep.subr.bf16.mxu0 0
      %322 = vmatpush1.bf16.msra.mxu0 0
      %323 = vmatprep.subr.bf16.mxu0 0
      %324 = vmatpush1.bf16.msra.mxu0 0
      %325 = vmatprep.subr.bf16.mxu0 0
      %326 = vmatpush1.bf16.msra.mxu0 0
      %327 = vmatprep.subr.bf16.mxu0 0
      %328 = vmatpush1.bf16.msra.mxu0 0
      %329 = vmatprep.mubr.bf16.mxu0 0
      %330 = vmatmul.mubr.bf16.gmra.mrb[0].mxu0 %v288
      %v331 = vpop.f32.mrb[0].mxu0
      %v332 = vadd.f32 0.0, %v331
      %v333 = vpop.f32.mrb[0].mxu0
      %v334 = vpop.f32.mrb[0].mxu0
      %v335 = vadd.f32 0.0, %v334
      %v336 = vpop.f32.mrb[0].mxu0
      %337 = vmatprep.mubr.bf16.mxu0 0
      %338 = vmatmul.mubr.bf16.gmra.mrb[0].mxu0 %v291
      %v339 = vpop.f32.mrb[0].mxu0
      %v340 = vadd.f32 0.0, %v339
      %v341 = vpop.f32.mrb[0].mxu0
      %v342 = vpop.f32.mrb[0].mxu0
      %v343 = vadd.f32 0.0, %v342
      %v344 = vpop.f32.mrb[0].mxu0
      %345 = vdwg.mxu0
      %v346 = vadd.f32 %v271, %v332
      %v347 = vadd.f32 %v272, %v335
      %v348 = vadd.f32 %v273, %v340
      %v349 = vadd.f32 %v274, %v343
      %350 = vst [vmem:[#allocation2] sm:$0xff] %v346
      %351 = vst [vmem:[#allocation2 + $0x8] sm:$0xff] %v347
      %352 = vst [vmem:[#allocation2 + $0x10] sm:$0xff] %v348
      %353 = vst [vmem:[#allocation2 + $0x18] sm:$0xff] %v349
      %v354 = vld [vmem:[%s266] sm:$0xf]
      %v355 = vld [vmem:[%s266 + $0x4] sm:$0x1]
      %v356 = vld [vmem:[%s266 + $0x8] sm:$0xf]
      %v357 = vld [vmem:[%s266 + $0xc] sm:$0x1]
      %v358 = vld [vmem:[%s266 + $0x10] sm:$0xf]
      %v359 = vld [vmem:[%s266 + $0x14] sm:$0x1]
      %v360 = vld [vmem:[%s266 + $0x18] sm:$0xf]
      %v361 = vld [vmem:[%s266 + $0x1c] sm:$0x1]
      %vm362 = vsmask.f32 3328
      %vm363 = vsmask.f32 7440
      %vm364 = vmor %vm362, %vm363
      %v366 = vshrl.u32 %v354, 16
      %v368 = vrot.slane %v366, 4
      %v369 = vshll.u32 %v354, 16
      %v371 = vrot.slane %v369, 5
      %v372 = vor.u32 %v368, %v371
      %v373 = vrot.slane %v372, 4
      %v375 = vshll.u32 %v355, 16
      %v377 = vrot.slane %v375, 5
      %v378 = vsel %vm364, %v373, %v377
      %v380 = vshrl.u32 %v356, 16
      %v382 = vrot.slane %v380, 4
      %v383 = vshll.u32 %v356, 16
      %v385 = vrot.slane %v383, 5
      %v386 = vor.u32 %v382, %v385
      %v387 = vrot.slane %v386, 4
      %v389 = vshll.u32 %v357, 16
      %v391 = vrot.slane %v389, 5
      %v392 = vsel %vm364, %v387, %v391
      %v394 = vshrl.u32 %v358, 16
      %v396 = vrot.slane %v394, 4
      %v397 = vshll.u32 %v358, 16
      %v399 = vrot.slane %v397, 5
      %v400 = vor.u32 %v396, %v399
      %v401 = vrot.slane %v400, 4
      %v403 = vshll.u32 %v359, 16
      %v405 = vrot.slane %v403, 5
      %v406 = vsel %vm364, %v401, %v405
      %v408 = vshrl.u32 %v360, 16
      %v410 = vrot.slane %v408, 4
      %v411 = vshll.u32 %v360, 16
      %v413 = vrot.slane %v411, 5
      %v414 = vor.u32 %v410, %v413
      %v415 = vrot.slane %v414, 4
      %v417 = vshll.u32 %v361, 16
      %v419 = vrot.slane %v417, 5
      %v420 = vsel %vm364, %v415, %v419
      %v421 = vld [vmem:[#allocation2] sm:$0xff]
      %v422 = vld [vmem:[#allocation2 + $0x8] sm:$0xff]
      %v423 = vld [vmem:[#allocation2 + $0x10] sm:$0xff]
      %v424 = vld [vmem:[#allocation2 + $0x18] sm:$0xff]
      %s425 = scalar_lea.vmem %s1, 4
      %v426 = vld [vmem:[%s425] sm:$0xf]
      %v427 = vunpack.c.l.b16 %v378
      %v428 = vunpack.c.l.b16 %v392
      %v429 = vunpack.c.l.b16 %v406
      %v430 = vunpack.c.l.b16 %v420
      %v431 = vpack.c.b16 %v428, %v427
      %v432 = vpack.c.b16 %v430, %v429
      %v434 = vsel %vm286, %v431, 0
      %v437 = vsel %vm286, %v432, 0
      %v440 = vsel %vm293, %v426, 0
      %442 = vmatprep.subr.bf16.mxu0 0
      %443 = vmatpush1.bf16.msra.mxu0 %v440
      %444 = vmatprep.subr.bf16.mxu0 0
      %445 = vmatpush1.bf16.msra.mxu0 0
      %446 = vmatprep.subr.bf16.mxu0 0
      %447 = vmatpush1.bf16.msra.mxu0 0
      %448 = vmatprep.subr.bf16.mxu0 0
      %449 = vmatpush1.bf16.msra.mxu0 0
      %450 = vmatprep.subr.bf16.mxu0 0
      %451 = vmatpush1.bf16.msra.mxu0 0
      %452 = vmatprep.subr.bf16.mxu0 0
      %453 = vmatpush1.bf16.msra.mxu0 0
      %454 = vmatprep.subr.bf16.mxu0 0
      %455 = vmatpush1.bf16.msra.mxu0 0
      %456 = vmatprep.subr.bf16.mxu0 0
      %457 = vmatpush1.bf16.msra.mxu0 0
      %458 = vmatprep.subr.bf16.mxu0 0
      %459 = vmatpush1.bf16.msra.mxu0 0
      %460 = vmatprep.subr.bf16.mxu0 0
      %461 = vmatpush1.bf16.msra.mxu0 0
      %462 = vmatprep.subr.bf16.mxu0 0
      %463 = vmatpush1.bf16.msra.mxu0 0
      %464 = vmatprep.subr.bf16.mxu0 0
      %465 = vmatpush1.bf16.msra.mxu0 0
      %466 = vmatprep.subr.bf16.mxu0 0
      %467 = vmatpush1.bf16.msra.mxu0 0
      %468 = vmatprep.subr.bf16.mxu0 0
      %469 = vmatpush1.bf16.msra.mxu0 0
      %470 = vmatprep.subr.bf16.mxu0 0
      %471 = vmatpush1.bf16.msra.mxu0 0
      %472 = vmatprep.subr.bf16.mxu0 0
      %473 = vmatpush1.bf16.msra.mxu0 0
      %474 = vmatprep.mubr.bf16.mxu0 0
      %475 = vmatmul.mubr.bf16.gmra.mrb[0].mxu0 %v434
      %v476 = vpop.f32.mrb[0].mxu0
      %v477 = vadd.f32 0.0, %v476
      %v478 = vpop.f32.mrb[0].mxu0
      %v479 = vpop.f32.mrb[0].mxu0
      %v480 = vadd.f32 0.0, %v479
      %v481 = vpop.f32.mrb[0].mxu0
      %482 = vmatprep.mubr.bf16.mxu0 0
      %483 = vmatmul.mubr.bf16.gmra.mrb[0].mxu0 %v437
      %v484 = vpop.f32.mrb[0].mxu0
      %v485 = vadd.f32 0.0, %v484
      %v486 = vpop.f32.mrb[0].mxu0
      %v487 = vpop.f32.mrb[0].mxu0
      %v488 = vadd.f32 0.0, %v487
      %v489 = vpop.f32.mrb[0].mxu0
      %490 = vdwg.mxu0
      %v491 = vadd.f32 %v421, %v477
      %v492 = vadd.f32 %v422, %v480
      %v493 = vadd.f32 %v423, %v485
      %v494 = vadd.f32 %v424, %v488
      %495 = vst [vmem:[#allocation2] sm:$0xff] %v491
      %496 = vst [vmem:[#allocation2 + $0x8] sm:$0xff] %v492
      %497 = vst [vmem:[#allocation2 + $0x10] sm:$0xff] %v493
      %498 = vst [vmem:[#allocation2 + $0x18] sm:$0xff] %v494
      %v499 = vld [vmem:[%s266] sm:$0xe]
      %v500 = vld [vmem:[%s266 + $0x4] sm:$0x1]
      %v501 = vld [vmem:[%s266 + $0x8] sm:$0xe]
      %v502 = vld [vmem:[%s266 + $0xc] sm:$0x1]
      %v503 = vld [vmem:[%s266 + $0x10] sm:$0xe]
      %v504 = vld [vmem:[%s266 + $0x14] sm:$0x1]
      %v505 = vld [vmem:[%s266 + $0x18] sm:$0xe]
      %v506 = vld [vmem:[%s266 + $0x1c] sm:$0x1]
      %vm515 = vcmask 1042432
      %vm516 = vcmask 1046532
      %vm517 = vmor %vm515, %vm516
      %v518 = vrot.slane %v499, 5
      %v519 = vrot.slane %v518, 4
      %v520 = vrot.slane %v500, 5
      %v521 = vsel %vm517, %v519, %v520
      %v522 = vrot.slane %v501, 5
      %v523 = vrot.slane %v522, 4
      %v524 = vrot.slane %v502, 5
      %v525 = vsel %vm517, %v523, %v524
      %v526 = vrot.slane %v503, 5
      %v527 = vrot.slane %v526, 4
      %v528 = vrot.slane %v504, 5
      %v529 = vsel %vm517, %v527, %v528
      %v530 = vrot.slane %v505, 5
      %v531 = vrot.slane %v530, 4
      %v532 = vrot.slane %v506, 5
      %v533 = vsel %vm517, %v531, %v532
      %v534 = vld [vmem:[#allocation2] sm:$0xff]
      %v535 = vld [vmem:[#allocation2 + $0x8] sm:$0xff]
      %v536 = vld [vmem:[#allocation2 + $0x10] sm:$0xff]
      %v537 = vld [vmem:[#allocation2 + $0x18] sm:$0xff]
      %s538 = scalar_lea.vmem %s1, 8
      %v539 = vld [vmem:[%s538] sm:$0xf]
      %v540 = vunpack.c.l.b16 %v521
      %v541 = vunpack.c.l.b16 %v525
      %v542 = vunpack.c.l.b16 %v529
      %v543 = vunpack.c.l.b16 %v533
      %v544 = vpack.c.b16 %v541, %v540
      %v545 = vpack.c.b16 %v543, %v542
      %v547 = vsel %vm286, %v544, 0
      %v550 = vsel %vm286, %v545, 0
      %v553 = vsel %vm293, %v539, 0
      %555 = vmatprep.subr.bf16.mxu0 0
      %556 = vmatpush1.bf16.msra.mxu0 %v553
      %557 = vmatprep.subr.bf16.mxu0 0
      %558 = vmatpush1.bf16.msra.mxu0 0
      %559 = vmatprep.subr.bf16.mxu0 0
      %560 = vmatpush1.bf16.msra.mxu0 0
      %561 = vmatprep.subr.bf16.mxu0 0
      %562 = vmatpush1.bf16.msra.mxu0 0
      %563 = vmatprep.subr.bf16.mxu0 0
      %564 = vmatpush1.bf16.msra.mxu0 0
      %565 = vmatprep.subr.bf16.mxu0 0
      %566 = vmatpush1.bf16.msra.mxu0 0
      %567 = vmatprep.subr.bf16.mxu0 0
      %568 = vmatpush1.bf16.msra.mxu0 0
      %569 = vmatprep.subr.bf16.mxu0 0
      %570 = vmatpush1.bf16.msra.mxu0 0
      %571 = vmatprep.subr.bf16.mxu0 0
      %572 = vmatpush1.bf16.msra.mxu0 0
      %573 = vmatprep.subr.bf16.mxu0 0
      %574 = vmatpush1.bf16.msra.mxu0 0
      %575 = vmatprep.subr.bf16.mxu0 0
      %576 = vmatpush1.bf16.msra.mxu0 0
      %577 = vmatprep.subr.bf16.mxu0 0
      %578 = vmatpush1.bf16.msra.mxu0 0
      %579 = vmatprep.subr.bf16.mxu0 0
      %580 = vmatpush1.bf16.msra.mxu0 0
      %581 = vmatprep.subr.bf16.mxu0 0
      %582 = vmatpush1.bf16.msra.mxu0 0
      %583 = vmatprep.subr.bf16.mxu0 0
      %584 = vmatpush1.bf16.msra.mxu0 0
      %585 = vmatprep.subr.bf16.mxu0 0
      %586 = vmatpush1.bf16.msra.mxu0 0
      %587 = vmatprep.mubr.bf16.mxu0 0
      %588 = vmatmul.mubr.bf16.gmra.mrb[0].mxu0 %v547
      %v589 = vpop.f32.mrb[0].mxu0
      %v590 = vadd.f32 0.0, %v589
      %v591 = vpop.f32.mrb[0].mxu0
      %v592 = vpop.f32.mrb[0].mxu0
      %v593 = vadd.f32 0.0, %v592
      %v594 = vpop.f32.mrb[0].mxu0
      %595 = vmatprep.mubr.bf16.mxu0 0
      %596 = vmatmul.mubr.bf16.gmra.mrb[0].mxu0 %v550
      %v597 = vpop.f32.mrb[0].mxu0
      %v598 = vadd.f32 0.0, %v597
      %v599 = vpop.f32.mrb[0].mxu0
      %v600 = vpop.f32.mrb[0].mxu0
      %v601 = vadd.f32 0.0, %v600
      %v602 = vpop.f32.mrb[0].mxu0
      %603 = vdwg.mxu0
      %v604 = vadd.f32 %v534, %v590
      %v605 = vadd.f32 %v535, %v593
      %v606 = vadd.f32 %v536, %v598
      %v607 = vadd.f32 %v537, %v601
      %608 = vst [vmem:[#allocation2] sm:$0xff] %v604
      %609 = vst [vmem:[#allocation2 + $0x8] sm:$0xff] %v605
      %610 = vst [vmem:[#allocation2 + $0x10] sm:$0xff] %v606
      %611 = vst [vmem:[#allocation2 + $0x18] sm:$0xff] %v607
      %s612 = sadd.s32 %s259, 1
      %s613 = smul.u32 %s612, 2
      %s614 = smul.addr %s613, 4
      %s615 = scalar_lea.vmem %s233, %s614
      %v616 = vld [vmem:[%s615] sm:$0xf]
      %v617 = vld [vmem:[%s615 + $0x8] sm:$0xf]
      %v618 = vld [vmem:[%s615 + $0x10] sm:$0xf]
      %v619 = vld [vmem:[%s615 + $0x18] sm:$0xf]
      %v620 = vld [vmem:[#allocation2] sm:$0xff]
      %v621 = vld [vmem:[#allocation2 + $0x8] sm:$0xff]
      %v622 = vld [vmem:[#allocation2 + $0x10] sm:$0xff]
      %v623 = vld [vmem:[#allocation2 + $0x18] sm:$0xff]
      %s624 = scalar_lea.vmem %s1, 12
      %v625 = vld [vmem:[%s624] sm:$0xf]
      %v630 = vunpack.c.l.b16 %v616
      %v631 = vunpack.c.l.b16 %v617
      %v632 = vunpack.c.l.b16 %v618
      %v633 = vunpack.c.l.b16 %v619
      %v634 = vpack.c.b16 %v631, %v630
      %v635 = vpack.c.b16 %v633, %v632
      %v637 = vsel %vm286, %v634, 0
      %v640 = vsel %vm286, %v635, 0
      %v643 = vsel %vm293, %v625, 0
      %645 = vmatprep.subr.bf16.mxu0 0
      %646 = vmatpush1.bf16.msra.mxu0 %v643
      %647 = vmatprep.subr.bf16.mxu0 0
      %648 = vmatpush1.bf16.msra.mxu0 0
      %649 = vmatprep.subr.bf16.mxu0 0
      %650 = vmatpush1.bf16.msra.mxu0 0
      %651 = vmatprep.subr.bf16.mxu0 0
      %652 = vmatpush1.bf16.msra.mxu0 0
      %653 = vmatprep.subr.bf16.mxu0 0
      %654 = vmatpush1.bf16.msra.mxu0 0
      %655 = vmatprep.subr.bf16.mxu0 0
      %656 = vmatpush1.bf16.msra.mxu0 0
      %657 = vmatprep.subr.bf16.mxu0 0
      %658 = vmatpush1.bf16.msra.mxu0 0
      %659 = vmatprep.subr.bf16.mxu0 0
      %660 = vmatpush1.bf16.msra.mxu0 0
      %661 = vmatprep.subr.bf16.mxu0 0
      %662 = vmatpush1.bf16.msra.mxu0 0
      %663 = vmatprep.subr.bf16.mxu0 0
      %664 = vmatpush1.bf16.msra.mxu0 0
      %665 = vmatprep.subr.bf16.mxu0 0
      %666 = vmatpush1.bf16.msra.mxu0 0
      %667 = vmatprep.subr.bf16.mxu0 0
      %668 = vmatpush1.bf16.msra.mxu0 0
      %669 = vmatprep.subr.bf16.mxu0 0
      %670 = vmatpush1.bf16.msra.mxu0 0
      %671 = vmatprep.subr.bf16.mxu0 0
      %672 = vmatpush1.bf16.msra.mxu0 0
      %673 = vmatprep.subr.bf16.mxu0 0
      %674 = vmatpush1.bf16.msra.mxu0 0
      %675 = vmatprep.subr.bf16.mxu0 0
      %676 = vmatpush1.bf16.msra.mxu0 0
      %677 = vmatprep.mubr.bf16.mxu0 0
      %678 = vmatmul.mubr.bf16.gmra.mrb[0].mxu0 %v637
      %v679 = vpop.f32.mrb[0].mxu0
      %v680 = vadd.f32 0.0, %v679
      %v681 = vpop.f32.mrb[0].mxu0
      %v682 = vpop.f32.mrb[0].mxu0
      %v683 = vadd.f32 0.0, %v682
      %v684 = vpop.f32.mrb[0].mxu0
      %685 = vmatprep.mubr.bf16.mxu0 0
      %686 = vmatmul.mubr.bf16.gmra.mrb[0].mxu0 %v640
      %v687 = vpop.f32.mrb[0].mxu0
      %v688 = vadd.f32 0.0, %v687
      %v689 = vpop.f32.mrb[0].mxu0
      %v690 = vpop.f32.mrb[0].mxu0
      %v691 = vadd.f32 0.0, %v690
      %v692 = vpop.f32.mrb[0].mxu0
      %693 = vdwg.mxu0
      %v694 = vadd.f32 %v620, %v680
      %v695 = vadd.f32 %v621, %v683
      %v696 = vadd.f32 %v622, %v688
      %v697 = vadd.f32 %v623, %v691
      %698 = vst [vmem:[#allocation2] sm:$0xff] %v694
      %699 = vst [vmem:[#allocation2 + $0x8] sm:$0xff] %v695
      %700 = vst [vmem:[#allocation2 + $0x10] sm:$0xff] %v696
      %701 = vst [vmem:[#allocation2 + $0x18] sm:$0xff] %v697
      %v702 = vld [vmem:[%s615] sm:$0xf]
      %v703 = vld [vmem:[%s615 + $0x4] sm:$0x1]
      %v704 = vld [vmem:[%s615 + $0x8] sm:$0xf]
      %v705 = vld [vmem:[%s615 + $0xc] sm:$0x1]
      %v706 = vld [vmem:[%s615 + $0x10] sm:$0xf]
      %v707 = vld [vmem:[%s615 + $0x14] sm:$0x1]
      %v708 = vld [vmem:[%s615 + $0x18] sm:$0xf]
      %v709 = vld [vmem:[%s615 + $0x1c] sm:$0x1]
      %v711 = vshrl.u32 %v702, 16
      %v713 = vrot.slane %v711, 4
      %v714 = vshll.u32 %v702, 16
      %v716 = vrot.slane %v714, 5
      %v717 = vor.u32 %v713, %v716
      %v718 = vrot.slane %v717, 4
      %v720 = vshll.u32 %v703, 16
      %v722 = vrot.slane %v720, 5
      %v723 = vsel %vm364, %v718, %v722
      %v725 = vshrl.u32 %v704, 16
      %v727 = vrot.slane %v725, 4
      %v728 = vshll.u32 %v704, 16
      %v730 = vrot.slane %v728, 5
      %v731 = vor.u32 %v727, %v730
      %v732 = vrot.slane %v731, 4
      %v734 = vshll.u32 %v705, 16
      %v736 = vrot.slane %v734, 5
      %v737 = vsel %vm364, %v732, %v736
      %v739 = vshrl.u32 %v706, 16
      %v741 = vrot.slane %v739, 4
      %v742 = vshll.u32 %v706, 16
      %v744 = vrot.slane %v742, 5
      %v745 = vor.u32 %v741, %v744
      %v746 = vrot.slane %v745, 4
      %v748 = vshll.u32 %v707, 16
      %v750 = vrot.slane %v748, 5
      %v751 = vsel %vm364, %v746, %v750
      %v753 = vshrl.u32 %v708, 16
      %v755 = vrot.slane %v753, 4
      %v756 = vshll.u32 %v708, 16
      %v758 = vrot.slane %v756, 5
      %v759 = vor.u32 %v755, %v758
      %v760 = vrot.slane %v759, 4
      %v762 = vshll.u32 %v709, 16
      %v764 = vrot.slane %v762, 5
      %v765 = vsel %vm364, %v760, %v764
      %v766 = vld [vmem:[#allocation2] sm:$0xff]
      %v767 = vld [vmem:[#allocation2 + $0x8] sm:$0xff]
      %v768 = vld [vmem:[#allocation2 + $0x10] sm:$0xff]
      %v769 = vld [vmem:[#allocation2 + $0x18] sm:$0xff]
      %s770 = scalar_lea.vmem %s1, 16
      %v771 = vld [vmem:[%s770] sm:$0xf]
      %v772 = vunpack.c.l.b16 %v723
      %v773 = vunpack.c.l.b16 %v737
      %v774 = vunpack.c.l.b16 %v751
      %v775 = vunpack.c.l.b16 %v765
      %v776 = vpack.c.b16 %v773, %v772
      %v777 = vpack.c.b16 %v775, %v774
      %v779 = vsel %vm286, %v776, 0
      %v782 = vsel %vm286, %v777, 0
      %v785 = vsel %vm293, %v771, 0
      %787 = vmatprep.subr.bf16.mxu0 0
      %788 = vmatpush1.bf16.msra.mxu0 %v785
      %789 = vmatprep.subr.bf16.mxu0 0
      %790 = vmatpush1.bf16.msra.mxu0 0
      %791 = vmatprep.subr.bf16.mxu0 0
      %792 = vmatpush1.bf16.msra.mxu0 0
      %793 = vmatprep.subr.bf16.mxu0 0
      %794 = vmatpush1.bf16.msra.mxu0 0
      %795 = vmatprep.subr.bf16.mxu0 0
      %796 = vmatpush1.bf16.msra.mxu0 0
      %797 = vmatprep.subr.bf16.mxu0 0
      %798 = vmatpush1.bf16.msra.mxu0 0
      %799 = vmatprep.subr.bf16.mxu0 0
      %800 = vmatpush1.bf16.msra.mxu0 0
      %801 = vmatprep.subr.bf16.mxu0 0
      %802 = vmatpush1.bf16.msra.mxu0 0
      %803 = vmatprep.subr.bf16.mxu0 0
      %804 = vmatpush1.bf16.msra.mxu0 0
      %805 = vmatprep.subr.bf16.mxu0 0
      %806 = vmatpush1.bf16.msra.mxu0 0
      %807 = vmatprep.subr.bf16.mxu0 0
      %808 = vmatpush1.bf16.msra.mxu0 0
      %809 = vmatprep.subr.bf16.mxu0 0
      %810 = vmatpush1.bf16.msra.mxu0 0
      %811 = vmatprep.subr.bf16.mxu0 0
      %812 = vmatpush1.bf16.msra.mxu0 0
      %813 = vmatprep.subr.bf16.mxu0 0
      %814 = vmatpush1.bf16.msra.mxu0 0
      %815 = vmatprep.subr.bf16.mxu0 0
      %816 = vmatpush1.bf16.msra.mxu0 0
      %817 = vmatprep.subr.bf16.mxu0 0
      %818 = vmatpush1.bf16.msra.mxu0 0
      %819 = vmatprep.mubr.bf16.mxu0 0
      %820 = vmatmul.mubr.bf16.gmra.mrb[0].mxu0 %v779
      %v821 = vpop.f32.mrb[0].mxu0
      %v822 = vadd.f32 0.0, %v821
      %v823 = vpop.f32.mrb[0].mxu0
      %v824 = vpop.f32.mrb[0].mxu0
      %v825 = vadd.f32 0.0, %v824
      %v826 = vpop.f32.mrb[0].mxu0
      %827 = vmatprep.mubr.bf16.mxu0 0
      %828 = vmatmul.mubr.bf16.gmra.mrb[0].mxu0 %v782
      %v829 = vpop.f32.mrb[0].mxu0
      %v830 = vadd.f32 0.0, %v829
      %v831 = vpop.f32.mrb[0].mxu0
      %v832 = vpop.f32.mrb[0].mxu0
      %v833 = vadd.f32 0.0, %v832
      %v834 = vpop.f32.mrb[0].mxu0
      %835 = vdwg.mxu0
      %v836 = vadd.f32 %v766, %v822
      %v837 = vadd.f32 %v767, %v825
      %v838 = vadd.f32 %v768, %v830
      %v839 = vadd.f32 %v769, %v833
      %840 = vst [vmem:[#allocation2] sm:$0xff] %v836
      %841 = vst [vmem:[#allocation2 + $0x8] sm:$0xff] %v837
      %842 = vst [vmem:[#allocation2 + $0x10] sm:$0xff] %v838
      %843 = vst [vmem:[#allocation2 + $0x18] sm:$0xff] %v839
      %v844 = vld [vmem:[%s615] sm:$0xe]
      %v845 = vld [vmem:[%s615 + $0x4] sm:$0x1]
      %v846 = vld [vmem:[%s615 + $0x8] sm:$0xe]
      %v847 = vld [vmem:[%s615 + $0xc] sm:$0x1]
      %v848 = vld [vmem:[%s615 + $0x10] sm:$0xe]
      %v849 = vld [vmem:[%s615 + $0x14] sm:$0x1]
      %v850 = vld [vmem:[%s615 + $0x18] sm:$0xe]
      %v851 = vld [vmem:[%s615 + $0x1c] sm:$0x1]
      %v860 = vrot.slane %v844, 5
      %v861 = vrot.slane %v860, 4
      %v862 = vrot.slane %v845, 5
      %v863 = vsel %vm517, %v861, %v862
      %v864 = vrot.slane %v846, 5
      %v865 = vrot.slane %v864, 4
      %v866 = vrot.slane %v847, 5
      %v867 = vsel %vm517, %v865, %v866
      %v868 = vrot.slane %v848, 5
      %v869 = vrot.slane %v868, 4
      %v870 = vrot.slane %v849, 5
      %v871 = vsel %vm517, %v869, %v870
      %v872 = vrot.slane %v850, 5
      %v873 = vrot.slane %v872, 4
      %v874 = vrot.slane %v851, 5
      %v875 = vsel %vm517, %v873, %v874
      %v876 = vld [vmem:[#allocation2] sm:$0xff]
      %v877 = vld [vmem:[#allocation2 + $0x8] sm:$0xff]
      %v878 = vld [vmem:[#allocation2 + $0x10] sm:$0xff]
      %v879 = vld [vmem:[#allocation2 + $0x18] sm:$0xff]
      %s880 = scalar_lea.vmem %s1, 20
      %v881 = vld [vmem:[%s880] sm:$0xf]
      %v882 = vunpack.c.l.b16 %v863
      %v883 = vunpack.c.l.b16 %v867
      %v884 = vunpack.c.l.b16 %v871
      %v885 = vunpack.c.l.b16 %v875
      %v886 = vpack.c.b16 %v883, %v882
      %v887 = vpack.c.b16 %v885, %v884
      %v889 = vsel %vm286, %v886, 0
      %v892 = vsel %vm286, %v887, 0
      %v895 = vsel %vm293, %v881, 0
      %897 = vmatprep.subr.bf16.mxu0 0
      %898 = vmatpush1.bf16.msra.mxu0 %v895
      %899 = vmatprep.subr.bf16.mxu0 0
      %900 = vmatpush1.bf16.msra.mxu0 0
      %901 = vmatprep.subr.bf16.mxu0 0
      %902 = vmatpush1.bf16.msra.mxu0 0
      %903 = vmatprep.subr.bf16.mxu0 0
      %904 = vmatpush1.bf16.msra.mxu0 0
      %905 = vmatprep.subr.bf16.mxu0 0
      %906 = vmatpush1.bf16.msra.mxu0 0
      %907 = vmatprep.subr.bf16.mxu0 0
      %908 = vmatpush1.bf16.msra.mxu0 0
      %909 = vmatprep.subr.bf16.mxu0 0
      %910 = vmatpush1.bf16.msra.mxu0 0
      %911 = vmatprep.subr.bf16.mxu0 0
      %912 = vmatpush1.bf16.msra.mxu0 0
      %913 = vmatprep.subr.bf16.mxu0 0
      %914 = vmatpush1.bf16.msra.mxu0 0
      %915 = vmatprep.subr.bf16.mxu0 0
      %916 = vmatpush1.bf16.msra.mxu0 0
      %917 = vmatprep.subr.bf16.mxu0 0
      %918 = vmatpush1.bf16.msra.mxu0 0
      %919 = vmatprep.subr.bf16.mxu0 0
      %920 = vmatpush1.bf16.msra.mxu0 0
      %921 = vmatprep.subr.bf16.mxu0 0
      %922 = vmatpush1.bf16.msra.mxu0 0
      %923 = vmatprep.subr.bf16.mxu0 0
      %924 = vmatpush1.bf16.msra.mxu0 0
      %925 = vmatprep.subr.bf16.mxu0 0
      %926 = vmatpush1.bf16.msra.mxu0 0
      %927 = vmatprep.subr.bf16.mxu0 0
      %928 = vmatpush1.bf16.msra.mxu0 0
      %929 = vmatprep.mubr.bf16.mxu0 0
      %930 = vmatmul.mubr.bf16.gmra.mrb[0].mxu0 %v889
      %v931 = vpop.f32.mrb[0].mxu0
      %v932 = vadd.f32 0.0, %v931
      %v933 = vpop.f32.mrb[0].mxu0
      %v934 = vpop.f32.mrb[0].mxu0
      %v935 = vadd.f32 0.0, %v934
      %v936 = vpop.f32.mrb[0].mxu0
      %937 = vmatprep.mubr.bf16.mxu0 0
      %938 = vmatmul.mubr.bf16.gmra.mrb[0].mxu0 %v892
      %v939 = vpop.f32.mrb[0].mxu0
      %v940 = vadd.f32 0.0, %v939
      %v941 = vpop.f32.mrb[0].mxu0
      %v942 = vpop.f32.mrb[0].mxu0
      %v943 = vadd.f32 0.0, %v942
      %v944 = vpop.f32.mrb[0].mxu0
      %945 = vdwg.mxu0
      %v946 = vadd.f32 %v876, %v932
      %v947 = vadd.f32 %v877, %v935
      %v948 = vadd.f32 %v878, %v940
      %v949 = vadd.f32 %v879, %v943
      %950 = vst [vmem:[#allocation2] sm:$0xff] %v946
      %951 = vst [vmem:[#allocation2 + $0x8] sm:$0xff] %v947
      %952 = vst [vmem:[#allocation2 + $0x10] sm:$0xff] %v948
      %953 = vst [vmem:[#allocation2 + $0x18] sm:$0xff] %v949
      %s954 = sadd.s32 %s259, 2
      %s955 = smul.u32 %s954, 2
      %s956 = smul.addr %s955, 4
      %s957 = scalar_lea.vmem %s233, %s956
      %v958 = vld [vmem:[%s957] sm:$0xf]
      %v959 = vld [vmem:[%s957 + $0x8] sm:$0xf]
      %v960 = vld [vmem:[%s957 + $0x10] sm:$0xf]
      %v961 = vld [vmem:[%s957 + $0x18] sm:$0xf]
      %v962 = vld [vmem:[#allocation2] sm:$0xff]
      %v963 = vld [vmem:[#allocation2 + $0x8] sm:$0xff]
      %v964 = vld [vmem:[#allocation2 + $0x10] sm:$0xff]
      %v965 = vld [vmem:[#allocation2 + $0x18] sm:$0xff]
      %s966 = scalar_lea.vmem %s1, 24
      %v967 = vld [vmem:[%s966] sm:$0xf]
      %v972 = vunpack.c.l.b16 %v958
      %v973 = vunpack.c.l.b16 %v959
      %v974 = vunpack.c.l.b16 %v960
      %v975 = vunpack.c.l.b16 %v961
      %v976 = vpack.c.b16 %v973, %v972
      %v977 = vpack.c.b16 %v975, %v974
      %v979 = vsel %vm286, %v976, 0
      %v982 = vsel %vm286, %v977, 0
      %v985 = vsel %vm293, %v967, 0
      %987 = vmatprep.subr.bf16.mxu0 0
      %988 = vmatpush1.bf16.msra.mxu0 %v985
      %989 = vmatprep.subr.bf16.mxu0 0
      %990 = vmatpush1.bf16.msra.mxu0 0
      %991 = vmatprep.subr.bf16.mxu0 0
      %992 = vmatpush1.bf16.msra.mxu0 0
      %993 = vmatprep.subr.bf16.mxu0 0
      %994 = vmatpush1.bf16.msra.mxu0 0
      %995 = vmatprep.subr.bf16.mxu0 0
      %996 = vmatpush1.bf16.msra.mxu0 0
      %997 = vmatprep.subr.bf16.mxu0 0
      %998 = vmatpush1.bf16.msra.mxu0 0
      %999 = vmatprep.subr.bf16.mxu0 0
      %1000 = vmatpush1.bf16.msra.mxu0 0
      %1001 = vmatprep.subr.bf16.mxu0 0
      %1002 = vmatpush1.bf16.msra.mxu0 0
      %1003 = vmatprep.subr.bf16.mxu0 0
      %1004 = vmatpush1.bf16.msra.mxu0 0
      %1005 = vmatprep.subr.bf16.mxu0 0
      %1006 = vmatpush1.bf16.msra.mxu0 0
      %1007 = vmatprep.subr.bf16.mxu0 0
      %1008 = vmatpush1.bf16.msra.mxu0 0
      %1009 = vmatprep.subr.bf16.mxu0 0
      %1010 = vmatpush1.bf16.msra.mxu0 0
      %1011 = vmatprep.subr.bf16.mxu0 0
      %1012 = vmatpush1.bf16.msra.mxu0 0
      %1013 = vmatprep.subr.bf16.mxu0 0
      %1014 = vmatpush1.bf16.msra.mxu0 0
      %1015 = vmatprep.subr.bf16.mxu0 0
      %1016 = vmatpush1.bf16.msra.mxu0 0
      %1017 = vmatprep.subr.bf16.mxu0 0
      %1018 = vmatpush1.bf16.msra.mxu0 0
      %1019 = vmatprep.mubr.bf16.mxu0 0
      %1020 = vmatmul.mubr.bf16.gmra.mrb[0].mxu0 %v979
      %v1021 = vpop.f32.mrb[0].mxu0
      %v1022 = vadd.f32 0.0, %v1021
      %v1023 = vpop.f32.mrb[0].mxu0
      %v1024 = vpop.f32.mrb[0].mxu0
      %v1025 = vadd.f32 0.0, %v1024
      %v1026 = vpop.f32.mrb[0].mxu0
      %1027 = vmatprep.mubr.bf16.mxu0 0
      %1028 = vmatmul.mubr.bf16.gmra.mrb[0].mxu0 %v982
      %v1029 = vpop.f32.mrb[0].mxu0
      %v1030 = vadd.f32 0.0, %v1029
      %v1031 = vpop.f32.mrb[0].mxu0
      %v1032 = vpop.f32.mrb[0].mxu0
      %v1033 = vadd.f32 0.0, %v1032
      %v1034 = vpop.f32.mrb[0].mxu0
      %1035 = vdwg.mxu0
      %v1036 = vadd.f32 %v962, %v1022
      %v1037 = vadd.f32 %v963, %v1025
      %v1038 = vadd.f32 %v964, %v1030
      %v1039 = vadd.f32 %v965, %v1033
      %1040 = vst [vmem:[#allocation2] sm:$0xff] %v1036
      %1041 = vst [vmem:[#allocation2 + $0x8] sm:$0xff] %v1037
      %1042 = vst [vmem:[#allocation2 + $0x10] sm:$0xff] %v1038
      %1043 = vst [vmem:[#allocation2 + $0x18] sm:$0xff] %v1039
      %v1044 = vld [vmem:[%s957] sm:$0xf]
      %v1045 = vld [vmem:[%s957 + $0x4] sm:$0x1]
      %v1046 = vld [vmem:[%s957 + $0x8] sm:$0xf]
      %v1047 = vld [vmem:[%s957 + $0xc] sm:$0x1]
      %v1048 = vld [vmem:[%s957 + $0x10] sm:$0xf]
      %v1049 = vld [vmem:[%s957 + $0x14] sm:$0x1]
      %v1050 = vld [vmem:[%s957 + $0x18] sm:$0xf]
      %v1051 = vld [vmem:[%s957 + $0x1c] sm:$0x1]
      %v1053 = vshrl.u32 %v1044, 16
      %v1055 = vrot.slane %v1053, 4
      %v1056 = vshll.u32 %v1044, 16
      %v1058 = vrot.slane %v1056, 5
      %v1059 = vor.u32 %v1055, %v1058
      %v1060 = vrot.slane %v1059, 4
      %v1062 = vshll.u32 %v1045, 16
      %v1064 = vrot.slane %v1062, 5
      %v1065 = vsel %vm364, %v1060, %v1064
      %v1067 = vshrl.u32 %v1046, 16
      %v1069 = vrot.slane %v1067, 4
      %v1070 = vshll.u32 %v1046, 16
      %v1072 = vrot.slane %v1070, 5
      %v1073 = vor.u32 %v1069, %v1072
      %v1074 = vrot.slane %v1073, 4
      %v1076 = vshll.u32 %v1047, 16
      %v1078 = vrot.slane %v1076, 5
      %v1079 = vsel %vm364, %v1074, %v1078
      %v1081 = vshrl.u32 %v1048, 16
      %v1083 = vrot.slane %v1081, 4
      %v1084 = vshll.u32 %v1048, 16
      %v1086 = vrot.slane %v1084, 5
      %v1087 = vor.u32 %v1083, %v1086
      %v1088 = vrot.slane %v1087, 4
      %v1090 = vshll.u32 %v1049, 16
      %v1092 = vrot.slane %v1090, 5
      %v1093 = vsel %vm364, %v1088, %v1092
      %v1095 = vshrl.u32 %v1050, 16
      %v1097 = vrot.slane %v1095, 4
      %v1098 = vshll.u32 %v1050, 16
      %v1100 = vrot.slane %v1098, 5
      %v1101 = vor.u32 %v1097, %v1100
      %v1102 = vrot.slane %v1101, 4
      %v1104 = vshll.u32 %v1051, 16
      %v1106 = vrot.slane %v1104, 5
      %v1107 = vsel %vm364, %v1102, %v1106
      %v1108 = vld [vmem:[#allocation2] sm:$0xff]
      %v1109 = vld [vmem:[#allocation2 + $0x8] sm:$0xff]
      %v1110 = vld [vmem:[#allocation2 + $0x10] sm:$0xff]
      %v1111 = vld [vmem:[#allocation2 + $0x18] sm:$0xff]
      %s1112 = scalar_lea.vmem %s1, 28
      %v1113 = vld [vmem:[%s1112] sm:$0xf]
      %v1114 = vunpack.c.l.b16 %v1065
      %v1115 = vunpack.c.l.b16 %v1079
      %v1116 = vunpack.c.l.b16 %v1093
      %v1117 = vunpack.c.l.b16 %v1107
      %v1118 = vpack.c.b16 %v1115, %v1114
      %v1119 = vpack.c.b16 %v1117, %v1116
      %v1121 = vsel %vm286, %v1118, 0
      %v1124 = vsel %vm286, %v1119, 0
      %v1127 = vsel %vm293, %v1113, 0
      %1129 = vmatprep.subr.bf16.mxu0 0
      %1130 = vmatpush1.bf16.msra.mxu0 %v1127
      %1131 = vmatprep.subr.bf16.mxu0 0
      %1132 = vmatpush1.bf16.msra.mxu0 0
      %1133 = vmatprep.subr.bf16.mxu0 0
      %1134 = vmatpush1.bf16.msra.mxu0 0
      %1135 = vmatprep.subr.bf16.mxu0 0
      %1136 = vmatpush1.bf16.msra.mxu0 0
      %1137 = vmatprep.subr.bf16.mxu0 0
      %1138 = vmatpush1.bf16.msra.mxu0 0
      %1139 = vmatprep.subr.bf16.mxu0 0
      %1140 = vmatpush1.bf16.msra.mxu0 0
      %1141 = vmatprep.subr.bf16.mxu0 0
      %1142 = vmatpush1.bf16.msra.mxu0 0
      %1143 = vmatprep.subr.bf16.mxu0 0
      %1144 = vmatpush1.bf16.msra.mxu0 0
      %1145 = vmatprep.subr.bf16.mxu0 0
      %1146 = vmatpush1.bf16.msra.mxu0 0
      %1147 = vmatprep.subr.bf16.mxu0 0
      %1148 = vmatpush1.bf16.msra.mxu0 0
      %1149 = vmatprep.subr.bf16.mxu0 0
      %1150 = vmatpush1.bf16.msra.mxu0 0
      %1151 = vmatprep.subr.bf16.mxu0 0
      %1152 = vmatpush1.bf16.msra.mxu0 0
      %1153 = vmatprep.subr.bf16.mxu0 0
      %1154 = vmatpush1.bf16.msra.mxu0 0
      %1155 = vmatprep.subr.bf16.mxu0 0
      %1156 = vmatpush1.bf16.msra.mxu0 0
      %1157 = vmatprep.subr.bf16.mxu0 0
      %1158 = vmatpush1.bf16.msra.mxu0 0
      %1159 = vmatprep.subr.bf16.mxu0 0
      %1160 = vmatpush1.bf16.msra.mxu0 0
      %1161 = vmatprep.mubr.bf16.mxu0 0
      %1162 = vmatmul.mubr.bf16.gmra.mrb[0].mxu0 %v1121
      %v1163 = vpop.f32.mrb[0].mxu0
      %v1164 = vadd.f32 0.0, %v1163
      %v1165 = vpop.f32.mrb[0].mxu0
      %v1166 = vpop.f32.mrb[0].mxu0
      %v1167 = vadd.f32 0.0, %v1166
      %v1168 = vpop.f32.mrb[0].mxu0
      %1169 = vmatprep.mubr.bf16.mxu0 0
      %1170 = vmatmul.mubr.bf16.gmra.mrb[0].mxu0 %v1124
      %v1171 = vpop.f32.mrb[0].mxu0
      %v1172 = vadd.f32 0.0, %v1171
      %v1173 = vpop.f32.mrb[0].mxu0
      %v1174 = vpop.f32.mrb[0].mxu0
      %v1175 = vadd.f32 0.0, %v1174
      %v1176 = vpop.f32.mrb[0].mxu0
      %1177 = vdwg.mxu0
      %v1178 = vadd.f32 %v1108, %v1164
      %v1179 = vadd.f32 %v1109, %v1167
      %v1180 = vadd.f32 %v1110, %v1172
      %v1181 = vadd.f32 %v1111, %v1175
      %1182 = vst [vmem:[#allocation2] sm:$0xff] %v1178
      %1183 = vst [vmem:[#allocation2 + $0x8] sm:$0xff] %v1179
      %1184 = vst [vmem:[#allocation2 + $0x10] sm:$0xff] %v1180
      %1185 = vst [vmem:[#allocation2 + $0x18] sm:$0xff] %v1181
      %v1186 = vld [vmem:[%s957] sm:$0xe]
      %v1187 = vld [vmem:[%s957 + $0x4] sm:$0x1]
      %v1188 = vld [vmem:[%s957 + $0x8] sm:$0xe]
      %v1189 = vld [vmem:[%s957 + $0xc] sm:$0x1]
      %v1190 = vld [vmem:[%s957 + $0x10] sm:$0xe]
      %v1191 = vld [vmem:[%s957 + $0x14] sm:$0x1]
      %v1192 = vld [vmem:[%s957 + $0x18] sm:$0xe]
      %v1193 = vld [vmem:[%s957 + $0x1c] sm:$0x1]
      %v1202 = vrot.slane %v1186, 5
      %v1203 = vrot.slane %v1202, 4
      %v1204 = vrot.slane %v1187, 5
      %v1205 = vsel %vm517, %v1203, %v1204
      %v1206 = vrot.slane %v1188, 5
      %v1207 = vrot.slane %v1206, 4
      %v1208 = vrot.slane %v1189, 5
      %v1209 = vsel %vm517, %v1207, %v1208
      %v1210 = vrot.slane %v1190, 5
      %v1211 = vrot.slane %v1210, 4
      %v1212 = vrot.slane %v1191, 5
      %v1213 = vsel %vm517, %v1211, %v1212
      %v1214 = vrot.slane %v1192, 5
      %v1215 = vrot.slane %v1214, 4
      %v1216 = vrot.slane %v1193, 5
      %v1217 = vsel %vm517, %v1215, %v1216
      %v1218 = vld [vmem:[#allocation2] sm:$0xff]
      %v1219 = vld [vmem:[#allocation2 + $0x8] sm:$0xff]
      %v1220 = vld [vmem:[#allocation2 + $0x10] sm:$0xff]
      %v1221 = vld [vmem:[#allocation2 + $0x18] sm:$0xff]
      %s1222 = scalar_lea.vmem %s1, 32
      %v1223 = vld [vmem:[%s1222] sm:$0xf]
      %v1224 = vunpack.c.l.b16 %v1205
      %v1225 = vunpack.c.l.b16 %v1209
      %v1226 = vunpack.c.l.b16 %v1213
      %v1227 = vunpack.c.l.b16 %v1217
      %v1228 = vpack.c.b16 %v1225, %v1224
      %v1229 = vpack.c.b16 %v1227, %v1226
      %v1231 = vsel %vm286, %v1228, 0
      %v1234 = vsel %vm286, %v1229, 0
      %v1237 = vsel %vm293, %v1223, 0
      %1239 = vmatprep.subr.bf16.mxu0 0
      %1240 = vmatpush1.bf16.msra.mxu0 %v1237
      %1241 = vmatprep.subr.bf16.mxu0 0
      %1242 = vmatpush1.bf16.msra.mxu0 0
      %1243 = vmatprep.subr.bf16.mxu0 0
      %1244 = vmatpush1.bf16.msra.mxu0 0
      %1245 = vmatprep.subr.bf16.mxu0 0
      %1246 = vmatpush1.bf16.msra.mxu0 0
      %1247 = vmatprep.subr.bf16.mxu0 0
      %1248 = vmatpush1.bf16.msra.mxu0 0
      %1249 = vmatprep.subr.bf16.mxu0 0
      %1250 = vmatpush1.bf16.msra.mxu0 0
      %1251 = vmatprep.subr.bf16.mxu0 0
      %1252 = vmatpush1.bf16.msra.mxu0 0
      %1253 = vmatprep.subr.bf16.mxu0 0
      %1254 = vmatpush1.bf16.msra.mxu0 0
      %1255 = vmatprep.subr.bf16.mxu0 0
      %1256 = vmatpush1.bf16.msra.mxu0 0
      %1257 = vmatprep.subr.bf16.mxu0 0
      %1258 = vmatpush1.bf16.msra.mxu0 0
      %1259 = vmatprep.subr.bf16.mxu0 0
      %1260 = vmatpush1.bf16.msra.mxu0 0
      %1261 = vmatprep.subr.bf16.mxu0 0
      %1262 = vmatpush1.bf16.msra.mxu0 0
      %1263 = vmatprep.subr.bf16.mxu0 0
      %1264 = vmatpush1.bf16.msra.mxu0 0
      %1265 = vmatprep.subr.bf16.mxu0 0
      %1266 = vmatpush1.bf16.msra.mxu0 0
      %1267 = vmatprep.subr.bf16.mxu0 0
      %1268 = vmatpush1.bf16.msra.mxu0 0
      %1269 = vmatprep.subr.bf16.mxu0 0
      %1270 = vmatpush1.bf16.msra.mxu0 0
      %1271 = vmatprep.mubr.bf16.mxu0 0
      %1272 = vmatmul.mubr.bf16.gmra.mrb[0].mxu0 %v1231
      %v1273 = vpop.f32.mrb[0].mxu0
      %v1274 = vadd.f32 0.0, %v1273
      %v1275 = vpop.f32.mrb[0].mxu0
      %v1276 = vpop.f32.mrb[0].mxu0
      %v1277 = vadd.f32 0.0, %v1276
      %v1278 = vpop.f32.mrb[0].mxu0
      %1279 = vmatprep.mubr.bf16.mxu0 0
      %1280 = vmatmul.mubr.bf16.gmra.mrb[0].mxu0 %v1234
      %v1281 = vpop.f32.mrb[0].mxu0
      %v1282 = vadd.f32 0.0, %v1281
      %v1283 = vpop.f32.mrb[0].mxu0
      %v1284 = vpop.f32.mrb[0].mxu0
      %v1285 = vadd.f32 0.0, %v1284
      %v1286 = vpop.f32.mrb[0].mxu0
      %1287 = vdwg.mxu0
      %v1288 = vadd.f32 %v1218, %v1274
      %v1289 = vadd.f32 %v1219, %v1277
      %v1290 = vadd.f32 %v1220, %v1282
      %v1291 = vadd.f32 %v1221, %v1285
      %1292 = vst [vmem:[#allocation2] sm:$0xff] %v1288
      %1293 = vst [vmem:[#allocation2 + $0x8] sm:$0xff] %v1289
      %1294 = vst [vmem:[#allocation2 + $0x10] sm:$0xff] %v1290
      %1295 = vst [vmem:[#allocation2 + $0x18] sm:$0xff] %v1291
      %v1296 = vld [vmem:[#allocation2] sm:$0xff]
      %v1297 = vld [vmem:[#allocation2 + $0x8] sm:$0xff]
      %v1298 = vld [vmem:[#allocation2 + $0x10] sm:$0xff]
      %v1299 = vld [vmem:[#allocation2 + $0x18] sm:$0xff]
      %v1300 = vpack.c.bf16 %v1296, %v1296
      %v1301 = vpack.c.bf16 %v1297, %v1297
      %v1302 = vpack.c.bf16 %v1298, %v1298
      %v1303 = vpack.c.bf16 %v1299, %v1299
      %1304 = vst [vmem:[%s242] sm:$0xf] %v1300
      %1305 = vst [vmem:[%s242 + $0x4] sm:$0xf] %v1301
      %1306 = vst [vmem:[%s242 + $0x8] sm:$0xf] %v1302
      %1307 = vst [vmem:[%s242 + $0xc] sm:$0xf] %v1303
      %v1308 = vadd.f32 %v1296, %v1297
      %v1309 = vadd.f32 %v1308, %v1298
      %v1310 = vadd.f32 %v1309, %v1299
      %v1311 = vrot.slane %v1310, 4
      %v1312 = vadd.f32 %v1310, %v1311
      %v1313 = vrot.slane %v1312, 2
      %v1314 = vadd.f32 %v1312, %v1313
      %v1315 = vrot.slane %v1314, 1
      %v1316 = vadd.f32 %v1314, %v1315
      %1317 = vst [vmem:[%s250] sm:$0x1] %v1316
      %v1318 = vmul.f32 %v1296, %v1296
      %v1319 = vmul.f32 %v1297, %v1297
      %v1320 = vmul.f32 %v1298, %v1298
      %v1321 = vmul.f32 %v1299, %v1299
      %v1322 = vadd.f32 %v1318, %v1319
      %v1323 = vadd.f32 %v1322, %v1320
      %v1324 = vadd.f32 %v1323, %v1321
      %v1325 = vrot.slane %v1324, 4
      %v1326 = vadd.f32 %v1324, %v1325
      %v1327 = vrot.slane %v1326, 2
      %v1328 = vadd.f32 %v1326, %v1327
      %v1329 = vrot.slane %v1328, 1
      %v1330 = vadd.f32 %v1328, %v1329
      %1331 = vst [vmem:[%s257] sm:$0x1] %v1330
      %s1332 = smul.u32 4, %s21
      %p1333 = scmp.lt.s32.totalorder %s20, 1
      %s1334 = scalar_select %p1333, %s20, 1
      %p1335 = scmp.lt.s32.totalorder %s1332, 7
      %s1336 = scalar_select %p1335, %s1332, 7
      %s1337 = smul.addr %s1334, 8
      %s1338 = sadd.s32 %s1336, %s1337
      %s1339 = smul.addr %s1338, 4
      %s1340 = scalar_lea.vmem %s2, %s1339
      %p1341 = scmp.lt.s32.totalorder %s20, 1
      %s1342 = scalar_select %p1341, %s20, 1
      %p1343 = scmp.lt.s32.totalorder %s21, 1
      %s1344 = scalar_select %p1343, %s21, 1
      %s1345 = smul.addr %s1342, 2
      %s1346 = sadd.s32 %s1344, %s1345
      %s1347 = scalar_lea.vmem %s3, %s1346
      %p1348 = scmp.lt.s32.totalorder %s20, 1
      %s1349 = scalar_select %p1348, %s20, 1
      %p1350 = scmp.lt.s32.totalorder %s21, 1
      %s1351 = scalar_select %p1350, %s21, 1
      %s1352 = smul.addr %s1349, 2
      %s1353 = sadd.s32 %s1351, %s1352
      %s1354 = scalar_lea.vmem %s4, %s1353
      // Predicated region
      $region29: #{basic_block_forward.8} parent=27 // pred_check
        %p1355 = pneg %p95
      $region30: #{basic_block_forward.8} parent=27 // pred_check_branch
        %1357 = sbr.rel (%p1355) target = $region32
      $region31: #{basic_block_forward.8} parent=27 // pred_region
        %s1358 = smul.u32 4, %s21
      $region32: #{basic_block_forward.8} parent=27 // pred_fallthru
        _
      // Predicated region
      $region33: #{basic_block_forward.8} parent=27 // pred_check
        %p1359 = pneg %p123
      $region34: #{basic_block_forward.8} parent=27 // pred_check_branch
        %1361 = sbr.rel (%p1359) target = $region36
      $region35: #{basic_block_forward.8} parent=27 // pred_region
        _
      $region36: #{basic_block_forward.8} parent=27 // pred_fallthru
        _
      // Predicated region
      $region37: #{basic_block_forward.8} parent=27 // pred_check
        %p1362 = pneg %p151
      $region38: #{basic_block_forward.8} parent=27 // pred_check_branch
        %1364 = sbr.rel (%p1362) target = $region40
      $region39: #{basic_block_forward.8} parent=27 // pred_region
        _
      $region40: #{basic_block_forward.8} parent=27 // pred_fallthru
        _
    $region28: #{basic_block_forward.8} parent=5 // pred_fallthru
      _
    %p1365 = scmp.le.s32.totalorder 2, %s11
    // Predicated region
    $region41: #{basic_block_forward.8} parent=5 // pred_check
      %p1366 = pneg %p1365
    $region42: #{basic_block_forward.8} parent=5 // pred_check_branch
      %1368 = sbr.rel (%p1366) target = $region44
    $region43: #{basic_block_forward.8} parent=5 // pred_region
      %s1369 = ssub.s32 %s11, 2
      // Predicated region
      $region45: #{basic_block_forward.8} parent=43 // pred_check
        %p1370 = pneg %p101
      $region46: #{basic_block_forward.8} parent=43 // pred_check_branch
        %1372 = sbr.rel (%p1370) target = $region48
      $region47: #{basic_block_forward.8} parent=43 // pred_region
        %s1373 = smul.u32 4, %s23
        %p1374 = scmp.lt.s32.totalorder %s22, 1
        %s1375 = scalar_select %p1374, %s22, 1
        %p1376 = scmp.lt.s32.totalorder %s1373, 7
        %s1377 = scalar_select %p1376, %s1373, 7
        %s1378 = smul.addr %s1375, 8
        %s1379 = sadd.s32 %s1377, %s1378
        %s1380 = smul.addr %s1379, 4
        %s1381 = scalar_lea.vmem %s2, %s1380
      $region48: #{basic_block_forward.8} parent=43 // pred_fallthru
        _
      // Predicated region
      $region49: #{basic_block_forward.8} parent=43 // pred_check
        %p1382 = pneg %p129
      $region50: #{basic_block_forward.8} parent=43 // pred_check_branch
        %1384 = sbr.rel (%p1382) target = $region52
      $region51: #{basic_block_forward.8} parent=43 // pred_region
        %p1385 = scmp.lt.s32.totalorder %s22, 1
        %s1386 = scalar_select %p1385, %s22, 1
        %p1387 = scmp.lt.s32.totalorder %s23, 1
        %s1388 = scalar_select %p1387, %s23, 1
        %s1389 = smul.addr %s1386, 2
        %s1390 = sadd.s32 %s1388, %s1389
        %s1391 = scalar_lea.vmem %s3, %s1390
      $region52: #{basic_block_forward.8} parent=43 // pred_fallthru
        _
      // Predicated region
      $region53: #{basic_block_forward.8} parent=43 // pred_check
        %p1392 = pneg %p157
      $region54: #{basic_block_forward.8} parent=43 // pred_check_branch
        %1394 = sbr.rel (%p1392) target = $region56
      $region55: #{basic_block_forward.8} parent=43 // pred_region
        %p1395 = scmp.lt.s32.totalorder %s22, 1
        %s1396 = scalar_select %p1395, %s22, 1
        %p1397 = scmp.lt.s32.totalorder %s23, 1
        %s1398 = scalar_select %p1397, %s23, 1
        %s1399 = smul.addr %s1396, 2
        %s1400 = sadd.s32 %s1398, %s1399
        %s1401 = scalar_lea.vmem %s4, %s1400
      $region56: #{basic_block_forward.8} parent=43 // pred_fallthru
        _
    $region44: #{basic_block_forward.8} parent=5 // pred_fallthru
      _
  $region6: #{basic_block_forward.8} parent=0 // loop_footer
    %s15 = sadd.s32 1, %s11
  $region7: #{basic_block_forward.8} parent=0 // loop_footer_branch
    %10 = sbr.rel target = $region3
  $region8: #{basic_block_forward.8} parent=0 // loop_exit
    _

// kernel: basic_block_forward.9
$region0: #{basic_block_forward.9}
  #allocation0 [shape = 'u32[]', space=smem, size = 0x4, offset = 0x4, fixed_abs, tag = 'smem constant byte address 0x4 - core index']
  #allocation1 [shape = 'u32[144,128]{1,0:T(1,128)}', space=vmem, size = 0x12000, scoped, tag = 'internal scratch']
  %s0 = inlined_call_operand.vmem [shape: bf16[128,128], index: 0, kind: input, shape index: {}]
  %s1 = inlined_call_operand.vmem [shape: f32[1,128], index: 1, kind: input, shape index: {}]
  %s2 = inlined_call_operand.vmem [shape: f32[1,128], index: 2, kind: input, shape index: {}]
  %s3 = inlined_call_operand.vmem [shape: bf16[128,4], index: 3, kind: input, shape index: {}]
  %s4 = inlined_call_operand.vmem [shape: bf16[4,128], index: 4, kind: input, shape index: {}]
  %s5 = inlined_call_operand.vmem [shape: f32[1,128], index: 5, kind: input, shape index: {}]
  %s6 = inlined_call_operand.vmem [shape: f32[1,128], index: 6, kind: input, shape index: {}]
  %s7 = inlined_call_operand.vmem [shape: f32[128,128], index: 7, kind: output, shape index: {}]
  %s8 = sld [smem:[#allocation0]]
  $region61: #{basic_block_forward.9} parent=0
    _
  %s10 = ssub.s32 1, %s8
  %s11 = scalar_select 0, %s10, %s8
  loop: start=0, step=1, limit=6
  $region2: #{basic_block_forward.9} parent=0 // loop_pre_header
    _
  $region3: #{basic_block_forward.9} parent=0 // loop_header
    %s13 = sphi 0, %s17
    %p14 = scmp.ge.s32.totalorder %s13, 6
    %s23 = sphi 0, %s25
    %s26 = sphi 0, %s23
    %s27 = sphi 0, %s26
    %s43 = sphi 0, %s27
    %s47 = sphi 0, %s47
    %s49 = sphi 0, %s47
    %s50 = sphi 0, %s49
    %s64 = sphi 0, %s50
    %s68 = sphi 0, %s68
    %s70 = sphi 0, %s68
    %s71 = sphi 0, %s70
    %s85 = sphi 0, %s71
    %s91 = sphi 0, %s93
    %s94 = sphi 0, %s91
    %s95 = sphi 0, %s94
    %s111 = sphi 0, %s95
    %s115 = sphi 0, %s115
    %s117 = sphi 0, %s115
    %s118 = sphi 0, %s117
    %s132 = sphi 0, %s118
    %s136 = sphi 0, %s136
    %s138 = sphi 0, %s136
    %s139 = sphi 0, %s138
    %s153 = sphi 0, %s139
    %s157 = sphi 0, %s157
    %s159 = sphi 0, %s157
    %s160 = sphi 0, %s159
    %s174 = sphi 0, %s160
    %s180 = sphi 0, %s182
    %s183 = sphi 0, %s180
    %s184 = sphi 0, %s183
    %s200 = sphi 0, %s184
  $region4: #{basic_block_forward.9} parent=0 // loop_header_branch
    %16 = sbr.rel (%p14) target = $region8
  $region5: #{basic_block_forward.9} parent=0 // loop_body
    %s18 = ssub.s32 %s13, 1
    %s19 = ssub.s32 %s13, 2
    %s20 = sadd.s32 %s13, 1
    %s21 = ssub.s32 %s13, %s20
    %p22 = scmp.eq.s32.totalorder %s21, 0
    %s24 = sadd.s32 %s23, 1
    %s25 = scalar_select %p22, %s23, %s24
    %p28 = pneg %p22
    %p29 = scmp.eq.s32.totalorder %s13, 3
    %p30 = por %p28, %p29
    %p31 = scmp.ne.s32.totalorder %s23, %s26
    %p32 = scmp.eq.s32.totalorder %s13, 0
    %p33 = por %p31, %p32
    %p34 = scmp.ne.s32.totalorder %s23, %s26
    %p35 = scmp.eq.s32.totalorder %s18, 3
    %p36 = por %p34, %p35
    %p37 = scmp.ne.s32.totalorder %s26, %s27
    %p38 = scmp.eq.s32.totalorder %s18, 0
    %p39 = por %p37, %p38
    %p40 = scmp.ne.s32.totalorder %s26, %s27
    %p41 = scmp.eq.s32.totalorder %s19, 3
    %p42 = por %p40, %p41
    %p44 = scmp.ne.s32.totalorder %s27, %s43
    %p45 = scmp.eq.s32.totalorder %s19, 0
    %p46 = por %p44, %p45
    %s48 = sadd.s32 %s47, 1
    %p51 = scmp.eq.s32.totalorder %s13, 3
    %p52 = scmp.ne.s32.totalorder %s47, %s49
    %p53 = scmp.eq.s32.totalorder %s13, 0
    %p54 = por %p52, %p53
    %p55 = scmp.ne.s32.totalorder %s47, %s49
    %p56 = scmp.eq.s32.totalorder %s18, 3
    %p57 = por %p55, %p56
    %p58 = scmp.ne.s32.totalorder %s49, %s50
    %p59 = scmp.eq.s32.totalorder %s18, 0
    %p60 = por %p58, %p59
    %p61 = scmp.ne.s32.totalorder %s49, %s50
    %p62 = scmp.eq.s32.totalorder %s19, 3
    %p63 = por %p61, %p62
    %p65 = scmp.ne.s32.totalorder %s50, %s64
    %p66 = scmp.eq.s32.totalorder %s19, 0
    %p67 = por %p65, %p66
    %s69 = sadd.s32 %s68, 1
    %p72 = scmp.eq.s32.totalorder %s13, 3
    %p73 = scmp.ne.s32.totalorder %s68, %s70
    %p74 = scmp.eq.s32.totalorder %s13, 0
    %p75 = por %p73, %p74
    %p76 = scmp.ne.s32.totalorder %s68, %s70
    %p77 = scmp.eq.s32.totalorder %s18, 3
    %p78 = por %p76, %p77
    %p79 = scmp.ne.s32.totalorder %s70, %s71
    %p80 = scmp.eq.s32.totalorder %s18, 0
    %p81 = por %p79, %p80
    %p82 = scmp.ne.s32.totalorder %s70, %s71
    %p83 = scmp.eq.s32.totalorder %s19, 3
    %p84 = por %p82, %p83
    %p86 = scmp.ne.s32.totalorder %s71, %s85
    %p87 = scmp.eq.s32.totalorder %s19, 0
    %p88 = por %p86, %p87
    %s89 = ssub.s32 %s13, %s20
    %p90 = scmp.eq.s32.totalorder %s89, 0
    %s92 = sadd.s32 %s91, 1
    %s93 = scalar_select %p90, %s91, %s92
    %p96 = pneg %p90
    %p97 = scmp.eq.s32.totalorder %s13, 3
    %p98 = por %p96, %p97
    %p99 = scmp.ne.s32.totalorder %s91, %s94
    %p100 = scmp.eq.s32.totalorder %s13, 0
    %p101 = por %p99, %p100
    %p102 = scmp.ne.s32.totalorder %s91, %s94
    %p103 = scmp.eq.s32.totalorder %s18, 3
    %p104 = por %p102, %p103
    %p105 = scmp.ne.s32.totalorder %s94, %s95
    %p106 = scmp.eq.s32.totalorder %s18, 0
    %p107 = por %p105, %p106
    %p108 = scmp.ne.s32.totalorder %s94, %s95
    %p109 = scmp.eq.s32.totalorder %s19, 3
    %p110 = por %p108, %p109
    %p112 = scmp.ne.s32.totalorder %s95, %s111
    %p113 = scmp.eq.s32.totalorder %s19, 0
    %p114 = por %p112, %p113
    %s116 = sadd.s32 %s115, 1
    %p119 = scmp.eq.s32.totalorder %s13, 3
    %p120 = scmp.ne.s32.totalorder %s115, %s117
    %p121 = scmp.eq.s32.totalorder %s13, 0
    %p122 = por %p120, %p121
    %p123 = scmp.ne.s32.totalorder %s115, %s117
    %p124 = scmp.eq.s32.totalorder %s18, 3
    %p125 = por %p123, %p124
    %p126 = scmp.ne.s32.totalorder %s117, %s118
    %p127 = scmp.eq.s32.totalorder %s18, 0
    %p128 = por %p126, %p127
    %p129 = scmp.ne.s32.totalorder %s117, %s118
    %p130 = scmp.eq.s32.totalorder %s19, 3
    %p131 = por %p129, %p130
    %p133 = scmp.ne.s32.totalorder %s118, %s132
    %p134 = scmp.eq.s32.totalorder %s19, 0
    %p135 = por %p133, %p134
    %s137 = sadd.s32 %s136, 1
    %p140 = scmp.eq.s32.totalorder %s13, 3
    %p141 = scmp.ne.s32.totalorder %s136, %s138
    %p142 = scmp.eq.s32.totalorder %s13, 0
    %p143 = por %p141, %p142
    %p144 = scmp.ne.s32.totalorder %s136, %s138
    %p145 = scmp.eq.s32.totalorder %s18, 3
    %p146 = por %p144, %p145
    %p147 = scmp.ne.s32.totalorder %s138, %s139
    %p148 = scmp.eq.s32.totalorder %s18, 0
    %p149 = por %p147, %p148
    %p150 = scmp.ne.s32.totalorder %s138, %s139
    %p151 = scmp.eq.s32.totalorder %s19, 3
    %p152 = por %p150, %p151
    %p154 = scmp.ne.s32.totalorder %s139, %s153
    %p155 = scmp.eq.s32.totalorder %s19, 0
    %p156 = por %p154, %p155
    %s158 = sadd.s32 %s157, 1
    %p161 = scmp.eq.s32.totalorder %s13, 3
    %p162 = scmp.ne.s32.totalorder %s157, %s159
    %p163 = scmp.eq.s32.totalorder %s13, 0
    %p164 = por %p162, %p163
    %p165 = scmp.ne.s32.totalorder %s157, %s159
    %p166 = scmp.eq.s32.totalorder %s18, 3
    %p167 = por %p165, %p166
    %p168 = scmp.ne.s32.totalorder %s159, %s160
    %p169 = scmp.eq.s32.totalorder %s18, 0
    %p170 = por %p168, %p169
    %p171 = scmp.ne.s32.totalorder %s159, %s160
    %p172 = scmp.eq.s32.totalorder %s19, 3
    %p173 = por %p171, %p172
    %p175 = scmp.ne.s32.totalorder %s160, %s174
    %p176 = scmp.eq.s32.totalorder %s19, 0
    %p177 = por %p175, %p176
    %s178 = ssub.s32 %s13, %s20
    %p179 = scmp.eq.s32.totalorder %s178, 0
    %s181 = sadd.s32 %s180, 1
    %s182 = scalar_select %p179, %s180, %s181
    %p185 = pneg %p179
    %p186 = scmp.eq.s32.totalorder %s13, 3
    %p187 = por %p185, %p186
    %p188 = scmp.ne.s32.totalorder %s180, %s183
    %p189 = scmp.eq.s32.totalorder %s13, 0
    %p190 = por %p188, %p189
    %p191 = scmp.ne.s32.totalorder %s180, %s183
    %p192 = scmp.eq.s32.totalorder %s18, 3
    %p193 = por %p191, %p192
    %p194 = scmp.ne.s32.totalorder %s183, %s184
    %p195 = scmp.eq.s32.totalorder %s18, 0
    %p196 = por %p194, %p195
    %p197 = scmp.ne.s32.totalorder %s183, %s184
    %p198 = scmp.eq.s32.totalorder %s19, 3
    %p199 = por %p197, %p198
    %p201 = scmp.ne.s32.totalorder %s184, %s200
    %p202 = scmp.eq.s32.totalorder %s19, 0
    %p203 = por %p201, %p202
    %p204 = scmp.le.s32.totalorder 1, %s13
    %p205 = scmp.lt.s32.totalorder %s13, 5
    %p206 = pnand %p204, %p205
    %p207 = pneg %p206
    // Predicated region
    $region9: #{basic_block_forward.9} parent=5 // pred_check
      _
    $region10: #{basic_block_forward.9} parent=5 // pred_check_branch
      %209 = sbr.rel (%p206) target = $region12
    $region11: #{basic_block_forward.9} parent=5 // pred_region
      %s210 = ssub.s32 %s13, 1
      // Predicated region
      $region13: #{basic_block_forward.9} parent=11 // pred_check
        %p211 = pneg %p60
      $region14: #{basic_block_forward.9} parent=11 // pred_check_branch
        %213 = sbr.rel (%p211) target = $region16
      $region15: #{basic_block_forward.9} parent=11 // pred_region
        _
      $region16: #{basic_block_forward.9} parent=11 // pred_fallthru
        _
      // Predicated region
      $region17: #{basic_block_forward.9} parent=11 // pred_check
        %p214 = pneg %p81
      $region18: #{basic_block_forward.9} parent=11 // pred_check_branch
        %216 = sbr.rel (%p214) target = $region20
      $region19: #{basic_block_forward.9} parent=11 // pred_region
        _
      $region20: #{basic_block_forward.9} parent=11 // pred_fallthru
        _
      // Predicated region
      $region21: #{basic_block_forward.9} parent=11 // pred_check
        %p217 = pneg %p128
      $region22: #{basic_block_forward.9} parent=11 // pred_check_branch
        %219 = sbr.rel (%p217) target = $region24
      $region23: #{basic_block_forward.9} parent=11 // pred_region
        _
      $region24: #{basic_block_forward.9} parent=11 // pred_fallthru
        _
      // Predicated region
      $region25: #{basic_block_forward.9} parent=11 // pred_check
        %p220 = pneg %p149
      $region26: #{basic_block_forward.9} parent=11 // pred_check_branch
        %222 = sbr.rel (%p220) target = $region28
      $region27: #{basic_block_forward.9} parent=11 // pred_region
        _
      $region28: #{basic_block_forward.9} parent=11 // pred_fallthru
        _
      // Predicated region
      $region29: #{basic_block_forward.9} parent=11 // pred_check
        %p223 = pneg %p170
      $region30: #{basic_block_forward.9} parent=11 // pred_check_branch
        %225 = sbr.rel (%p223) target = $region32
      $region31: #{basic_block_forward.9} parent=11 // pred_region
        _
      $region32: #{basic_block_forward.9} parent=11 // pred_fallthru
        _
    $region12: #{basic_block_forward.9} parent=5 // pred_fallthru
      _
    %p226 = scmp.lt.s32.totalorder %s13, 4
    // Predicated region
    $region33: #{basic_block_forward.9} parent=5 // pred_check
      %p227 = pneg %p226
    $region34: #{basic_block_forward.9} parent=5 // pred_check_branch
      %229 = sbr.rel (%p227) target = $region36
    $region35: #{basic_block_forward.9} parent=5 // pred_region
      // Predicated region
      $region37: #{basic_block_forward.9} parent=35 // pred_check
        %p230 = pneg %p33
      $region38: #{basic_block_forward.9} parent=35 // pred_check_branch
        %232 = sbr.rel (%p230) target = $region40
      $region39: #{basic_block_forward.9} parent=35 // pred_region
        %s233 = smul.u32 4, %s13
        %p234 = scmp.lt.s32.totalorder %s233, 15
        %s235 = scalar_select %p234, %s233, 15
        %s236 = smul.addr %s235, 4
        %s237 = scalar_lea.vmem %s0, %s236
        %s238 = smul.u32 4, %s13
      $region40: #{basic_block_forward.9} parent=35 // pred_fallthru
        _
      // Predicated region
      $region41: #{basic_block_forward.9} parent=35 // pred_check
        %p239 = pneg %p101
      $region42: #{basic_block_forward.9} parent=35 // pred_check_branch
        %241 = sbr.rel (%p239) target = $region44
      $region43: #{basic_block_forward.9} parent=35 // pred_region
        %s242 = smul.u32 4, %s13
        %p243 = scmp.lt.s32.totalorder %s242, 15
        %s244 = scalar_select %p243, %s242, 15
        %s245 = smul.addr %s244, 4
        %s246 = scalar_lea.vmem %s3, %s245
        %s247 = smul.u32 4, %s13
      $region44: #{basic_block_forward.9} parent=35 // pred_fallthru
        _
    $region36: #{basic_block_forward.9} parent=5 // pred_fallthru
      _
    %p248 = scmp.le.s32.totalorder 1, %s13
    %p249 = scmp.lt.s32.totalorder %s13, 5
    %p250 = pnand %p248, %p249
    %p251 = pneg %p250
    // Predicated region
    $region45: #{basic_block_forward.9} parent=5 // pred_check
      _
    $region46: #{basic_block_forward.9} parent=5 // pred_check_branch
      %253 = sbr.rel (%p250) target = $region48
    $region47: #{basic_block_forward.9} parent=5 // pred_region
      %s254 = ssub.s32 %s13, 1
      %s255 = smul.u32 4, %s18
      %p256 = scmp.lt.s32.totalorder %s255, 15
      %s257 = scalar_select %p256, %s255, 15
      %s258 = smul.addr %s257, 4
      %s259 = scalar_lea.vmem %s0, %s258
      %p260 = pneg %p39
      %p261 = pneg %p36
      %p262 = pneg %p60
      %p263 = pneg %p57
      %p264 = pneg %p81
      %p265 = pneg %p78
      %s266 = smul.u32 4, %s18
      %p267 = scmp.lt.s32.totalorder %s266, 15
      %s268 = scalar_select %p267, %s266, 15
      %s269 = smul.addr %s268, 4
      %s270 = scalar_lea.vmem %s3, %s269
      %p271 = pneg %p107
      %p272 = pneg %p104
      %p273 = pneg %p128
      %p274 = pneg %p125
      %p275 = pneg %p149
      %p276 = pneg %p146
      %p277 = pneg %p170
      %p278 = pneg %p167
      %p279 = pneg %p196
      %p280 = pneg %p193
      %s281 = smul.u32 4, %s18
      %p282 = scmp.lt.s32.totalorder %s281, 15
      %s283 = scalar_select %p282, %s281, 15
      %s284 = smul.addr %s283, 8
      %s285 = scalar_lea.vmem %s7, %s284
      %s286 = smul.u32 4, %s18
      %p287 = scmp.lt.s32.totalorder %s286, 15
      %s288 = scalar_select %p287, %s286, 15
      %s289 = smul.addr %s288, 4
      %s290 = scalar_lea.vmem %s0, %s289
      %s291 = smul.u32 4, %s18
      %s292 = smul.u32 4, %s18
      %p293 = scmp.lt.s32.totalorder %s292, 15
      %s294 = scalar_select %p293, %s292, 15
      %s295 = smul.addr %s294, 4
      %s296 = scalar_lea.vmem %s3, %s295
      %s297 = smul.u32 4, %s18
      %s298 = smul.u32 4, %s18
      %p299 = scmp.lt.s32.totalorder %s298, 15
      %s300 = scalar_select %p299, %s298, 15
      %s301 = smul.addr %s300, 8
      %s302 = scalar_lea.vmem %s7, %s301
      %s303 = smul.u32 4, %s18
      %v305 = vld [vmem:[%s290] sm:$0xf]
      %v306 = vld [vmem:[%s290 + $0x4] sm:$0xf]
      %v307 = vld [vmem:[%s290 + $0x8] sm:$0xf]
      %v308 = vld [vmem:[%s290 + $0xc] sm:$0xf]
      %v309 = vunpack.c.l.bf16 %v305
      %v310 = vunpack.c.l.bf16 %v306
      %v311 = vunpack.c.l.bf16 %v307
      %v312 = vunpack.c.l.bf16 %v308
      %v313 = vld [vmem:[%s1] sm:$0x1]
      %v315 = vlaneseq
      %v316 = vshrl.u32 %v315, 7
      %v317 = vsub.s32 0, %v316
      %v318 = vrot.slane %v313, %v317
      %v320 = vmul.f32 %v309, %v318
      %v321 = vmul.f32 %v310, %v318
      %v322 = vmul.f32 %v311, %v318
      %v323 = vmul.f32 %v312, %v318
      %v324 = vld [vmem:[%s2] sm:$0x1]
      %v326 = vlaneseq
      %v327 = vshrl.u32 %v326, 7
      %v328 = vsub.s32 0, %v327
      %v329 = vrot.slane %v324, %v328
      %v331 = vadd.f32 %v320, %v329
      %v332 = vadd.f32 %v321, %v329
      %v333 = vadd.f32 %v322, %v329
      %v334 = vadd.f32 %v323, %v329
      %v335 = vld [vmem:[%s296] sm:$0xf]
      %v336 = vld [vmem:[%s296 + $0x4] sm:$0xf]
      %v337 = vld [vmem:[%s296 + $0x8] sm:$0xf]
      %v338 = vld [vmem:[%s296 + $0xc] sm:$0xf]
      %v339 = vld [vmem:[%s4] sm:$0x3]
      %v344 = vunpack.c.l.b16 %v335
      %v345 = vunpack.c.l.b16 %v336
      %v346 = vunpack.c.l.b16 %v337
      %v347 = vunpack.c.l.b16 %v338
      %v348 = vpack.c.b16 %v345, %v344
      %v349 = vpack.c.b16 %v347, %v346
      %vm350 = vcmask 31744
      %v352 = vsel %vm350, %v348, 0
      %v355 = vsel %vm350, %v349, 0
      %vm357 = vcmask 1041408
      %v359 = vsel %vm357, %v339, 0
      %361 = vmatprep.subr.bf16.mxu0 0
      %362 = vmatpush1.bf16.msra.mxu0 %v359
      %363 = vmatprep.subr.bf16.mxu0 0
      %364 = vmatpush1.bf16.msra.mxu0 0
      %365 = vmatprep.subr.bf16.mxu0 0
      %366 = vmatpush1.bf16.msra.mxu0 0
      %367 = vmatprep.subr.bf16.mxu0 0
      %368 = vmatpush1.bf16.msra.mxu0 0
      %369 = vmatprep.subr.bf16.mxu0 0
      %370 = vmatpush1.bf16.msra.mxu0 0
      %371 = vmatprep.subr.bf16.mxu0 0
      %372 = vmatpush1.bf16.msra.mxu0 0
      %373 = vmatprep.subr.bf16.mxu0 0
      %374 = vmatpush1.bf16.msra.mxu0 0
      %375 = vmatprep.subr.bf16.mxu0 0
      %376 = vmatpush1.bf16.msra.mxu0 0
      %377 = vmatprep.subr.bf16.mxu0 0
      %378 = vmatpush1.bf16.msra.mxu0 0
      %379 = vmatprep.subr.bf16.mxu0 0
      %380 = vmatpush1.bf16.msra.mxu0 0
      %381 = vmatprep.subr.bf16.mxu0 0
      %382 = vmatpush1.bf16.msra.mxu0 0
      %383 = vmatprep.subr.bf16.mxu0 0
      %384 = vmatpush1.bf16.msra.mxu0 0
      %385 = vmatprep.subr.bf16.mxu0 0
      %386 = vmatpush1.bf16.msra.mxu0 0
      %387 = vmatprep.subr.bf16.mxu0 0
      %388 = vmatpush1.bf16.msra.mxu0 0
      %389 = vmatprep.subr.bf16.mxu0 0
      %390 = vmatpush1.bf16.msra.mxu0 0
      %391 = vmatprep.subr.bf16.mxu0 0
      %392 = vmatpush1.bf16.msra.mxu0 0
      %393 = vmatprep.mubr.bf16.mxu0 0
      %394 = vmatmul.mubr.bf16.gmra.mrb[0].mxu0 %v352
      %v395 = vpop.f32.mrb[0].mxu0
      %v396 = vadd.f32 0.0, %v395
      %v397 = vpop.f32.mrb[0].mxu0
      %v398 = vpop.f32.mrb[0].mxu0
      %v399 = vadd.f32 0.0, %v398
      %v400 = vpop.f32.mrb[0].mxu0
      %401 = vmatprep.mubr.bf16.mxu0 0
      %402 = vmatmul.mubr.bf16.gmra.mrb[0].mxu0 %v355
      %v403 = vpop.f32.mrb[0].mxu0
      %v404 = vadd.f32 0.0, %v403
      %v405 = vpop.f32.mrb[0].mxu0
      %v406 = vpop.f32.mrb[0].mxu0
      %v407 = vadd.f32 0.0, %v406
      %v408 = vpop.f32.mrb[0].mxu0
      %409 = vdwg.mxu0
      %v410 = vld [vmem:[%s5] sm:$0x1]
      %v412 = vlaneseq
      %v413 = vshrl.u32 %v412, 7
      %v414 = vsub.s32 0, %v413
      %v415 = vrot.slane %v410, %v414
      %v417 = vmul.f32 %v396, %v415
      %v418 = vmul.f32 %v399, %v415
      %v419 = vmul.f32 %v404, %v415
      %v420 = vmul.f32 %v407, %v415
      %v421 = vadd.f32 %v331, %v417
      %v422 = vadd.f32 %v332, %v418
      %v423 = vadd.f32 %v333, %v419
      %v424 = vadd.f32 %v334, %v420
      %v425 = vld [vmem:[%s6] sm:$0x1]
      %v427 = vlaneseq
      %v428 = vshrl.u32 %v427, 7
      %v429 = vsub.s32 0, %v428
      %v430 = vrot.slane %v425, %v429
      %v432 = vadd.f32 %v421, %v430
      %v433 = vadd.f32 %v422, %v430
      %v434 = vadd.f32 %v423, %v430
      %v435 = vadd.f32 %v424, %v430
      %v436 = vmax.f32 %v432, 0.0
      %v437 = vmax.f32 %v433, 0.0
      %v438 = vmax.f32 %v434, 0.0
      %v439 = vmax.f32 %v435, 0.0
      %440 = vst [vmem:[%s302] sm:$0xff] %v436
      %441 = vst [vmem:[%s302 + $0x8] sm:$0xff] %v437
      %442 = vst [vmem:[%s302 + $0x10] sm:$0xff] %v438
      %443 = vst [vmem:[%s302 + $0x18] sm:$0xff] %v439
      %s444 = smul.u32 4, %s18
      %p445 = scmp.lt.s32.totalorder %s444, 15
      %s446 = scalar_select %p445, %s444, 15
      %s447 = smul.addr %s446, 8
      %s448 = scalar_lea.vmem %s7, %s447
      // Predicated region
      $region49: #{basic_block_forward.9} parent=47 // pred_check
        %p449 = pneg %p193
      $region50: #{basic_block_forward.9} parent=47 // pred_check_branch
        %451 = sbr.rel (%p449) target = $region52
      $region51: #{basic_block_forward.9} parent=47 // pred_region
        %s452 = smul.u32 4, %s18
      $region52: #{basic_block_forward.9} parent=47 // pred_fallthru
        _
    $region48: #{basic_block_forward.9} parent=5 // pred_fallthru
      _
    %p453 = scmp.le.s32.totalorder 2, %s13
    // Predicated region
    $region53: #{basic_block_forward.9} parent=5 // pred_check
      %p454 = pneg %p453
    $region54: #{basic_block_forward.9} parent=5 // pred_check_branch
      %456 = sbr.rel (%p454) target = $region56
    $region55: #{basic_block_forward.9} parent=5 // pred_region
      %s457 = ssub.s32 %s13, 2
      // Predicated region
      $region57: #{basic_block_forward.9} parent=55 // pred_check
        %p458 = pneg %p199
      $region58: #{basic_block_forward.9} parent=55 // pred_check_branch
        %460 = sbr.rel (%p458) target = $region60
      $region59: #{basic_block_forward.9} parent=55 // pred_region
        %s461 = smul.u32 4, %s19
        %p462 = scmp.lt.s32.totalorder %s461, 15
        %s463 = scalar_select %p462, %s461, 15
        %s464 = smul.addr %s463, 8
        %s465 = scalar_lea.vmem %s7, %s464
      $region60: #{basic_block_forward.9} parent=55 // pred_fallthru
        _
    $region56: #{basic_block_forward.9} parent=5 // pred_fallthru
      _
  $region6: #{basic_block_forward.9} parent=0 // loop_footer
    %s17 = sadd.s32 1, %s13
  $region7: #{basic_block_forward.9} parent=0 // loop_footer_branch
    %12 = sbr.rel target = $region3
  $region8: #{basic_block_forward.9} parent=0 // loop_exit
    _

// kernel: basic_block_forward.7
$region0: #{basic_block_forward.7}
  #allocation0 [shape = 'u32[]', space=smem, size = 0x4, offset = 0x4, fixed_abs, tag = 'smem constant byte address 0x4 - core index']
  #allocation1 [shape = 'u32[144,128]{1,0:T(1,128)}', space=vmem, size = 0x12000, scoped, tag = 'internal scratch']
  %s0 = inlined_call_operand.vmem [shape: bf16[128,4], index: 0, kind: input, shape index: {}]
  %s1 = inlined_call_operand.vmem [shape: bf16[4,128], index: 1, kind: input, shape index: {}]
  %s2 = inlined_call_operand.vmem [shape: f32[4,1,128], index: 2, kind: output, shape index: {0}]
  %s3 = inlined_call_operand.vmem [shape: f32[4,1,128], index: 3, kind: output, shape index: {1}]
  %4 = xla_tuple %s2, %s3
  %s5 = sld [smem:[#allocation0]]
  $region49: #{basic_block_forward.7} parent=0
    _
  %s7 = ssub.s32 1, %s5
  %s8 = scalar_select 0, %s7, %s5
  loop: start=0, step=1, limit=6
  $region2: #{basic_block_forward.7} parent=0 // loop_pre_header
    _
  $region3: #{basic_block_forward.7} parent=0 // loop_header
    %s10 = sphi 0, %s14
    %p11 = scmp.ge.s32.totalorder %s10, 6
    %s20 = sphi 0, %s22
    %s23 = sphi 0, %s20
    %s24 = sphi 0, %s23
    %s40 = sphi 0, %s24
    %s44 = sphi 0, %s44
    %s46 = sphi 0, %s44
    %s47 = sphi 0, %s46
    %s61 = sphi 0, %s47
    %s67 = sphi 0, %s69
    %s70 = sphi 0, %s67
    %s71 = sphi 0, %s70
    %s87 = sphi 0, %s71
    %s93 = sphi 0, %s95
    %s96 = sphi 0, %s93
    %s97 = sphi 0, %s96
    %s113 = sphi 0, %s97
  $region4: #{basic_block_forward.7} parent=0 // loop_header_branch
    %13 = sbr.rel (%p11) target = $region8
  $region5: #{basic_block_forward.7} parent=0 // loop_body
    %s15 = ssub.s32 %s10, 1
    %s16 = ssub.s32 %s10, 2
    %s17 = sadd.s32 %s10, 1
    %s18 = ssub.s32 %s10, %s17
    %p19 = scmp.eq.s32.totalorder %s18, 0
    %s21 = sadd.s32 %s20, 1
    %s22 = scalar_select %p19, %s20, %s21
    %p25 = pneg %p19
    %p26 = scmp.eq.s32.totalorder %s10, 3
    %p27 = por %p25, %p26
    %p28 = scmp.ne.s32.totalorder %s20, %s23
    %p29 = scmp.eq.s32.totalorder %s10, 0
    %p30 = por %p28, %p29
    %p31 = scmp.ne.s32.totalorder %s20, %s23
    %p32 = scmp.eq.s32.totalorder %s15, 3
    %p33 = por %p31, %p32
    %p34 = scmp.ne.s32.totalorder %s23, %s24
    %p35 = scmp.eq.s32.totalorder %s15, 0
    %p36 = por %p34, %p35
    %p37 = scmp.ne.s32.totalorder %s23, %s24
    %p38 = scmp.eq.s32.totalorder %s16, 3
    %p39 = por %p37, %p38
    %p41 = scmp.ne.s32.totalorder %s24, %s40
    %p42 = scmp.eq.s32.totalorder %s16, 0
    %p43 = por %p41, %p42
    %s45 = sadd.s32 %s44, 1
    %p48 = scmp.eq.s32.totalorder %s10, 3
    %p49 = scmp.ne.s32.totalorder %s44, %s46
    %p50 = scmp.eq.s32.totalorder %s10, 0
    %p51 = por %p49, %p50
    %p52 = scmp.ne.s32.totalorder %s44, %s46
    %p53 = scmp.eq.s32.totalorder %s15, 3
    %p54 = por %p52, %p53
    %p55 = scmp.ne.s32.totalorder %s46, %s47
    %p56 = scmp.eq.s32.totalorder %s15, 0
    %p57 = por %p55, %p56
    %p58 = scmp.ne.s32.totalorder %s46, %s47
    %p59 = scmp.eq.s32.totalorder %s16, 3
    %p60 = por %p58, %p59
    %p62 = scmp.ne.s32.totalorder %s47, %s61
    %p63 = scmp.eq.s32.totalorder %s16, 0
    %p64 = por %p62, %p63
    %s65 = ssub.s32 %s10, %s17
    %p66 = scmp.eq.s32.totalorder %s65, 0
    %s68 = sadd.s32 %s67, 1
    %s69 = scalar_select %p66, %s67, %s68
    %p72 = pneg %p66
    %p73 = scmp.eq.s32.totalorder %s10, 3
    %p74 = por %p72, %p73
    %p75 = scmp.ne.s32.totalorder %s67, %s70
    %p76 = scmp.eq.s32.totalorder %s10, 0
    %p77 = por %p75, %p76
    %p78 = scmp.ne.s32.totalorder %s67, %s70
    %p79 = scmp.eq.s32.totalorder %s15, 3
    %p80 = por %p78, %p79
    %p81 = scmp.ne.s32.totalorder %s70, %s71
    %p82 = scmp.eq.s32.totalorder %s15, 0
    %p83 = por %p81, %p82
    %p84 = scmp.ne.s32.totalorder %s70, %s71
    %p85 = scmp.eq.s32.totalorder %s16, 3
    %p86 = por %p84, %p85
    %p88 = scmp.ne.s32.totalorder %s71, %s87
    %p89 = scmp.eq.s32.totalorder %s16, 0
    %p90 = por %p88, %p89
    %s91 = ssub.s32 %s10, %s17
    %p92 = scmp.eq.s32.totalorder %s91, 0
    %s94 = sadd.s32 %s93, 1
    %s95 = scalar_select %p92, %s93, %s94
    %p98 = pneg %p92
    %p99 = scmp.eq.s32.totalorder %s10, 3
    %p100 = por %p98, %p99
    %p101 = scmp.ne.s32.totalorder %s93, %s96
    %p102 = scmp.eq.s32.totalorder %s10, 0
    %p103 = por %p101, %p102
    %p104 = scmp.ne.s32.totalorder %s93, %s96
    %p105 = scmp.eq.s32.totalorder %s15, 3
    %p106 = por %p104, %p105
    %p107 = scmp.ne.s32.totalorder %s96, %s97
    %p108 = scmp.eq.s32.totalorder %s15, 0
    %p109 = por %p107, %p108
    %p110 = scmp.ne.s32.totalorder %s96, %s97
    %p111 = scmp.eq.s32.totalorder %s16, 3
    %p112 = por %p110, %p111
    %p114 = scmp.ne.s32.totalorder %s97, %s113
    %p115 = scmp.eq.s32.totalorder %s16, 0
    %p116 = por %p114, %p115
    %p117 = scmp.le.s32.totalorder 1, %s10
    %p118 = scmp.lt.s32.totalorder %s10, 5
    %p119 = pnand %p117, %p118
    %p120 = pneg %p119
    // Predicated region
    $region9: #{basic_block_forward.7} parent=5 // pred_check
      _
    $region10: #{basic_block_forward.7} parent=5 // pred_check_branch
      %122 = sbr.rel (%p119) target = $region12
    $region11: #{basic_block_forward.7} parent=5 // pred_region
      %s123 = ssub.s32 %s10, 1
      // Predicated region
      $region13: #{basic_block_forward.7} parent=11 // pred_check
        %p124 = pneg %p57
      $region14: #{basic_block_forward.7} parent=11 // pred_check_branch
        %126 = sbr.rel (%p124) target = $region16
      $region15: #{basic_block_forward.7} parent=11 // pred_region
        _
      $region16: #{basic_block_forward.7} parent=11 // pred_fallthru
        _
    $region12: #{basic_block_forward.7} parent=5 // pred_fallthru
      _
    %p127 = scmp.lt.s32.totalorder %s10, 4
    // Predicated region
    $region17: #{basic_block_forward.7} parent=5 // pred_check
      %p128 = pneg %p127
    $region18: #{basic_block_forward.7} parent=5 // pred_check_branch
      %130 = sbr.rel (%p128) target = $region20
    $region19: #{basic_block_forward.7} parent=5 // pred_region
      // Predicated region
      $region21: #{basic_block_forward.7} parent=19 // pred_check
        %p131 = pneg %p30
      $region22: #{basic_block_forward.7} parent=19 // pred_check_branch
        %133 = sbr.rel (%p131) target = $region24
      $region23: #{basic_block_forward.7} parent=19 // pred_region
        %s134 = smul.u32 4, %s10
        %p135 = scmp.lt.s32.totalorder %s134, 15
        %s136 = scalar_select %p135, %s134, 15
        %s137 = smul.addr %s136, 4
        %s138 = scalar_lea.vmem %s0, %s137
        %s139 = smul.u32 4, %s10
      $region24: #{basic_block_forward.7} parent=19 // pred_fallthru
        _
    $region20: #{basic_block_forward.7} parent=5 // pred_fallthru
      _
    %p140 = scmp.le.s32.totalorder 1, %s10
    %p141 = scmp.lt.s32.totalorder %s10, 5
    %p142 = pnand %p140, %p141
    %p143 = pneg %p142
    // Predicated region
    $region25: #{basic_block_forward.7} parent=5 // pred_check
      _
    $region26: #{basic_block_forward.7} parent=5 // pred_check_branch
      %145 = sbr.rel (%p142) target = $region28
    $region27: #{basic_block_forward.7} parent=5 // pred_region
      %s146 = ssub.s32 %s10, 1
      %s147 = smul.u32 4, %s15
      %p148 = scmp.lt.s32.totalorder %s147, 15
      %s149 = scalar_select %p148, %s147, 15
      %s150 = smul.addr %s149, 4
      %s151 = scalar_lea.vmem %s0, %s150
      %p152 = pneg %p36
      %p153 = pneg %p33
      %p154 = pneg %p57
      %p155 = pneg %p54
      %p156 = pneg %p83
      %p157 = pneg %p80
      %p158 = scmp.lt.s32.totalorder %s15, 3
      %s159 = scalar_select %p158, %s15, 3
      %s160 = scalar_lea.vmem %s2, %s159
      %p161 = pneg %p109
      %p162 = pneg %p106
      %p163 = scmp.lt.s32.totalorder %s15, 3
      %s164 = scalar_select %p163, %s15, 3
      %s165 = scalar_lea.vmem %s3, %s164
      %s166 = smul.u32 4, %s15
      %p167 = scmp.lt.s32.totalorder %s166, 15
      %s168 = scalar_select %p167, %s166, 15
      %s169 = smul.addr %s168, 4
      %s170 = scalar_lea.vmem %s0, %s169
      %s171 = smul.u32 4, %s15
      %p172 = scmp.lt.s32.totalorder %s15, 3
      %s173 = scalar_select %p172, %s15, 3
      %s174 = scalar_lea.vmem %s2, %s173
      %p175 = scmp.lt.s32.totalorder %s15, 3
      %s176 = scalar_select %p175, %s15, 3
      %s177 = scalar_lea.vmem %s3, %s176
      %v179 = vld [vmem:[%s170] sm:$0xf]
      %v180 = vld [vmem:[%s170 + $0x4] sm:$0xf]
      %v181 = vld [vmem:[%s170 + $0x8] sm:$0xf]
      %v182 = vld [vmem:[%s170 + $0xc] sm:$0xf]
      %v183 = vld [vmem:[%s1] sm:$0x3]
      %v188 = vunpack.c.l.b16 %v179
      %v189 = vunpack.c.l.b16 %v180
      %v190 = vunpack.c.l.b16 %v181
      %v191 = vunpack.c.l.b16 %v182
      %v192 = vpack.c.b16 %v189, %v188
      %v193 = vpack.c.b16 %v191, %v190
      %vm194 = vcmask 31744
      %v196 = vsel %vm194, %v192, 0
      %v199 = vsel %vm194, %v193, 0
      %vm201 = vcmask 1041408
      %v203 = vsel %vm201, %v183, 0
      %205 = vmatprep.subr.bf16.mxu0 0
      %206 = vmatpush1.bf16.msra.mxu0 %v203
      %207 = vmatprep.subr.bf16.mxu0 0
      %208 = vmatpush1.bf16.msra.mxu0 0
      %209 = vmatprep.subr.bf16.mxu0 0
      %210 = vmatpush1.bf16.msra.mxu0 0
      %211 = vmatprep.subr.bf16.mxu0 0
      %212 = vmatpush1.bf16.msra.mxu0 0
      %213 = vmatprep.subr.bf16.mxu0 0
      %214 = vmatpush1.bf16.msra.mxu0 0
      %215 = vmatprep.subr.bf16.mxu0 0
      %216 = vmatpush1.bf16.msra.mxu0 0
      %217 = vmatprep.subr.bf16.mxu0 0
      %218 = vmatpush1.bf16.msra.mxu0 0
      %219 = vmatprep.subr.bf16.mxu0 0
      %220 = vmatpush1.bf16.msra.mxu0 0
      %221 = vmatprep.subr.bf16.mxu0 0
      %222 = vmatpush1.bf16.msra.mxu0 0
      %223 = vmatprep.subr.bf16.mxu0 0
      %224 = vmatpush1.bf16.msra.mxu0 0
      %225 = vmatprep.subr.bf16.mxu0 0
      %226 = vmatpush1.bf16.msra.mxu0 0
      %227 = vmatprep.subr.bf16.mxu0 0
      %228 = vmatpush1.bf16.msra.mxu0 0
      %229 = vmatprep.subr.bf16.mxu0 0
      %230 = vmatpush1.bf16.msra.mxu0 0
      %231 = vmatprep.subr.bf16.mxu0 0
      %232 = vmatpush1.bf16.msra.mxu0 0
      %233 = vmatprep.subr.bf16.mxu0 0
      %234 = vmatpush1.bf16.msra.mxu0 0
      %235 = vmatprep.subr.bf16.mxu0 0
      %236 = vmatpush1.bf16.msra.mxu0 0
      %237 = vmatprep.mubr.bf16.mxu0 0
      %238 = vmatmul.mubr.bf16.gmra.mrb[0].mxu0 %v196
      %v239 = vpop.f32.mrb[0].mxu0
      %v240 = vadd.f32 0.0, %v239
      %v241 = vpop.f32.mrb[0].mxu0
      %v242 = vpop.f32.mrb[0].mxu0
      %v243 = vadd.f32 0.0, %v242
      %v244 = vpop.f32.mrb[0].mxu0
      %245 = vmatprep.mubr.bf16.mxu0 0
      %246 = vmatmul.mubr.bf16.gmra.mrb[0].mxu0 %v199
      %v247 = vpop.f32.mrb[0].mxu0
      %v248 = vadd.f32 0.0, %v247
      %v249 = vpop.f32.mrb[0].mxu0
      %v250 = vpop.f32.mrb[0].mxu0
      %v251 = vadd.f32 0.0, %v250
      %v252 = vpop.f32.mrb[0].mxu0
      %253 = vdwg.mxu0
      %v254 = vadd.f32 %v240, %v243
      %v255 = vadd.f32 %v254, %v248
      %v256 = vadd.f32 %v255, %v251
      %v257 = vrot.slane %v256, 4
      %v258 = vadd.f32 %v256, %v257
      %v259 = vrot.slane %v258, 2
      %v260 = vadd.f32 %v258, %v259
      %v261 = vrot.slane %v260, 1
      %v262 = vadd.f32 %v260, %v261
      %263 = vst [vmem:[%s174] sm:$0x1] %v262
      %v264 = vmul.f32 %v240, %v240
      %v265 = vmul.f32 %v243, %v243
      %v266 = vmul.f32 %v248, %v248
      %v267 = vmul.f32 %v251, %v251
      %v268 = vadd.f32 %v264, %v265
      %v269 = vadd.f32 %v268, %v266
      %v270 = vadd.f32 %v269, %v267
      %v271 = vrot.slane %v270, 4
      %v272 = vadd.f32 %v270, %v271
      %v273 = vrot.slane %v272, 2
      %v274 = vadd.f32 %v272, %v273
      %v275 = vrot.slane %v274, 1
      %v276 = vadd.f32 %v274, %v275
      %277 = vst [vmem:[%s177] sm:$0x1] %v276
      %p278 = scmp.lt.s32.totalorder %s15, 3
      %s279 = scalar_select %p278, %s15, 3
      %s280 = scalar_lea.vmem %s2, %s279
      %p281 = scmp.lt.s32.totalorder %s15, 3
      %s282 = scalar_select %p281, %s15, 3
      %s283 = scalar_lea.vmem %s3, %s282
      // Predicated region
      $region29: #{basic_block_forward.7} parent=27 // pred_check
        %p284 = pneg %p80
      $region30: #{basic_block_forward.7} parent=27 // pred_check_branch
        %286 = sbr.rel (%p284) target = $region32
      $region31: #{basic_block_forward.7} parent=27 // pred_region
        _
      $region32: #{basic_block_forward.7} parent=27 // pred_fallthru
        _
      // Predicated region
      $region33: #{basic_block_forward.7} parent=27 // pred_check
        %p287 = pneg %p106
      $region34: #{basic_block_forward.7} parent=27 // pred_check_branch
        %289 = sbr.rel (%p287) target = $region36
      $region35: #{basic_block_forward.7} parent=27 // pred_region
        _
      $region36: #{basic_block_forward.7} parent=27 // pred_fallthru
        _
    $region28: #{basic_block_forward.7} parent=5 // pred_fallthru
      _
    %p290 = scmp.le.s32.totalorder 2, %s10
    // Predicated region
    $region37: #{basic_block_forward.7} parent=5 // pred_check
      %p291 = pneg %p290
    $region38: #{basic_block_forward.7} parent=5 // pred_check_branch
      %293 = sbr.rel (%p291) target = $region40
    $region39: #{basic_block_forward.7} parent=5 // pred_region
      %s294 = ssub.s32 %s10, 2
      // Predicated region
      $region41: #{basic_block_forward.7} parent=39 // pred_check
        %p295 = pneg %p86
      $region42: #{basic_block_forward.7} parent=39 // pred_check_branch
        %297 = sbr.rel (%p295) target = $region44
      $region43: #{basic_block_forward.7} parent=39 // pred_region
        %p298 = scmp.lt.s32.totalorder %s16, 3
        %s299 = scalar_select %p298, %s16, 3
        %s300 = scalar_lea.vmem %s2, %s299
      $region44: #{basic_block_forward.7} parent=39 // pred_fallthru
        _
      // Predicated region
      $region45: #{basic_block_forward.7} parent=39 // pred_check
        %p301 = pneg %p112
      $region46: #{basic_block_forward.7} parent=39 // pred_check_branch
        %303 = sbr.rel (%p301) target = $region48
      $region47: #{basic_block_forward.7} parent=39 // pred_region
        %p304 = scmp.lt.s32.totalorder %s16, 3
        %s305 = scalar_select %p304, %s16, 3
        %s306 = scalar_lea.vmem %s3, %s305
      $region48: #{basic_block_forward.7} parent=39 // pred_fallthru
        _
    $region40: #{basic_block_forward.7} parent=5 // pred_fallthru
      _
  $region6: #{basic_block_forward.7} parent=0 // loop_footer
    %s14 = sadd.s32 1, %s10
  $region7: #{basic_block_forward.7} parent=0 // loop_footer_branch
    %9 = sbr.rel target = $region3
  $region8: #{basic_block_forward.7} parent=0 // loop_exit
    _

</llo_original>
